<compile_context>
chip_gen: v7x
topology: tpu7x:2x2x1
jax: 0.10.0
libtpu: 0.0.40
codegen_flags: <defaults>
</compile_context>

<pallas_src>
import jax
import jax.numpy as jnp
from jax.experimental import pallas as pl
from jax.experimental.pallas import tpu as pltpu

# small shapes consistent with the forward (mini encoder)
B, S, H = 2, 8, 32
NUM_HEADS = 4
HEAD_DIM = H // NUM_HEADS
FFN = 64
NUM_LAYERS = 2
VOCAB = 128
LN_EPS = 1e-5
VEC_ROWS = 10       # packed per-layer vectors: bq,bk,bv,bo,g1,be1,b1,b2,g2,be2
VEC_LANES = 128     # lane-padded so the slab is one dense (8,128)-tiled block


def _layernorm(x, gamma, beta):
    mu = jnp.mean(x, axis=-1, keepdims=True)
    var = jnp.mean((x - mu) ** 2, axis=-1, keepdims=True)
    return (x - mu) * jax.lax.rsqrt(var + LN_EPS) * gamma + beta


def _gelu(x):
    c = 0.7978845608028654  # sqrt(2/pi)
    return 0.5 * x * (1.0 + jnp.tanh(c * (x + 0.044715 * x * x * x)))


# ---------------------------------------------------------------------------
# Single fused kernel: embedding + 2-layer encoder + pooling + L2-normalize
# ---------------------------------------------------------------------------
def make_fused_kernel(pooling, normalize):
    def kernel(ids_ref, mask_ref, tok_ref, pos_ref, wattn_ref,
               w1_ref, w2_ref, vec_ref, out_ref):
        maskf = mask_ref[...]                                   # (B, S) f32
        scale = 1.0 / (HEAD_DIM ** 0.5)

        # ---- token embedding lookup as a one-hot matmul (in-kernel gather) ----
        # ids arrive pre-shaped (B*S, 1) so no in-kernel lane->sublane reshape.
        vocab_iota = jax.lax.broadcasted_iota(jnp.int32, (B * S, VOCAB), 1)
        onehot = (vocab_iota == ids_ref[...]).astype(jnp.float32)   # (B*S, VOCAB)
        x2 = jnp.dot(onehot, tok_ref[...], preferred_element_type=jnp.float32)
        x = x2.reshape(B, S, H) + pos_ref[...][None, :, :]          # (B, S, H)

        # ---- hoisted broadcasts (computed once, reused across layers/heads) ----
        bias3 = jnp.broadcast_to(((1.0 - maskf) * (-1e9)).reshape(B, 1, S),
                                 (B, S, S))                         # key-mask bias
        lane = jax.lax.broadcasted_iota(jnp.int32, (1, 1, H), 2)
        head_masks = [((lane >= h * HEAD_DIM) & (lane < (h + 1) * HEAD_DIM))
                      .astype(jnp.float32) for h in range(NUM_HEADS)]

        for l in range(NUM_LAYERS):                 # static layer loop
            wa = wattn_ref[l]                       # (4, H, H): wq, wk, wv, wo
            wq, wk, wv, wo = wa[0], wa[1], wa[2], wa[3]
            vv = vec_ref[l]                         # (VEC_ROWS, 128) padded slab
            bq, bk, bv = vv[0:1, :H], vv[1:2, :H], vv[2:3, :H]
            bo = vv[3:4, :H]
            g1, be1 = vv[4:5, :H], vv[5:6, :H]
            b1 = vv[6:7, :FFN]
            b2 = vv[7:8, :H]
            g2, be2 = vv[8:9, :H], vv[9:10, :H]

            # ---- multi-head self attention ----
            x2 = x.reshape(B * S, H)
            q = (jnp.dot(x2, wq, preferred_element_type=jnp.float32) + bq).reshape(B, S, H)
            k = (jnp.dot(x2, wk, preferred_element_type=jnp.float32) + bk).reshape(B, S, H)
            v = (jnp.dot(x2, wv, preferred_element_type=jnp.float32) + bv).reshape(B, S, H)

            # Per-head attention with lane masks: masking q zeroes other heads'
            # contributions to the scores; masking v confines each head's
            # context to its own lane range, so a plain add reassembles the
            # concatenated context and Wo is applied with ONE K=32 matmul.
            ctx = jnp.zeros((B, S, H), jnp.float32)
            for h in range(NUM_HEADS):              # static head loop
                hm = head_masks[h]
                s_h = jnp.einsum('bqd,bkd->bqk', q * hm, k,
                                 preferred_element_type=jnp.float32) * scale
                s_h = s_h + bias3
                s_h = s_h - jnp.max(s_h, axis=-1, keepdims=True)
                p_h = jnp.exp(s_h)
                p_h = p_h * pl.reciprocal(jnp.sum(p_h, axis=-1, keepdims=True),
                                          approx=True)           # EUP, not VALU
                ctx = ctx + jnp.einsum('bqk,bkd->bqd', p_h, v * hm,
                                       preferred_element_type=jnp.float32)

            attn = jnp.dot(ctx.reshape(B * S, H), wo,
                           preferred_element_type=jnp.float32) + bo
            x = _layernorm(x + attn.reshape(B, S, H), g1, be1)

            # ---- feed-forward ----
            ff = _gelu(jnp.dot(x.reshape(B * S, H), w1_ref[l],
                               preferred_element_type=jnp.float32) + b1)
            ff = jnp.dot(ff, w2_ref[l], preferred_element_type=jnp.float32) + b2
            x = _layernorm(x + ff.reshape(B, S, H), g2, be2)

        # ---- pooling (fused; no second pallas_call / HBM round trip) ----
        if pooling == 'mean':
            summed = jnp.sum(x * maskf[:, :, None], axis=1)              # (B, H)
            counts = jnp.maximum(jnp.sum(maskf, axis=1, keepdims=True), 1.0)
            emb = summed / counts
        elif pooling == 'LLM':
            # last-token pooling; torch's data-dependent `left_padding` Python
            # branch is implemented as an in-kernel select.
            lengths = jnp.sum(maskf, axis=1, keepdims=True) - 1.0        # (B, 1)
            all_last = jnp.min(maskf[:, S - 1:S], axis=0, keepdims=True)  # (1, 1)
            idx = jnp.where(all_last >= 0.5,
                            jnp.full((B, 1), float(S - 1), jnp.float32),
                            lengths)                                      # (B, 1)
            pos_iota = jax.lax.broadcasted_iota(
                jnp.int32, (B, S), 1).astype(jnp.float32)
            sel = (pos_iota == idx).astype(jnp.float32)                   # (B, S)
            emb = jnp.sum(sel[:, :, None] * x, axis=1)                    # (B, H)
        else:
            assert pooling == 'cls'
            emb = x[:, 0, :]                                              # (B, H)

        if normalize:
            emb = emb * jax.lax.rsqrt(jnp.sum(emb * emb, axis=-1, keepdims=True))

        # NOTE: (B, H) = (2, 32) output is lane-sparse (<128 lanes) -> masked
        # store; negligible at this size (flagged per perf review).
        out_ref[...] = emb.astype(out_ref.dtype)

    return kernel


def _vmem_spec():
    return pl.BlockSpec(memory_space=pltpu.MemorySpace.VMEM)


# ---------------------------------------------------------------------------
# Wrapper: parameter setup + trace-time repacking, compute in one Pallas call
# ---------------------------------------------------------------------------
class EmbeddingModelWrapperPallas:
    def __init__(self, key, normalize=True, pooling='cls'):
        self.normalize = normalize
        self.pooling = pooling
        ks = jax.random.split(key, 8)

        def init(k, shape, scale=0.02):
            return (scale * jax.random.normal(k, shape)).astype(jnp.float32)

        # canonical parameters (also used by the pure-JAX reference)
        self.tok_emb = init(ks[0], (VOCAB, H), 0.05)
        self.pos_emb = init(ks[1], (S, H), 0.05)
        self.wqkv = init(ks[2], (NUM_LAYERS, H, 3 * H))
        self.bqkv = jnp.zeros((NUM_LAYERS, 3 * H), jnp.float32)
        self.wo = init(ks[3], (NUM_LAYERS, H, H))
        self.bo = jnp.zeros((NUM_LAYERS, H), jnp.float32)
        self.g1 = jnp.ones((NUM_LAYERS, H), jnp.float32)
        self.be1 = jnp.zeros((NUM_LAYERS, H), jnp.float32)
        self.w1 = init(ks[4], (NUM_LAYERS, H, FFN))
        self.b1 = init(ks[5], (NUM_LAYERS, FFN))
        self.w2 = init(ks[6], (NUM_LAYERS, FFN, H))
        self.b2 = init(ks[7], (NUM_LAYERS, H))
        self.g2 = jnp.ones((NUM_LAYERS, H), jnp.float32)
        self.be2 = jnp.zeros((NUM_LAYERS, H), jnp.float32)

        # --- trace-time repacking for the kernel ---
        # Q/K/V weight columns are sliced HERE (static, free) so the kernel
        # never lane-slices activations; all attention matrices in one input.
        self.w_attn = jnp.stack(
            [self.wqkv[:, :, 0:H], self.wqkv[:, :, H:2 * H],
             self.wqkv[:, :, 2 * H:3 * H], self.wo], axis=1)     # (L, 4, H, H)

        # All 10 small per-layer vectors packed into one lane-padded slab:
        # one DMA descriptor / one dense VMEM tile per layer instead of 10.
        def row(vec):
            return jnp.pad(vec, ((0, 0), (0, VEC_LANES - vec.shape[-1])))[:, None, :]

        self.vecs = jnp.concatenate(
            [row(self.bqkv[:, 0:H]), row(self.bqkv[:, H:2 * H]),
             row(self.bqkv[:, 2 * H:3 * H]), row(self.bo),
             row(self.g1), row(self.be1), row(self.b1), row(self.b2),
             row(self.g2), row(self.be2)], axis=1)               # (L, 10, 128)

    def __call__(self, ids, mask):
        ids_col = ids.reshape(B * S, 1).astype(jnp.int32)
        mask_f = mask.astype(jnp.float32)
        # TODO(synk): for a real-sized encoder (H>=768, S>=512) this must become
        # a gridded kernel: BlockSpec-tile over (B, S), stream per-layer weights,
        # dimension_semantics=("parallel", ...) so v7x's two TensorCores split
        # the batch, bf16 matmul inputs (f32 accumulate) on v6e/v7x, and an
        # explicit vmem_limit_bytes re-derived for v7x's 64 MiB VMEM.
        return pl.pallas_call(
            make_fused_kernel(self.pooling, self.normalize),
            out_shape=jax.ShapeDtypeStruct((B, H), jnp.float32),
            in_specs=[_vmem_spec() for _ in range(8)],
            out_specs=_vmem_spec(),
        )(ids_col, mask_f, self.tok_emb, self.pos_emb,
          self.w_attn, self.w1, self.w2, self.vecs)


# ---------------------------------------------------------------------------
# Pure-JAX reference (same math, no Pallas) for the correctness check
# ---------------------------------------------------------------------------
def reference_forward(m, ids, mask):
    x = m.tok_emb[ids] + m.pos_emb[None, :, :]
    maskf = mask.astype(jnp.float32)
    bias = (1.0 - maskf) * (-1e9)
    for l in range(NUM_LAYERS):
        x2 = x.reshape(B * S, H)
        qkv = (x2 @ m.wqkv[l] + m.bqkv[l]).reshape(B, S, 3 * H)
        q, k, v = qkv[..., :H], qkv[..., H:2 * H], qkv[..., 2 * H:]
        qh = q.reshape(B, S, NUM_HEADS, HEAD_DIM).transpose(0, 2, 1, 3)
        kh = k.reshape(B, S, NUM_HEADS, HEAD_DIM).transpose(0, 2, 1, 3)
        vh = v.reshape(B, S, NUM_HEADS, HEAD_DIM).transpose(0, 2, 1, 3)
        s = jnp.einsum('bhqd,bhkd->bhqk', qh, kh) / (HEAD_DIM ** 0.5)
        s = s + bias[:, None, None, :]
        p = jax.nn.softmax(s, axis=-1)
        ctx = jnp.einsum('bhqk,bhkd->bhqd', p, vh).transpose(0, 2, 1, 3)
        attn = ctx.reshape(B * S, H) @ m.wo[l] + m.bo[l]
        x = _layernorm(x + attn.reshape(B, S, H), m.g1[l], m.be1[l])
        ff = _gelu(x.reshape(B * S, H) @ m.w1[l] + m.b1[l]) @ m.w2[l] + m.b2[l]
        x = _layernorm(x + ff.reshape(B, S, H), m.g2[l], m.be2[l])
    if m.pooling == 'mean':
        emb = (x * maskf[..., None]).sum(1) / maskf.sum(1, keepdims=True)
    elif m.pooling == 'LLM':
        left_padding = jnp.sum(mask[:, -1]) == mask.shape[0]
        seq_len = jnp.sum(mask, axis=1) - 1
        emb = jnp.where(left_padding, x[:, -1, :], x[jnp.arange(B), seq_len])
    else:
        emb = x[:, 0]
    if m.normalize:
        emb = emb / jnp.linalg.norm(emb, axis=1, keepdims=True)
    return emb


if __name__ == "__main__":
    key = jax.random.PRNGKey(0)
    k_ids, k_params = jax.random.split(key)
    ids = jax.random.randint(k_ids, (B, S), 0, VOCAB, dtype=jnp.int32)
    mask = jnp.array([[1, 1, 1, 1, 1, 1, 1, 1],
                      [1, 1, 1, 1, 1, 0, 0, 0]], dtype=jnp.int32)

    # default config of the torch module is pooling='cls', normalize=True;
    # also exercise the 'mean' and 'LLM' pooling paths.
    for pooling in ('cls', 'mean', 'LLM'):
        model = EmbeddingModelWrapperPallas(k_params, normalize=True, pooling=pooling)
        embs = model(ids, mask)
        jax.block_until_ready(embs)
        ref = reference_forward(model, ids, mask)
        assert embs.shape == (B, H)
        assert jnp.allclose(embs, ref, atol=3e-3, rtol=3e-3), pooling

    print("KERNEL_OK")
</pallas_src>

<mosaic_0001>
module attributes {stable_mosaic.version = 11 : i64} {
  func.func @kernel(%arg0: memref<16x1xi32, #tpu.memory_space<vmem>>, %arg1: memref<2x8xf32, #tpu.memory_space<vmem>>, %arg2: memref<128x32xf32, #tpu.memory_space<vmem>>, %arg3: memref<8x32xf32, #tpu.memory_space<vmem>>, %arg4: memref<2x4x32x32xf32, #tpu.memory_space<vmem>>, %arg5: memref<2x32x64xf32, #tpu.memory_space<vmem>>, %arg6: memref<2x64x32xf32, #tpu.memory_space<vmem>>, %arg7: memref<2x10x128xf32, #tpu.memory_space<vmem>>, %arg8: memref<2x32xf32, #tpu.memory_space<vmem>>) attributes {dimension_semantics = [], scalar_prefetch = 0 : i64, scratch_operands = 0 : i64, tpu.core_type = #tpu.core_type<tc>} {
    %c0 = arith.constant 0 : index
    %c0_0 = arith.constant 0 : index
    %0 = vector.load %arg1[%c0, %c0_0] : memref<2x8xf32, #tpu.memory_space<vmem>>, vector<2x8xf32>
    %1 = tpu.iota {dimensions = array<i32: 1>} : vector<16x128xi32>
    %c0_1 = arith.constant 0 : index
    %c0_2 = arith.constant 0 : index
    %2 = vector.load %arg0[%c0_1, %c0_2] : memref<16x1xi32, #tpu.memory_space<vmem>>, vector<16x1xi32>
    %3 = vector.broadcast %2 : vector<16x1xi32> to vector<16x128xi32>
    %4 = arith.cmpi eq, %1, %3 : vector<16x128xi32>
    %5 = arith.extui %4 : vector<16x128xi1> to vector<16x128xi32>
    %6 = arith.sitofp %5 : vector<16x128xi32> to vector<16x128xf32>
    %c0_3 = arith.constant 0 : index
    %c0_4 = arith.constant 0 : index
    %7 = vector.load %arg2[%c0_3, %c0_4] : memref<128x32xf32, #tpu.memory_space<vmem>>, vector<128x32xf32>
    %cst = arith.constant dense<0.000000e+00> : vector<16x32xf32>
    %8 = tpu.matmul %6, %7, %cst {dimension_numbers = #tpu.dot_dimension_numbers<[1], [0], [0], [1], [0, 0, 1, 1], [], []>} : vector<16x128xf32>, vector<128x32xf32>, vector<16x32xf32> -> vector<16x32xf32>
    %9 = vector.shape_cast %8 : vector<16x32xf32> to vector<2x8x32xf32>
    %c0_5 = arith.constant 0 : index
    %c0_6 = arith.constant 0 : index
    %10 = vector.load %arg3[%c0_5, %c0_6] : memref<8x32xf32, #tpu.memory_space<vmem>>, vector<8x32xf32>
    %11 = vector.shape_cast %10 : vector<8x32xf32> to vector<1x8x32xf32>
    %12 = vector.broadcast %11 : vector<1x8x32xf32> to vector<2x8x32xf32>
    %13 = arith.addf %9, %12 : vector<2x8x32xf32>
    %cst_7 = arith.constant 1.000000e+00 : f32
    %14 = vector.broadcast %cst_7 : f32 to vector<2x8xf32>
    %15 = arith.subf %14, %0 : vector<2x8xf32>
    %cst_8 = arith.constant -1.000000e+09 : f32
    %16 = vector.broadcast %cst_8 : f32 to vector<2x8xf32>
    %17 = arith.mulf %15, %16 : vector<2x8xf32>
    %18 = vector.shape_cast %17 : vector<2x8xf32> to vector<2x1x8xf32>
    %19 = vector.shape_cast %18 : vector<2x1x8xf32> to vector<2x1x8xf32>
    %20 = vector.broadcast %19 : vector<2x1x8xf32> to vector<2x8x8xf32>
    %21 = tpu.iota {dimensions = array<i32: 2>} : vector<1x1x32xi32>
    %c0_i32 = arith.constant 0 : i32
    %22 = vector.broadcast %c0_i32 : i32 to vector<1x1x32xi32>
    %23 = arith.cmpi sge, %21, %22 : vector<1x1x32xi32>
    %c8_i32 = arith.constant 8 : i32
    %24 = vector.broadcast %c8_i32 : i32 to vector<1x1x32xi32>
    %25 = arith.cmpi slt, %21, %24 : vector<1x1x32xi32>
    %26 = arith.andi %23, %25 : vector<1x1x32xi1>
    %27 = arith.extui %26 : vector<1x1x32xi1> to vector<1x1x32xi32>
    %28 = arith.sitofp %27 : vector<1x1x32xi32> to vector<1x1x32xf32>
    %c8_i32_9 = arith.constant 8 : i32
    %29 = vector.broadcast %c8_i32_9 : i32 to vector<1x1x32xi32>
    %30 = arith.cmpi sge, %21, %29 : vector<1x1x32xi32>
    %c16_i32 = arith.constant 16 : i32
    %31 = vector.broadcast %c16_i32 : i32 to vector<1x1x32xi32>
    %32 = arith.cmpi slt, %21, %31 : vector<1x1x32xi32>
    %33 = arith.andi %30, %32 : vector<1x1x32xi1>
    %34 = arith.extui %33 : vector<1x1x32xi1> to vector<1x1x32xi32>
    %35 = arith.sitofp %34 : vector<1x1x32xi32> to vector<1x1x32xf32>
    %c16_i32_10 = arith.constant 16 : i32
    %36 = vector.broadcast %c16_i32_10 : i32 to vector<1x1x32xi32>
    %37 = arith.cmpi sge, %21, %36 : vector<1x1x32xi32>
    %c24_i32 = arith.constant 24 : i32
    %38 = vector.broadcast %c24_i32 : i32 to vector<1x1x32xi32>
    %39 = arith.cmpi slt, %21, %38 : vector<1x1x32xi32>
    %40 = arith.andi %37, %39 : vector<1x1x32xi1>
    %41 = arith.extui %40 : vector<1x1x32xi1> to vector<1x1x32xi32>
    %42 = arith.sitofp %41 : vector<1x1x32xi32> to vector<1x1x32xf32>
    %c24_i32_11 = arith.constant 24 : i32
    %43 = vector.broadcast %c24_i32_11 : i32 to vector<1x1x32xi32>
    %44 = arith.cmpi sge, %21, %43 : vector<1x1x32xi32>
    %c32_i32 = arith.constant 32 : i32
    %45 = vector.broadcast %c32_i32 : i32 to vector<1x1x32xi32>
    %46 = arith.cmpi slt, %21, %45 : vector<1x1x32xi32>
    %47 = arith.andi %44, %46 : vector<1x1x32xi1>
    %48 = arith.extui %47 : vector<1x1x32xi1> to vector<1x1x32xi32>
    %49 = arith.sitofp %48 : vector<1x1x32xi32> to vector<1x1x32xf32>
    %c0_12 = arith.constant 0 : index
    %c0_13 = arith.constant 0 : index
    %c0_14 = arith.constant 0 : index
    %c0_15 = arith.constant 0 : index
    %50 = vector.load %arg4[%c0_12, %c0_13, %c0_14, %c0_15] : memref<2x4x32x32xf32, #tpu.memory_space<vmem>>, vector<1x4x32x32xf32>
    %51 = vector.shape_cast %50 : vector<1x4x32x32xf32> to vector<4x32x32xf32>
    %52 = vector.extract_strided_slice %51 {offsets = [0, 0, 0], sizes = [1, 32, 32], strides = [1, 1, 1]} : vector<4x32x32xf32> to vector<1x32x32xf32>
    %53 = vector.shape_cast %52 : vector<1x32x32xf32> to vector<32x32xf32>
    %54 = vector.extract_strided_slice %51 {offsets = [1, 0, 0], sizes = [1, 32, 32], strides = [1, 1, 1]} : vector<4x32x32xf32> to vector<1x32x32xf32>
    %55 = vector.shape_cast %54 : vector<1x32x32xf32> to vector<32x32xf32>
    %56 = vector.extract_strided_slice %51 {offsets = [2, 0, 0], sizes = [1, 32, 32], strides = [1, 1, 1]} : vector<4x32x32xf32> to vector<1x32x32xf32>
    %57 = vector.shape_cast %56 : vector<1x32x32xf32> to vector<32x32xf32>
    %58 = vector.extract_strided_slice %51 {offsets = [3, 0, 0], sizes = [1, 32, 32], strides = [1, 1, 1]} : vector<4x32x32xf32> to vector<1x32x32xf32>
    %59 = vector.shape_cast %58 : vector<1x32x32xf32> to vector<32x32xf32>
    %c0_16 = arith.constant 0 : index
    %c0_17 = arith.constant 0 : index
    %c0_18 = arith.constant 0 : index
    %60 = vector.load %arg7[%c0_16, %c0_17, %c0_18] : memref<2x10x128xf32, #tpu.memory_space<vmem>>, vector<1x10x128xf32>
    %61 = vector.shape_cast %60 : vector<1x10x128xf32> to vector<10x128xf32>
    %62 = vector.extract_strided_slice %61 {offsets = [0, 0], sizes = [1, 32], strides = [1, 1]} : vector<10x128xf32> to vector<1x32xf32>
    %63 = vector.extract_strided_slice %61 {offsets = [1, 0], sizes = [1, 32], strides = [1, 1]} : vector<10x128xf32> to vector<1x32xf32>
    %64 = vector.extract_strided_slice %61 {offsets = [2, 0], sizes = [1, 32], strides = [1, 1]} : vector<10x128xf32> to vector<1x32xf32>
    %65 = vector.extract_strided_slice %61 {offsets = [3, 0], sizes = [1, 32], strides = [1, 1]} : vector<10x128xf32> to vector<1x32xf32>
    %66 = vector.extract_strided_slice %61 {offsets = [4, 0], sizes = [1, 32], strides = [1, 1]} : vector<10x128xf32> to vector<1x32xf32>
    %67 = vector.extract_strided_slice %61 {offsets = [5, 0], sizes = [1, 32], strides = [1, 1]} : vector<10x128xf32> to vector<1x32xf32>
    %68 = vector.extract_strided_slice %61 {offsets = [6, 0], sizes = [1, 64], strides = [1, 1]} : vector<10x128xf32> to vector<1x64xf32>
    %69 = vector.extract_strided_slice %61 {offsets = [7, 0], sizes = [1, 32], strides = [1, 1]} : vector<10x128xf32> to vector<1x32xf32>
    %70 = vector.extract_strided_slice %61 {offsets = [8, 0], sizes = [1, 32], strides = [1, 1]} : vector<10x128xf32> to vector<1x32xf32>
    %71 = vector.extract_strided_slice %61 {offsets = [9, 0], sizes = [1, 32], strides = [1, 1]} : vector<10x128xf32> to vector<1x32xf32>
    %72 = vector.shape_cast %13 : vector<2x8x32xf32> to vector<16x32xf32>
    %cst_19 = arith.constant dense<0.000000e+00> : vector<16x32xf32>
    %73 = tpu.matmul %72, %53, %cst_19 {dimension_numbers = #tpu.dot_dimension_numbers<[1], [0], [0], [1], [0, 0, 1, 1], [], []>} : vector<16x32xf32>, vector<32x32xf32>, vector<16x32xf32> -> vector<16x32xf32>
    %74 = vector.broadcast %62 : vector<1x32xf32> to vector<16x32xf32>
    %75 = arith.addf %73, %74 : vector<16x32xf32>
    %76 = vector.shape_cast %75 : vector<16x32xf32> to vector<2x8x32xf32>
    %cst_20 = arith.constant dense<0.000000e+00> : vector<16x32xf32>
    %77 = tpu.matmul %72, %55, %cst_20 {dimension_numbers = #tpu.dot_dimension_numbers<[1], [0], [0], [1], [0, 0, 1, 1], [], []>} : vector<16x32xf32>, vector<32x32xf32>, vector<16x32xf32> -> vector<16x32xf32>
    %78 = vector.broadcast %63 : vector<1x32xf32> to vector<16x32xf32>
    %79 = arith.addf %77, %78 : vector<16x32xf32>
    %80 = vector.shape_cast %79 : vector<16x32xf32> to vector<2x8x32xf32>
    %cst_21 = arith.constant dense<0.000000e+00> : vector<16x32xf32>
    %81 = tpu.matmul %72, %57, %cst_21 {dimension_numbers = #tpu.dot_dimension_numbers<[1], [0], [0], [1], [0, 0, 1, 1], [], []>} : vector<16x32xf32>, vector<32x32xf32>, vector<16x32xf32> -> vector<16x32xf32>
    %82 = vector.broadcast %64 : vector<1x32xf32> to vector<16x32xf32>
    %83 = arith.addf %81, %82 : vector<16x32xf32>
    %84 = vector.shape_cast %83 : vector<16x32xf32> to vector<2x8x32xf32>
    %cst_22 = arith.constant 0.000000e+00 : f32
    %85 = vector.broadcast %cst_22 : f32 to vector<2x8x32xf32>
    %86 = vector.broadcast %28 : vector<1x1x32xf32> to vector<2x8x32xf32>
    %87 = arith.mulf %76, %86 : vector<2x8x32xf32>
    "tpu.trace_start"() <{level = 10 : i32, message = "bqd,bkd->bqk"}> : () -> ()
    %cst_23 = arith.constant dense<0.000000e+00> : vector<2x8x8xf32>
    %88 = tpu.matmul %87, %80, %cst_23 {dimension_numbers = #tpu.dot_dimension_numbers<[2], [2], [1], [1], [0, 0, 0, 1, 1, 1], [0], [0]>} : vector<2x8x32xf32>, vector<2x8x32xf32>, vector<2x8x8xf32> -> vector<2x8x8xf32>
    "tpu.trace_stop"() : () -> ()
    %cst_24 = arith.constant 0.353553385 : f32
    %89 = vector.broadcast %cst_24 : f32 to vector<2x8x8xf32>
    %90 = arith.mulf %88, %89 : vector<2x8x8xf32>
    %91 = arith.addf %90, %20 : vector<2x8x8xf32>
    %cst_25 = arith.constant dense<0xFF800000> : vector<2x8xf32>
    %92 = vector.multi_reduction <maximumf>, %91, %cst_25 [2] : vector<2x8x8xf32> to vector<2x8xf32>
    %93 = vector.shape_cast %92 : vector<2x8xf32> to vector<2x8x1xf32>
    %94 = vector.broadcast %93 : vector<2x8x1xf32> to vector<2x8x8xf32>
    %95 = arith.subf %91, %94 : vector<2x8x8xf32>
    %96 = math.exp %95 : vector<2x8x8xf32>
    %cst_26 = arith.constant dense<0.000000e+00> : vector<2x8xf32>
    %97 = vector.multi_reduction <add>, %96, %cst_26 [2] : vector<2x8x8xf32> to vector<2x8xf32>
    %98 = vector.shape_cast %97 : vector<2x8xf32> to vector<2x8x1xf32>
    %99 = tpu.reciprocal %98 {approx = true} : vector<2x8x1xf32> -> vector<2x8x1xf32>
    %100 = vector.broadcast %99 : vector<2x8x1xf32> to vector<2x8x8xf32>
    %101 = arith.mulf %96, %100 : vector<2x8x8xf32>
    %102 = vector.broadcast %28 : vector<1x1x32xf32> to vector<2x8x32xf32>
    %103 = arith.mulf %84, %102 : vector<2x8x32xf32>
    "tpu.trace_start"() <{level = 10 : i32, message = "bqk,bkd->bqd"}> : () -> ()
    %cst_27 = arith.constant dense<0.000000e+00> : vector<2x8x32xf32>
    %104 = tpu.matmul %101, %103, %cst_27 {dimension_numbers = #tpu.dot_dimension_numbers<[2], [1], [1], [2], [0, 0, 0, 1, 1, 2], [0], [0]>} : vector<2x8x8xf32>, vector<2x8x32xf32>, vector<2x8x32xf32> -> vector<2x8x32xf32>
    "tpu.trace_stop"() : () -> ()
    %105 = arith.addf %85, %104 : vector<2x8x32xf32>
    %106 = vector.broadcast %35 : vector<1x1x32xf32> to vector<2x8x32xf32>
    %107 = arith.mulf %76, %106 : vector<2x8x32xf32>
    "tpu.trace_start"() <{level = 10 : i32, message = "bqd,bkd->bqk"}> : () -> ()
    %cst_28 = arith.constant dense<0.000000e+00> : vector<2x8x8xf32>
    %108 = tpu.matmul %107, %80, %cst_28 {dimension_numbers = #tpu.dot_dimension_numbers<[2], [2], [1], [1], [0, 0, 0, 1, 1, 1], [0], [0]>} : vector<2x8x32xf32>, vector<2x8x32xf32>, vector<2x8x8xf32> -> vector<2x8x8xf32>
    "tpu.trace_stop"() : () -> ()
    %cst_29 = arith.constant 0.353553385 : f32
    %109 = vector.broadcast %cst_29 : f32 to vector<2x8x8xf32>
    %110 = arith.mulf %108, %109 : vector<2x8x8xf32>
    %111 = arith.addf %110, %20 : vector<2x8x8xf32>
    %cst_30 = arith.constant dense<0xFF800000> : vector<2x8xf32>
    %112 = vector.multi_reduction <maximumf>, %111, %cst_30 [2] : vector<2x8x8xf32> to vector<2x8xf32>
    %113 = vector.shape_cast %112 : vector<2x8xf32> to vector<2x8x1xf32>
    %114 = vector.broadcast %113 : vector<2x8x1xf32> to vector<2x8x8xf32>
    %115 = arith.subf %111, %114 : vector<2x8x8xf32>
    %116 = math.exp %115 : vector<2x8x8xf32>
    %cst_31 = arith.constant dense<0.000000e+00> : vector<2x8xf32>
    %117 = vector.multi_reduction <add>, %116, %cst_31 [2] : vector<2x8x8xf32> to vector<2x8xf32>
    %118 = vector.shape_cast %117 : vector<2x8xf32> to vector<2x8x1xf32>
    %119 = tpu.reciprocal %118 {approx = true} : vector<2x8x1xf32> -> vector<2x8x1xf32>
    %120 = vector.broadcast %119 : vector<2x8x1xf32> to vector<2x8x8xf32>
    %121 = arith.mulf %116, %120 : vector<2x8x8xf32>
    %122 = vector.broadcast %35 : vector<1x1x32xf32> to vector<2x8x32xf32>
    %123 = arith.mulf %84, %122 : vector<2x8x32xf32>
    "tpu.trace_start"() <{level = 10 : i32, message = "bqk,bkd->bqd"}> : () -> ()
    %cst_32 = arith.constant dense<0.000000e+00> : vector<2x8x32xf32>
    %124 = tpu.matmul %121, %123, %cst_32 {dimension_numbers = #tpu.dot_dimension_numbers<[2], [1], [1], [2], [0, 0, 0, 1, 1, 2], [0], [0]>} : vector<2x8x8xf32>, vector<2x8x32xf32>, vector<2x8x32xf32> -> vector<2x8x32xf32>
    "tpu.trace_stop"() : () -> ()
    %125 = arith.addf %105, %124 : vector<2x8x32xf32>
    %126 = vector.broadcast %42 : vector<1x1x32xf32> to vector<2x8x32xf32>
    %127 = arith.mulf %76, %126 : vector<2x8x32xf32>
    "tpu.trace_start"() <{level = 10 : i32, message = "bqd,bkd->bqk"}> : () -> ()
    %cst_33 = arith.constant dense<0.000000e+00> : vector<2x8x8xf32>
    %128 = tpu.matmul %127, %80, %cst_33 {dimension_numbers = #tpu.dot_dimension_numbers<[2], [2], [1], [1], [0, 0, 0, 1, 1, 1], [0], [0]>} : vector<2x8x32xf32>, vector<2x8x32xf32>, vector<2x8x8xf32> -> vector<2x8x8xf32>
    "tpu.trace_stop"() : () -> ()
    %cst_34 = arith.constant 0.353553385 : f32
    %129 = vector.broadcast %cst_34 : f32 to vector<2x8x8xf32>
    %130 = arith.mulf %128, %129 : vector<2x8x8xf32>
    %131 = arith.addf %130, %20 : vector<2x8x8xf32>
    %cst_35 = arith.constant dense<0xFF800000> : vector<2x8xf32>
    %132 = vector.multi_reduction <maximumf>, %131, %cst_35 [2] : vector<2x8x8xf32> to vector<2x8xf32>
    %133 = vector.shape_cast %132 : vector<2x8xf32> to vector<2x8x1xf32>
    %134 = vector.broadcast %133 : vector<2x8x1xf32> to vector<2x8x8xf32>
    %135 = arith.subf %131, %134 : vector<2x8x8xf32>
    %136 = math.exp %135 : vector<2x8x8xf32>
    %cst_36 = arith.constant dense<0.000000e+00> : vector<2x8xf32>
    %137 = vector.multi_reduction <add>, %136, %cst_36 [2] : vector<2x8x8xf32> to vector<2x8xf32>
    %138 = vector.shape_cast %137 : vector<2x8xf32> to vector<2x8x1xf32>
    %139 = tpu.reciprocal %138 {approx = true} : vector<2x8x1xf32> -> vector<2x8x1xf32>
    %140 = vector.broadcast %139 : vector<2x8x1xf32> to vector<2x8x8xf32>
    %141 = arith.mulf %136, %140 : vector<2x8x8xf32>
    %142 = vector.broadcast %42 : vector<1x1x32xf32> to vector<2x8x32xf32>
    %143 = arith.mulf %84, %142 : vector<2x8x32xf32>
    "tpu.trace_start"() <{level = 10 : i32, message = "bqk,bkd->bqd"}> : () -> ()
    %cst_37 = arith.constant dense<0.000000e+00> : vector<2x8x32xf32>
    %144 = tpu.matmul %141, %143, %cst_37 {dimension_numbers = #tpu.dot_dimension_numbers<[2], [1], [1], [2], [0, 0, 0, 1, 1, 2], [0], [0]>} : vector<2x8x8xf32>, vector<2x8x32xf32>, vector<2x8x32xf32> -> vector<2x8x32xf32>
    "tpu.trace_stop"() : () -> ()
    %145 = arith.addf %125, %144 : vector<2x8x32xf32>
    %146 = vector.broadcast %49 : vector<1x1x32xf32> to vector<2x8x32xf32>
    %147 = arith.mulf %76, %146 : vector<2x8x32xf32>
    "tpu.trace_start"() <{level = 10 : i32, message = "bqd,bkd->bqk"}> : () -> ()
    %cst_38 = arith.constant dense<0.000000e+00> : vector<2x8x8xf32>
    %148 = tpu.matmul %147, %80, %cst_38 {dimension_numbers = #tpu.dot_dimension_numbers<[2], [2], [1], [1], [0, 0, 0, 1, 1, 1], [0], [0]>} : vector<2x8x32xf32>, vector<2x8x32xf32>, vector<2x8x8xf32> -> vector<2x8x8xf32>
    "tpu.trace_stop"() : () -> ()
    %cst_39 = arith.constant 0.353553385 : f32
    %149 = vector.broadcast %cst_39 : f32 to vector<2x8x8xf32>
    %150 = arith.mulf %148, %149 : vector<2x8x8xf32>
    %151 = arith.addf %150, %20 : vector<2x8x8xf32>
    %cst_40 = arith.constant dense<0xFF800000> : vector<2x8xf32>
    %152 = vector.multi_reduction <maximumf>, %151, %cst_40 [2] : vector<2x8x8xf32> to vector<2x8xf32>
    %153 = vector.shape_cast %152 : vector<2x8xf32> to vector<2x8x1xf32>
    %154 = vector.broadcast %153 : vector<2x8x1xf32> to vector<2x8x8xf32>
    %155 = arith.subf %151, %154 : vector<2x8x8xf32>
    %156 = math.exp %155 : vector<2x8x8xf32>
    %cst_41 = arith.constant dense<0.000000e+00> : vector<2x8xf32>
    %157 = vector.multi_reduction <add>, %156, %cst_41 [2] : vector<2x8x8xf32> to vector<2x8xf32>
    %158 = vector.shape_cast %157 : vector<2x8xf32> to vector<2x8x1xf32>
    %159 = tpu.reciprocal %158 {approx = true} : vector<2x8x1xf32> -> vector<2x8x1xf32>
    %160 = vector.broadcast %159 : vector<2x8x1xf32> to vector<2x8x8xf32>
    %161 = arith.mulf %156, %160 : vector<2x8x8xf32>
    %162 = vector.broadcast %49 : vector<1x1x32xf32> to vector<2x8x32xf32>
    %163 = arith.mulf %84, %162 : vector<2x8x32xf32>
    "tpu.trace_start"() <{level = 10 : i32, message = "bqk,bkd->bqd"}> : () -> ()
    %cst_42 = arith.constant dense<0.000000e+00> : vector<2x8x32xf32>
    %164 = tpu.matmul %161, %163, %cst_42 {dimension_numbers = #tpu.dot_dimension_numbers<[2], [1], [1], [2], [0, 0, 0, 1, 1, 2], [0], [0]>} : vector<2x8x8xf32>, vector<2x8x32xf32>, vector<2x8x32xf32> -> vector<2x8x32xf32>
    "tpu.trace_stop"() : () -> ()
    %165 = arith.addf %145, %164 : vector<2x8x32xf32>
    %166 = vector.shape_cast %165 : vector<2x8x32xf32> to vector<16x32xf32>
    %cst_43 = arith.constant dense<0.000000e+00> : vector<16x32xf32>
    %167 = tpu.matmul %166, %59, %cst_43 {dimension_numbers = #tpu.dot_dimension_numbers<[1], [0], [0], [1], [0, 0, 1, 1], [], []>} : vector<16x32xf32>, vector<32x32xf32>, vector<16x32xf32> -> vector<16x32xf32>
    %168 = vector.broadcast %65 : vector<1x32xf32> to vector<16x32xf32>
    %169 = arith.addf %167, %168 : vector<16x32xf32>
    %170 = vector.shape_cast %169 : vector<16x32xf32> to vector<2x8x32xf32>
    %171 = arith.addf %13, %170 : vector<2x8x32xf32>
    %cst_44 = arith.constant dense<0.000000e+00> : vector<2x8xf32>
    %172 = vector.multi_reduction <add>, %171, %cst_44 [2] : vector<2x8x32xf32> to vector<2x8xf32>
    %173 = vector.shape_cast %172 : vector<2x8xf32> to vector<2x8x1xf32>
    %cst_45 = arith.constant 3.200000e+01 : f32
    %174 = vector.broadcast %cst_45 : f32 to vector<2x8x1xf32>
    %175 = arith.divf %173, %174 : vector<2x8x1xf32>
    %176 = vector.broadcast %175 : vector<2x8x1xf32> to vector<2x8x32xf32>
    %177 = arith.subf %171, %176 : vector<2x8x32xf32>
    %178 = arith.mulf %177, %177 : vector<2x8x32xf32>
    %cst_46 = arith.constant dense<0.000000e+00> : vector<2x8xf32>
    %179 = vector.multi_reduction <add>, %178, %cst_46 [2] : vector<2x8x32xf32> to vector<2x8xf32>
    %180 = vector.shape_cast %179 : vector<2x8xf32> to vector<2x8x1xf32>
    %cst_47 = arith.constant 3.200000e+01 : f32
    %181 = vector.broadcast %cst_47 : f32 to vector<2x8x1xf32>
    %182 = arith.divf %180, %181 : vector<2x8x1xf32>
    %183 = vector.broadcast %175 : vector<2x8x1xf32> to vector<2x8x32xf32>
    %184 = arith.subf %171, %183 : vector<2x8x32xf32>
    %cst_48 = arith.constant 9.99999974E-6 : f32
    %185 = vector.broadcast %cst_48 : f32 to vector<2x8x1xf32>
    %186 = arith.addf %182, %185 : vector<2x8x1xf32>
    %187 = math.rsqrt %186 : vector<2x8x1xf32>
    %188 = vector.broadcast %187 : vector<2x8x1xf32> to vector<2x8x32xf32>
    %189 = arith.mulf %184, %188 : vector<2x8x32xf32>
    %190 = vector.shape_cast %66 : vector<1x32xf32> to vector<1x1x32xf32>
    %191 = vector.broadcast %190 : vector<1x1x32xf32> to vector<2x8x32xf32>
    %192 = arith.mulf %189, %191 : vector<2x8x32xf32>
    %193 = vector.shape_cast %67 : vector<1x32xf32> to vector<1x1x32xf32>
    %194 = vector.broadcast %193 : vector<1x1x32xf32> to vector<2x8x32xf32>
    %195 = arith.addf %192, %194 : vector<2x8x32xf32>
    %196 = vector.shape_cast %195 : vector<2x8x32xf32> to vector<16x32xf32>
    %c0_49 = arith.constant 0 : index
    %c0_50 = arith.constant 0 : index
    %c0_51 = arith.constant 0 : index
    %197 = vector.load %arg5[%c0_49, %c0_50, %c0_51] : memref<2x32x64xf32, #tpu.memory_space<vmem>>, vector<1x32x64xf32>
    %198 = vector.shape_cast %197 : vector<1x32x64xf32> to vector<32x64xf32>
    %cst_52 = arith.constant dense<0.000000e+00> : vector<16x64xf32>
    %199 = tpu.matmul %196, %198, %cst_52 {dimension_numbers = #tpu.dot_dimension_numbers<[1], [0], [0], [1], [0, 0, 1, 1], [], []>} : vector<16x32xf32>, vector<32x64xf32>, vector<16x64xf32> -> vector<16x64xf32>
    %200 = vector.broadcast %68 : vector<1x64xf32> to vector<16x64xf32>
    %201 = arith.addf %199, %200 : vector<16x64xf32>
    %cst_53 = arith.constant 5.000000e-01 : f32
    %202 = vector.broadcast %cst_53 : f32 to vector<16x64xf32>
    %203 = arith.mulf %202, %201 : vector<16x64xf32>
    %cst_54 = arith.constant 4.471500e-02 : f32
    %204 = vector.broadcast %cst_54 : f32 to vector<16x64xf32>
    %205 = arith.mulf %204, %201 : vector<16x64xf32>
    %206 = arith.mulf %205, %201 : vector<16x64xf32>
    %207 = arith.mulf %206, %201 : vector<16x64xf32>
    %208 = arith.addf %201, %207 : vector<16x64xf32>
    %cst_55 = arith.constant 0.797884583 : f32
    %209 = vector.broadcast %cst_55 : f32 to vector<16x64xf32>
    %210 = arith.mulf %209, %208 : vector<16x64xf32>
    %211 = math.tanh %210 : vector<16x64xf32>
    %cst_56 = arith.constant 1.000000e+00 : f32
    %212 = vector.broadcast %cst_56 : f32 to vector<16x64xf32>
    %213 = arith.addf %212, %211 : vector<16x64xf32>
    %214 = arith.mulf %203, %213 : vector<16x64xf32>
    %c0_57 = arith.constant 0 : index
    %c0_58 = arith.constant 0 : index
    %c0_59 = arith.constant 0 : index
    %215 = vector.load %arg6[%c0_57, %c0_58, %c0_59] : memref<2x64x32xf32, #tpu.memory_space<vmem>>, vector<1x64x32xf32>
    %216 = vector.shape_cast %215 : vector<1x64x32xf32> to vector<64x32xf32>
    %cst_60 = arith.constant dense<0.000000e+00> : vector<16x32xf32>
    %217 = tpu.matmul %214, %216, %cst_60 {dimension_numbers = #tpu.dot_dimension_numbers<[1], [0], [0], [1], [0, 0, 1, 1], [], []>} : vector<16x64xf32>, vector<64x32xf32>, vector<16x32xf32> -> vector<16x32xf32>
    %218 = vector.broadcast %69 : vector<1x32xf32> to vector<16x32xf32>
    %219 = arith.addf %217, %218 : vector<16x32xf32>
    %220 = vector.shape_cast %219 : vector<16x32xf32> to vector<2x8x32xf32>
    %221 = arith.addf %195, %220 : vector<2x8x32xf32>
    %cst_61 = arith.constant dense<0.000000e+00> : vector<2x8xf32>
    %222 = vector.multi_reduction <add>, %221, %cst_61 [2] : vector<2x8x32xf32> to vector<2x8xf32>
    %223 = vector.shape_cast %222 : vector<2x8xf32> to vector<2x8x1xf32>
    %cst_62 = arith.constant 3.200000e+01 : f32
    %224 = vector.broadcast %cst_62 : f32 to vector<2x8x1xf32>
    %225 = arith.divf %223, %224 : vector<2x8x1xf32>
    %226 = vector.broadcast %225 : vector<2x8x1xf32> to vector<2x8x32xf32>
    %227 = arith.subf %221, %226 : vector<2x8x32xf32>
    %228 = arith.mulf %227, %227 : vector<2x8x32xf32>
    %cst_63 = arith.constant dense<0.000000e+00> : vector<2x8xf32>
    %229 = vector.multi_reduction <add>, %228, %cst_63 [2] : vector<2x8x32xf32> to vector<2x8xf32>
    %230 = vector.shape_cast %229 : vector<2x8xf32> to vector<2x8x1xf32>
    %cst_64 = arith.constant 3.200000e+01 : f32
    %231 = vector.broadcast %cst_64 : f32 to vector<2x8x1xf32>
    %232 = arith.divf %230, %231 : vector<2x8x1xf32>
    %233 = vector.broadcast %225 : vector<2x8x1xf32> to vector<2x8x32xf32>
    %234 = arith.subf %221, %233 : vector<2x8x32xf32>
    %cst_65 = arith.constant 9.99999974E-6 : f32
    %235 = vector.broadcast %cst_65 : f32 to vector<2x8x1xf32>
    %236 = arith.addf %232, %235 : vector<2x8x1xf32>
    %237 = math.rsqrt %236 : vector<2x8x1xf32>
    %238 = vector.broadcast %237 : vector<2x8x1xf32> to vector<2x8x32xf32>
    %239 = arith.mulf %234, %238 : vector<2x8x32xf32>
    %240 = vector.shape_cast %70 : vector<1x32xf32> to vector<1x1x32xf32>
    %241 = vector.broadcast %240 : vector<1x1x32xf32> to vector<2x8x32xf32>
    %242 = arith.mulf %239, %241 : vector<2x8x32xf32>
    %243 = vector.shape_cast %71 : vector<1x32xf32> to vector<1x1x32xf32>
    %244 = vector.broadcast %243 : vector<1x1x32xf32> to vector<2x8x32xf32>
    %245 = arith.addf %242, %244 : vector<2x8x32xf32>
    %c1 = arith.constant 1 : index
    %c0_66 = arith.constant 0 : index
    %c0_67 = arith.constant 0 : index
    %c0_68 = arith.constant 0 : index
    %246 = vector.load %arg4[%c1, %c0_66, %c0_67, %c0_68] : memref<2x4x32x32xf32, #tpu.memory_space<vmem>>, vector<1x4x32x32xf32>
    %247 = vector.shape_cast %246 : vector<1x4x32x32xf32> to vector<4x32x32xf32>
    %248 = vector.extract_strided_slice %247 {offsets = [0, 0, 0], sizes = [1, 32, 32], strides = [1, 1, 1]} : vector<4x32x32xf32> to vector<1x32x32xf32>
    %249 = vector.shape_cast %248 : vector<1x32x32xf32> to vector<32x32xf32>
    %250 = vector.extract_strided_slice %247 {offsets = [1, 0, 0], sizes = [1, 32, 32], strides = [1, 1, 1]} : vector<4x32x32xf32> to vector<1x32x32xf32>
    %251 = vector.shape_cast %250 : vector<1x32x32xf32> to vector<32x32xf32>
    %252 = vector.extract_strided_slice %247 {offsets = [2, 0, 0], sizes = [1, 32, 32], strides = [1, 1, 1]} : vector<4x32x32xf32> to vector<1x32x32xf32>
    %253 = vector.shape_cast %252 : vector<1x32x32xf32> to vector<32x32xf32>
    %254 = vector.extract_strided_slice %247 {offsets = [3, 0, 0], sizes = [1, 32, 32], strides = [1, 1, 1]} : vector<4x32x32xf32> to vector<1x32x32xf32>
    %255 = vector.shape_cast %254 : vector<1x32x32xf32> to vector<32x32xf32>
    %c1_69 = arith.constant 1 : index
    %c0_70 = arith.constant 0 : index
    %c0_71 = arith.constant 0 : index
    %256 = vector.load %arg7[%c1_69, %c0_70, %c0_71] : memref<2x10x128xf32, #tpu.memory_space<vmem>>, vector<1x10x128xf32>
    %257 = vector.shape_cast %256 : vector<1x10x128xf32> to vector<10x128xf32>
    %258 = vector.extract_strided_slice %257 {offsets = [0, 0], sizes = [1, 32], strides = [1, 1]} : vector<10x128xf32> to vector<1x32xf32>
    %259 = vector.extract_strided_slice %257 {offsets = [1, 0], sizes = [1, 32], strides = [1, 1]} : vector<10x128xf32> to vector<1x32xf32>
    %260 = vector.extract_strided_slice %257 {offsets = [2, 0], sizes = [1, 32], strides = [1, 1]} : vector<10x128xf32> to vector<1x32xf32>
    %261 = vector.extract_strided_slice %257 {offsets = [3, 0], sizes = [1, 32], strides = [1, 1]} : vector<10x128xf32> to vector<1x32xf32>
    %262 = vector.extract_strided_slice %257 {offsets = [4, 0], sizes = [1, 32], strides = [1, 1]} : vector<10x128xf32> to vector<1x32xf32>
    %263 = vector.extract_strided_slice %257 {offsets = [5, 0], sizes = [1, 32], strides = [1, 1]} : vector<10x128xf32> to vector<1x32xf32>
    %264 = vector.extract_strided_slice %257 {offsets = [6, 0], sizes = [1, 64], strides = [1, 1]} : vector<10x128xf32> to vector<1x64xf32>
    %265 = vector.extract_strided_slice %257 {offsets = [7, 0], sizes = [1, 32], strides = [1, 1]} : vector<10x128xf32> to vector<1x32xf32>
    %266 = vector.extract_strided_slice %257 {offsets = [8, 0], sizes = [1, 32], strides = [1, 1]} : vector<10x128xf32> to vector<1x32xf32>
    %267 = vector.extract_strided_slice %257 {offsets = [9, 0], sizes = [1, 32], strides = [1, 1]} : vector<10x128xf32> to vector<1x32xf32>
    %268 = vector.shape_cast %245 : vector<2x8x32xf32> to vector<16x32xf32>
    %cst_72 = arith.constant dense<0.000000e+00> : vector<16x32xf32>
    %269 = tpu.matmul %268, %249, %cst_72 {dimension_numbers = #tpu.dot_dimension_numbers<[1], [0], [0], [1], [0, 0, 1, 1], [], []>} : vector<16x32xf32>, vector<32x32xf32>, vector<16x32xf32> -> vector<16x32xf32>
    %270 = vector.broadcast %258 : vector<1x32xf32> to vector<16x32xf32>
    %271 = arith.addf %269, %270 : vector<16x32xf32>
    %272 = vector.shape_cast %271 : vector<16x32xf32> to vector<2x8x32xf32>
    %cst_73 = arith.constant dense<0.000000e+00> : vector<16x32xf32>
    %273 = tpu.matmul %268, %251, %cst_73 {dimension_numbers = #tpu.dot_dimension_numbers<[1], [0], [0], [1], [0, 0, 1, 1], [], []>} : vector<16x32xf32>, vector<32x32xf32>, vector<16x32xf32> -> vector<16x32xf32>
    %274 = vector.broadcast %259 : vector<1x32xf32> to vector<16x32xf32>
    %275 = arith.addf %273, %274 : vector<16x32xf32>
    %276 = vector.shape_cast %275 : vector<16x32xf32> to vector<2x8x32xf32>
    %cst_74 = arith.constant dense<0.000000e+00> : vector<16x32xf32>
    %277 = tpu.matmul %268, %253, %cst_74 {dimension_numbers = #tpu.dot_dimension_numbers<[1], [0], [0], [1], [0, 0, 1, 1], [], []>} : vector<16x32xf32>, vector<32x32xf32>, vector<16x32xf32> -> vector<16x32xf32>
    %278 = vector.broadcast %260 : vector<1x32xf32> to vector<16x32xf32>
    %279 = arith.addf %277, %278 : vector<16x32xf32>
    %280 = vector.shape_cast %279 : vector<16x32xf32> to vector<2x8x32xf32>
    %cst_75 = arith.constant 0.000000e+00 : f32
    %281 = vector.broadcast %cst_75 : f32 to vector<2x8x32xf32>
    %282 = vector.broadcast %28 : vector<1x1x32xf32> to vector<2x8x32xf32>
    %283 = arith.mulf %272, %282 : vector<2x8x32xf32>
    "tpu.trace_start"() <{level = 10 : i32, message = "bqd,bkd->bqk"}> : () -> ()
    %cst_76 = arith.constant dense<0.000000e+00> : vector<2x8x8xf32>
    %284 = tpu.matmul %283, %276, %cst_76 {dimension_numbers = #tpu.dot_dimension_numbers<[2], [2], [1], [1], [0, 0, 0, 1, 1, 1], [0], [0]>} : vector<2x8x32xf32>, vector<2x8x32xf32>, vector<2x8x8xf32> -> vector<2x8x8xf32>
    "tpu.trace_stop"() : () -> ()
    %cst_77 = arith.constant 0.353553385 : f32
    %285 = vector.broadcast %cst_77 : f32 to vector<2x8x8xf32>
    %286 = arith.mulf %284, %285 : vector<2x8x8xf32>
    %287 = arith.addf %286, %20 : vector<2x8x8xf32>
    %cst_78 = arith.constant dense<0xFF800000> : vector<2x8xf32>
    %288 = vector.multi_reduction <maximumf>, %287, %cst_78 [2] : vector<2x8x8xf32> to vector<2x8xf32>
    %289 = vector.shape_cast %288 : vector<2x8xf32> to vector<2x8x1xf32>
    %290 = vector.broadcast %289 : vector<2x8x1xf32> to vector<2x8x8xf32>
    %291 = arith.subf %287, %290 : vector<2x8x8xf32>
    %292 = math.exp %291 : vector<2x8x8xf32>
    %cst_79 = arith.constant dense<0.000000e+00> : vector<2x8xf32>
    %293 = vector.multi_reduction <add>, %292, %cst_79 [2] : vector<2x8x8xf32> to vector<2x8xf32>
    %294 = vector.shape_cast %293 : vector<2x8xf32> to vector<2x8x1xf32>
    %295 = tpu.reciprocal %294 {approx = true} : vector<2x8x1xf32> -> vector<2x8x1xf32>
    %296 = vector.broadcast %295 : vector<2x8x1xf32> to vector<2x8x8xf32>
    %297 = arith.mulf %292, %296 : vector<2x8x8xf32>
    %298 = vector.broadcast %28 : vector<1x1x32xf32> to vector<2x8x32xf32>
    %299 = arith.mulf %280, %298 : vector<2x8x32xf32>
    "tpu.trace_start"() <{level = 10 : i32, message = "bqk,bkd->bqd"}> : () -> ()
    %cst_80 = arith.constant dense<0.000000e+00> : vector<2x8x32xf32>
    %300 = tpu.matmul %297, %299, %cst_80 {dimension_numbers = #tpu.dot_dimension_numbers<[2], [1], [1], [2], [0, 0, 0, 1, 1, 2], [0], [0]>} : vector<2x8x8xf32>, vector<2x8x32xf32>, vector<2x8x32xf32> -> vector<2x8x32xf32>
    "tpu.trace_stop"() : () -> ()
    %301 = arith.addf %281, %300 : vector<2x8x32xf32>
    %302 = vector.broadcast %35 : vector<1x1x32xf32> to vector<2x8x32xf32>
    %303 = arith.mulf %272, %302 : vector<2x8x32xf32>
    "tpu.trace_start"() <{level = 10 : i32, message = "bqd,bkd->bqk"}> : () -> ()
    %cst_81 = arith.constant dense<0.000000e+00> : vector<2x8x8xf32>
    %304 = tpu.matmul %303, %276, %cst_81 {dimension_numbers = #tpu.dot_dimension_numbers<[2], [2], [1], [1], [0, 0, 0, 1, 1, 1], [0], [0]>} : vector<2x8x32xf32>, vector<2x8x32xf32>, vector<2x8x8xf32> -> vector<2x8x8xf32>
    "tpu.trace_stop"() : () -> ()
    %cst_82 = arith.constant 0.353553385 : f32
    %305 = vector.broadcast %cst_82 : f32 to vector<2x8x8xf32>
    %306 = arith.mulf %304, %305 : vector<2x8x8xf32>
    %307 = arith.addf %306, %20 : vector<2x8x8xf32>
    %cst_83 = arith.constant dense<0xFF800000> : vector<2x8xf32>
    %308 = vector.multi_reduction <maximumf>, %307, %cst_83 [2] : vector<2x8x8xf32> to vector<2x8xf32>
    %309 = vector.shape_cast %308 : vector<2x8xf32> to vector<2x8x1xf32>
    %310 = vector.broadcast %309 : vector<2x8x1xf32> to vector<2x8x8xf32>
    %311 = arith.subf %307, %310 : vector<2x8x8xf32>
    %312 = math.exp %311 : vector<2x8x8xf32>
    %cst_84 = arith.constant dense<0.000000e+00> : vector<2x8xf32>
    %313 = vector.multi_reduction <add>, %312, %cst_84 [2] : vector<2x8x8xf32> to vector<2x8xf32>
    %314 = vector.shape_cast %313 : vector<2x8xf32> to vector<2x8x1xf32>
    %315 = tpu.reciprocal %314 {approx = true} : vector<2x8x1xf32> -> vector<2x8x1xf32>
    %316 = vector.broadcast %315 : vector<2x8x1xf32> to vector<2x8x8xf32>
    %317 = arith.mulf %312, %316 : vector<2x8x8xf32>
    %318 = vector.broadcast %35 : vector<1x1x32xf32> to vector<2x8x32xf32>
    %319 = arith.mulf %280, %318 : vector<2x8x32xf32>
    "tpu.trace_start"() <{level = 10 : i32, message = "bqk,bkd->bqd"}> : () -> ()
    %cst_85 = arith.constant dense<0.000000e+00> : vector<2x8x32xf32>
    %320 = tpu.matmul %317, %319, %cst_85 {dimension_numbers = #tpu.dot_dimension_numbers<[2], [1], [1], [2], [0, 0, 0, 1, 1, 2], [0], [0]>} : vector<2x8x8xf32>, vector<2x8x32xf32>, vector<2x8x32xf32> -> vector<2x8x32xf32>
    "tpu.trace_stop"() : () -> ()
    %321 = arith.addf %301, %320 : vector<2x8x32xf32>
    %322 = vector.broadcast %42 : vector<1x1x32xf32> to vector<2x8x32xf32>
    %323 = arith.mulf %272, %322 : vector<2x8x32xf32>
    "tpu.trace_start"() <{level = 10 : i32, message = "bqd,bkd->bqk"}> : () -> ()
    %cst_86 = arith.constant dense<0.000000e+00> : vector<2x8x8xf32>
    %324 = tpu.matmul %323, %276, %cst_86 {dimension_numbers = #tpu.dot_dimension_numbers<[2], [2], [1], [1], [0, 0, 0, 1, 1, 1], [0], [0]>} : vector<2x8x32xf32>, vector<2x8x32xf32>, vector<2x8x8xf32> -> vector<2x8x8xf32>
    "tpu.trace_stop"() : () -> ()
    %cst_87 = arith.constant 0.353553385 : f32
    %325 = vector.broadcast %cst_87 : f32 to vector<2x8x8xf32>
    %326 = arith.mulf %324, %325 : vector<2x8x8xf32>
    %327 = arith.addf %326, %20 : vector<2x8x8xf32>
    %cst_88 = arith.constant dense<0xFF800000> : vector<2x8xf32>
    %328 = vector.multi_reduction <maximumf>, %327, %cst_88 [2] : vector<2x8x8xf32> to vector<2x8xf32>
    %329 = vector.shape_cast %328 : vector<2x8xf32> to vector<2x8x1xf32>
    %330 = vector.broadcast %329 : vector<2x8x1xf32> to vector<2x8x8xf32>
    %331 = arith.subf %327, %330 : vector<2x8x8xf32>
    %332 = math.exp %331 : vector<2x8x8xf32>
    %cst_89 = arith.constant dense<0.000000e+00> : vector<2x8xf32>
    %333 = vector.multi_reduction <add>, %332, %cst_89 [2] : vector<2x8x8xf32> to vector<2x8xf32>
    %334 = vector.shape_cast %333 : vector<2x8xf32> to vector<2x8x1xf32>
    %335 = tpu.reciprocal %334 {approx = true} : vector<2x8x1xf32> -> vector<2x8x1xf32>
    %336 = vector.broadcast %335 : vector<2x8x1xf32> to vector<2x8x8xf32>
    %337 = arith.mulf %332, %336 : vector<2x8x8xf32>
    %338 = vector.broadcast %42 : vector<1x1x32xf32> to vector<2x8x32xf32>
    %339 = arith.mulf %280, %338 : vector<2x8x32xf32>
    "tpu.trace_start"() <{level = 10 : i32, message = "bqk,bkd->bqd"}> : () -> ()
    %cst_90 = arith.constant dense<0.000000e+00> : vector<2x8x32xf32>
    %340 = tpu.matmul %337, %339, %cst_90 {dimension_numbers = #tpu.dot_dimension_numbers<[2], [1], [1], [2], [0, 0, 0, 1, 1, 2], [0], [0]>} : vector<2x8x8xf32>, vector<2x8x32xf32>, vector<2x8x32xf32> -> vector<2x8x32xf32>
    "tpu.trace_stop"() : () -> ()
    %341 = arith.addf %321, %340 : vector<2x8x32xf32>
    %342 = vector.broadcast %49 : vector<1x1x32xf32> to vector<2x8x32xf32>
    %343 = arith.mulf %272, %342 : vector<2x8x32xf32>
    "tpu.trace_start"() <{level = 10 : i32, message = "bqd,bkd->bqk"}> : () -> ()
    %cst_91 = arith.constant dense<0.000000e+00> : vector<2x8x8xf32>
    %344 = tpu.matmul %343, %276, %cst_91 {dimension_numbers = #tpu.dot_dimension_numbers<[2], [2], [1], [1], [0, 0, 0, 1, 1, 1], [0], [0]>} : vector<2x8x32xf32>, vector<2x8x32xf32>, vector<2x8x8xf32> -> vector<2x8x8xf32>
    "tpu.trace_stop"() : () -> ()
    %cst_92 = arith.constant 0.353553385 : f32
    %345 = vector.broadcast %cst_92 : f32 to vector<2x8x8xf32>
    %346 = arith.mulf %344, %345 : vector<2x8x8xf32>
    %347 = arith.addf %346, %20 : vector<2x8x8xf32>
    %cst_93 = arith.constant dense<0xFF800000> : vector<2x8xf32>
    %348 = vector.multi_reduction <maximumf>, %347, %cst_93 [2] : vector<2x8x8xf32> to vector<2x8xf32>
    %349 = vector.shape_cast %348 : vector<2x8xf32> to vector<2x8x1xf32>
    %350 = vector.broadcast %349 : vector<2x8x1xf32> to vector<2x8x8xf32>
    %351 = arith.subf %347, %350 : vector<2x8x8xf32>
    %352 = math.exp %351 : vector<2x8x8xf32>
    %cst_94 = arith.constant dense<0.000000e+00> : vector<2x8xf32>
    %353 = vector.multi_reduction <add>, %352, %cst_94 [2] : vector<2x8x8xf32> to vector<2x8xf32>
    %354 = vector.shape_cast %353 : vector<2x8xf32> to vector<2x8x1xf32>
    %355 = tpu.reciprocal %354 {approx = true} : vector<2x8x1xf32> -> vector<2x8x1xf32>
    %356 = vector.broadcast %355 : vector<2x8x1xf32> to vector<2x8x8xf32>
    %357 = arith.mulf %352, %356 : vector<2x8x8xf32>
    %358 = vector.broadcast %49 : vector<1x1x32xf32> to vector<2x8x32xf32>
    %359 = arith.mulf %280, %358 : vector<2x8x32xf32>
    "tpu.trace_start"() <{level = 10 : i32, message = "bqk,bkd->bqd"}> : () -> ()
    %cst_95 = arith.constant dense<0.000000e+00> : vector<2x8x32xf32>
    %360 = tpu.matmul %357, %359, %cst_95 {dimension_numbers = #tpu.dot_dimension_numbers<[2], [1], [1], [2], [0, 0, 0, 1, 1, 2], [0], [0]>} : vector<2x8x8xf32>, vector<2x8x32xf32>, vector<2x8x32xf32> -> vector<2x8x32xf32>
    "tpu.trace_stop"() : () -> ()
    %361 = arith.addf %341, %360 : vector<2x8x32xf32>
    %362 = vector.shape_cast %361 : vector<2x8x32xf32> to vector<16x32xf32>
    %cst_96 = arith.constant dense<0.000000e+00> : vector<16x32xf32>
    %363 = tpu.matmul %362, %255, %cst_96 {dimension_numbers = #tpu.dot_dimension_numbers<[1], [0], [0], [1], [0, 0, 1, 1], [], []>} : vector<16x32xf32>, vector<32x32xf32>, vector<16x32xf32> -> vector<16x32xf32>
    %364 = vector.broadcast %261 : vector<1x32xf32> to vector<16x32xf32>
    %365 = arith.addf %363, %364 : vector<16x32xf32>
    %366 = vector.shape_cast %365 : vector<16x32xf32> to vector<2x8x32xf32>
    %367 = arith.addf %245, %366 : vector<2x8x32xf32>
    %cst_97 = arith.constant dense<0.000000e+00> : vector<2x8xf32>
    %368 = vector.multi_reduction <add>, %367, %cst_97 [2] : vector<2x8x32xf32> to vector<2x8xf32>
    %369 = vector.shape_cast %368 : vector<2x8xf32> to vector<2x8x1xf32>
    %cst_98 = arith.constant 3.200000e+01 : f32
    %370 = vector.broadcast %cst_98 : f32 to vector<2x8x1xf32>
    %371 = arith.divf %369, %370 : vector<2x8x1xf32>
    %372 = vector.broadcast %371 : vector<2x8x1xf32> to vector<2x8x32xf32>
    %373 = arith.subf %367, %372 : vector<2x8x32xf32>
    %374 = arith.mulf %373, %373 : vector<2x8x32xf32>
    %cst_99 = arith.constant dense<0.000000e+00> : vector<2x8xf32>
    %375 = vector.multi_reduction <add>, %374, %cst_99 [2] : vector<2x8x32xf32> to vector<2x8xf32>
    %376 = vector.shape_cast %375 : vector<2x8xf32> to vector<2x8x1xf32>
    %cst_100 = arith.constant 3.200000e+01 : f32
    %377 = vector.broadcast %cst_100 : f32 to vector<2x8x1xf32>
    %378 = arith.divf %376, %377 : vector<2x8x1xf32>
    %379 = vector.broadcast %371 : vector<2x8x1xf32> to vector<2x8x32xf32>
    %380 = arith.subf %367, %379 : vector<2x8x32xf32>
    %cst_101 = arith.constant 9.99999974E-6 : f32
    %381 = vector.broadcast %cst_101 : f32 to vector<2x8x1xf32>
    %382 = arith.addf %378, %381 : vector<2x8x1xf32>
    %383 = math.rsqrt %382 : vector<2x8x1xf32>
    %384 = vector.broadcast %383 : vector<2x8x1xf32> to vector<2x8x32xf32>
    %385 = arith.mulf %380, %384 : vector<2x8x32xf32>
    %386 = vector.shape_cast %262 : vector<1x32xf32> to vector<1x1x32xf32>
    %387 = vector.broadcast %386 : vector<1x1x32xf32> to vector<2x8x32xf32>
    %388 = arith.mulf %385, %387 : vector<2x8x32xf32>
    %389 = vector.shape_cast %263 : vector<1x32xf32> to vector<1x1x32xf32>
    %390 = vector.broadcast %389 : vector<1x1x32xf32> to vector<2x8x32xf32>
    %391 = arith.addf %388, %390 : vector<2x8x32xf32>
    %392 = vector.shape_cast %391 : vector<2x8x32xf32> to vector<16x32xf32>
    %c1_102 = arith.constant 1 : index
    %c0_103 = arith.constant 0 : index
    %c0_104 = arith.constant 0 : index
    %393 = vector.load %arg5[%c1_102, %c0_103, %c0_104] : memref<2x32x64xf32, #tpu.memory_space<vmem>>, vector<1x32x64xf32>
    %394 = vector.shape_cast %393 : vector<1x32x64xf32> to vector<32x64xf32>
    %cst_105 = arith.constant dense<0.000000e+00> : vector<16x64xf32>
    %395 = tpu.matmul %392, %394, %cst_105 {dimension_numbers = #tpu.dot_dimension_numbers<[1], [0], [0], [1], [0, 0, 1, 1], [], []>} : vector<16x32xf32>, vector<32x64xf32>, vector<16x64xf32> -> vector<16x64xf32>
    %396 = vector.broadcast %264 : vector<1x64xf32> to vector<16x64xf32>
    %397 = arith.addf %395, %396 : vector<16x64xf32>
    %cst_106 = arith.constant 5.000000e-01 : f32
    %398 = vector.broadcast %cst_106 : f32 to vector<16x64xf32>
    %399 = arith.mulf %398, %397 : vector<16x64xf32>
    %cst_107 = arith.constant 4.471500e-02 : f32
    %400 = vector.broadcast %cst_107 : f32 to vector<16x64xf32>
    %401 = arith.mulf %400, %397 : vector<16x64xf32>
    %402 = arith.mulf %401, %397 : vector<16x64xf32>
    %403 = arith.mulf %402, %397 : vector<16x64xf32>
    %404 = arith.addf %397, %403 : vector<16x64xf32>
    %cst_108 = arith.constant 0.797884583 : f32
    %405 = vector.broadcast %cst_108 : f32 to vector<16x64xf32>
    %406 = arith.mulf %405, %404 : vector<16x64xf32>
    %407 = math.tanh %406 : vector<16x64xf32>
    %cst_109 = arith.constant 1.000000e+00 : f32
    %408 = vector.broadcast %cst_109 : f32 to vector<16x64xf32>
    %409 = arith.addf %408, %407 : vector<16x64xf32>
    %410 = arith.mulf %399, %409 : vector<16x64xf32>
    %c1_110 = arith.constant 1 : index
    %c0_111 = arith.constant 0 : index
    %c0_112 = arith.constant 0 : index
    %411 = vector.load %arg6[%c1_110, %c0_111, %c0_112] : memref<2x64x32xf32, #tpu.memory_space<vmem>>, vector<1x64x32xf32>
    %412 = vector.shape_cast %411 : vector<1x64x32xf32> to vector<64x32xf32>
    %cst_113 = arith.constant dense<0.000000e+00> : vector<16x32xf32>
    %413 = tpu.matmul %410, %412, %cst_113 {dimension_numbers = #tpu.dot_dimension_numbers<[1], [0], [0], [1], [0, 0, 1, 1], [], []>} : vector<16x64xf32>, vector<64x32xf32>, vector<16x32xf32> -> vector<16x32xf32>
    %414 = vector.broadcast %265 : vector<1x32xf32> to vector<16x32xf32>
    %415 = arith.addf %413, %414 : vector<16x32xf32>
    %416 = vector.shape_cast %415 : vector<16x32xf32> to vector<2x8x32xf32>
    %417 = arith.addf %391, %416 : vector<2x8x32xf32>
    %cst_114 = arith.constant dense<0.000000e+00> : vector<2x8xf32>
    %418 = vector.multi_reduction <add>, %417, %cst_114 [2] : vector<2x8x32xf32> to vector<2x8xf32>
    %419 = vector.shape_cast %418 : vector<2x8xf32> to vector<2x8x1xf32>
    %cst_115 = arith.constant 3.200000e+01 : f32
    %420 = vector.broadcast %cst_115 : f32 to vector<2x8x1xf32>
    %421 = arith.divf %419, %420 : vector<2x8x1xf32>
    %422 = vector.broadcast %421 : vector<2x8x1xf32> to vector<2x8x32xf32>
    %423 = arith.subf %417, %422 : vector<2x8x32xf32>
    %424 = arith.mulf %423, %423 : vector<2x8x32xf32>
    %cst_116 = arith.constant dense<0.000000e+00> : vector<2x8xf32>
    %425 = vector.multi_reduction <add>, %424, %cst_116 [2] : vector<2x8x32xf32> to vector<2x8xf32>
    %426 = vector.shape_cast %425 : vector<2x8xf32> to vector<2x8x1xf32>
    %cst_117 = arith.constant 3.200000e+01 : f32
    %427 = vector.broadcast %cst_117 : f32 to vector<2x8x1xf32>
    %428 = arith.divf %426, %427 : vector<2x8x1xf32>
    %429 = vector.broadcast %421 : vector<2x8x1xf32> to vector<2x8x32xf32>
    %430 = arith.subf %417, %429 : vector<2x8x32xf32>
    %cst_118 = arith.constant 9.99999974E-6 : f32
    %431 = vector.broadcast %cst_118 : f32 to vector<2x8x1xf32>
    %432 = arith.addf %428, %431 : vector<2x8x1xf32>
    %433 = math.rsqrt %432 : vector<2x8x1xf32>
    %434 = vector.broadcast %433 : vector<2x8x1xf32> to vector<2x8x32xf32>
    %435 = arith.mulf %430, %434 : vector<2x8x32xf32>
    %436 = vector.shape_cast %266 : vector<1x32xf32> to vector<1x1x32xf32>
    %437 = vector.broadcast %436 : vector<1x1x32xf32> to vector<2x8x32xf32>
    %438 = arith.mulf %435, %437 : vector<2x8x32xf32>
    %439 = vector.shape_cast %267 : vector<1x32xf32> to vector<1x1x32xf32>
    %440 = vector.broadcast %439 : vector<1x1x32xf32> to vector<2x8x32xf32>
    %441 = arith.addf %438, %440 : vector<2x8x32xf32>
    %442 = vector.extract_strided_slice %441 {offsets = [0, 0, 0], sizes = [2, 1, 32], strides = [1, 1, 1]} : vector<2x8x32xf32> to vector<2x1x32xf32>
    %443 = vector.shape_cast %442 : vector<2x1x32xf32> to vector<2x32xf32>
    %444 = arith.mulf %443, %443 : vector<2x32xf32>
    %cst_119 = arith.constant dense<0.000000e+00> : vector<2xf32>
    %445 = vector.multi_reduction <add>, %444, %cst_119 [1] : vector<2x32xf32> to vector<2xf32>
    %446 = vector.shape_cast %445 : vector<2xf32> to vector<2x1xf32>
    %447 = math.rsqrt %446 : vector<2x1xf32>
    %448 = vector.broadcast %447 : vector<2x1xf32> to vector<2x32xf32>
    %449 = arith.mulf %443, %448 : vector<2x32xf32>
    %c0_120 = arith.constant 0 : index
    %c0_121 = arith.constant 0 : index
    %450 = vector.load %arg8[%c0_120, %c0_121] : memref<2x32xf32, #tpu.memory_space<vmem>>, vector<2x32xf32>
    tpu.vector_store %arg8[%c0_120, %c0_121], %449 {strides = array<i32>} : memref<2x32xf32, #tpu.memory_space<vmem>>, vector<2x32xf32>,
    return
  }
}

</mosaic_0001>

<llo_original>
// kernel: tpu_custom_call.1
$region0: #{tpu_custom_call.1}
  #allocation0 [shape = 'u32[]', space=smem, size = 0x4, offset = 0x4, fixed_abs, tag = 'smem constant byte address 0x4 - core index']
  #allocation1 [shape = 'u32[144,128]{1,0:T(1,128)}', space=vmem, size = 0x12000, scoped, tag = 'internal scratch']
  %s0 = inlined_call_operand.vmem [shape: s32[16,1], index: 0, kind: input, shape index: {}]
  %s1 = inlined_call_operand.vmem [shape: f32[2,8], index: 1, kind: input, shape index: {}]
  %s2 = inlined_call_operand.vmem [shape: f32[128,32], index: 2, kind: input, shape index: {}]
  %s3 = inlined_call_operand.vmem [shape: f32[8,32], index: 3, kind: input, shape index: {}]
  %s4 = inlined_call_operand.vmem [shape: f32[2,4,32,32], index: 4, kind: input, shape index: {}]
  %s5 = inlined_call_operand.vmem [shape: f32[2,32,64], index: 5, kind: input, shape index: {}]
  %s6 = inlined_call_operand.vmem [shape: f32[2,64,32], index: 6, kind: input, shape index: {}]
  %s7 = inlined_call_operand.vmem [shape: f32[2,10,128], index: 7, kind: input, shape index: {}]
  %s8 = inlined_call_operand.hbm [shape: f32[2,32], index: 8, kind: output, shape index: {}]
  %s9 = sld [smem:[#allocation0]]
  $region42: #{tpu_custom_call.1} parent=0
    _
  %s11 = ssub.s32 1, %s9
  %s12 = scalar_select 0, %s11, %s9
  $region1: #{tpu_custom_call.1} parent=0
    #allocation2 [shape = 'u8[1024]{0}', space=vmem, size = 0x400, scoped, tag = 'output window, operand 0, single buffered']
    #allocation3 [shape = 's32[1]{0}', space=sflag, size = 0x4, scoped, tag = 'scoped memory for tpu_custom_call.1']
    %13 = vsyncpa [#allocation3], 0
    // Predicated region
    $region2: #{tpu_custom_call.1} parent=1 // pred_check
      _
    $region3: #{tpu_custom_call.1} parent=1 // pred_check_branch
      %15 = sbr.rel (0) target = $region5
    $region4: #{tpu_custom_call.1} parent=1 // pred_region
      _
    $region5: #{tpu_custom_call.1} parent=1 // pred_fallthru
      _
    // Predicated region
    $region6: #{tpu_custom_call.1} parent=1 // pred_check
      _
    $region7: #{tpu_custom_call.1} parent=1 // pred_check_branch
      %17 = sbr.rel (0) target = $region9
    $region8: #{tpu_custom_call.1} parent=1 // pred_region
      _
    $region9: #{tpu_custom_call.1} parent=1 // pred_fallthru
      _
    // Predicated region
    $region10: #{tpu_custom_call.1} parent=1 // pred_check
      _
    $region11: #{tpu_custom_call.1} parent=1 // pred_check_branch
      %19 = sbr.rel (0) target = $region13
    $region12: #{tpu_custom_call.1} parent=1 // pred_region
      _
    $region13: #{tpu_custom_call.1} parent=1 // pred_fallthru
      _
    // Predicated region
    $region14: #{tpu_custom_call.1} parent=1 // pred_check
      _
    $region15: #{tpu_custom_call.1} parent=1 // pred_check_branch
      %21 = sbr.rel (0) target = $region17
    $region16: #{tpu_custom_call.1} parent=1 // pred_region
      _
    $region17: #{tpu_custom_call.1} parent=1 // pred_fallthru
      _
    // Predicated region
    $region18: #{tpu_custom_call.1} parent=1 // pred_check
      _
    $region19: #{tpu_custom_call.1} parent=1 // pred_check_branch
      %23 = sbr.rel (0) target = $region21
    $region20: #{tpu_custom_call.1} parent=1 // pred_region
      _
    $region21: #{tpu_custom_call.1} parent=1 // pred_fallthru
      _
    // Predicated region
    $region22: #{tpu_custom_call.1} parent=1 // pred_check
      _
    $region23: #{tpu_custom_call.1} parent=1 // pred_check_branch
      %25 = sbr.rel (0) target = $region25
    $region24: #{tpu_custom_call.1} parent=1 // pred_region
      _
    $region25: #{tpu_custom_call.1} parent=1 // pred_fallthru
      _
    // Predicated region
    $region26: #{tpu_custom_call.1} parent=1 // pred_check
      _
    $region27: #{tpu_custom_call.1} parent=1 // pred_check_branch
      %27 = sbr.rel (0) target = $region29
    $region28: #{tpu_custom_call.1} parent=1 // pred_region
      _
    $region29: #{tpu_custom_call.1} parent=1 // pred_fallthru
      _
    // Predicated region
    $region30: #{tpu_custom_call.1} parent=1 // pred_check
      _
    $region31: #{tpu_custom_call.1} parent=1 // pred_check_branch
      %29 = sbr.rel (0) target = $region33
    $region32: #{tpu_custom_call.1} parent=1 // pred_region
      _
    $region33: #{tpu_custom_call.1} parent=1 // pred_fallthru
      _
    %v30 = vld [vmem:[%s1] sm:$0x3]
    %v31 = vlaneseq
    %v32 = vand.u32 %v31, 127
    %v33 = vld [vmem:[%s0] sm:$0xff]
    %v34 = vld [vmem:[%s0 + $0x8] sm:$0xff]
    %35 = vset.pattern.permute.xlu0 0
    %36 = vperm.xlu0 %35, %v33
    %v37 = vpop.permute.xlu0 %36
    %38 = vset.pattern.permute.xlu0 0
    %39 = vperm.xlu0 %38, %v34
    %v40 = vpop.permute.xlu0 %39
    %vm41 = vcmp.eq.s32.totalorder %v32, %v37
    %vm42 = vcmp.eq.s32.totalorder %v32, %v40
    %v43 = vsel %vm41, 1, 0
    %v44 = vsel %vm42, 1, 0
    %v45 = vcvt.s32.f32 %v43
    %v46 = vcvt.s32.f32 %v44
    %v47 = vld [vmem:[%s2] sm:$0xff]
    %v48 = vld [vmem:[%s2 + $0x8] sm:$0xff]
    %v49 = vld [vmem:[%s2 + $0x10] sm:$0xff]
    %v50 = vld [vmem:[%s2 + $0x18] sm:$0xff]
    %v51 = vld [vmem:[%s2 + $0x20] sm:$0xff]
    %v52 = vld [vmem:[%s2 + $0x28] sm:$0xff]
    %v53 = vld [vmem:[%s2 + $0x30] sm:$0xff]
    %v54 = vld [vmem:[%s2 + $0x38] sm:$0xff]
    %v55 = vld [vmem:[%s2 + $0x40] sm:$0xff]
    %v56 = vld [vmem:[%s2 + $0x48] sm:$0xff]
    %v57 = vld [vmem:[%s2 + $0x50] sm:$0xff]
    %v58 = vld [vmem:[%s2 + $0x58] sm:$0xff]
    %v59 = vld [vmem:[%s2 + $0x60] sm:$0xff]
    %v60 = vld [vmem:[%s2 + $0x68] sm:$0xff]
    %v61 = vld [vmem:[%s2 + $0x70] sm:$0xff]
    %v62 = vld [vmem:[%s2 + $0x78] sm:$0xff]
    %63 = vmatprep.subr.mxu0 0.0
    %64 = vmatpush1.msra.mxu0 %v47
    %65 = vmatprep.subr.mxu0 0.0
    %66 = vmatpush1.msra.mxu0 %v48
    %67 = vmatprep.subr.mxu0 0.0
    %68 = vmatpush1.msra.mxu0 %v49
    %69 = vmatprep.subr.mxu0 0.0
    %70 = vmatpush1.msra.mxu0 %v50
    %71 = vmatprep.subr.mxu0 0.0
    %72 = vmatpush1.msra.mxu0 %v51
    %73 = vmatprep.subr.mxu0 0.0
    %74 = vmatpush1.msra.mxu0 %v52
    %75 = vmatprep.subr.mxu0 0.0
    %76 = vmatpush1.msra.mxu0 %v53
    %77 = vmatprep.subr.mxu0 0.0
    %78 = vmatpush1.msra.mxu0 %v54
    %79 = vmatprep.subr.mxu0 0.0
    %80 = vmatpush1.msra.mxu0 %v55
    %81 = vmatprep.subr.mxu0 0.0
    %82 = vmatpush1.msra.mxu0 %v56
    %83 = vmatprep.subr.mxu0 0.0
    %84 = vmatpush1.msra.mxu0 %v57
    %85 = vmatprep.subr.mxu0 0.0
    %86 = vmatpush1.msra.mxu0 %v58
    %87 = vmatprep.subr.mxu0 0.0
    %88 = vmatpush1.msra.mxu0 %v59
    %89 = vmatprep.subr.mxu0 0.0
    %90 = vmatpush1.msra.mxu0 %v60
    %91 = vmatprep.subr.mxu0 0.0
    %92 = vmatpush1.msra.mxu0 %v61
    %93 = vmatprep.subr.mxu0 0.0
    %94 = vmatpush1.msra.mxu0 %v62
    %95 = vmatprep.subr.mxu0 0.0
    %96 = vmatpush1.msra.mxu0 0.0
    %97 = vmatprep.subr.mxu0 0.0
    %98 = vmatpush1.msra.mxu0 0.0
    %99 = vmatprep.subr.mxu0 0.0
    %100 = vmatpush1.msra.mxu0 0.0
    %101 = vmatprep.subr.mxu0 0.0
    %102 = vmatpush1.msra.mxu0 0.0
    %103 = vmatprep.subr.mxu0 0.0
    %104 = vmatpush1.msra.mxu0 0.0
    %105 = vmatprep.subr.mxu0 0.0
    %106 = vmatpush1.msra.mxu0 0.0
    %107 = vmatprep.subr.mxu0 0.0
    %108 = vmatpush1.msra.mxu0 0.0
    %109 = vmatprep.subr.mxu0 0.0
    %110 = vmatpush1.msra.mxu0 0.0
    %111 = vmatprep.subr.mxu0 0.0
    %112 = vmatpush1.msra.mxu0 0.0
    %113 = vmatprep.subr.mxu0 0.0
    %114 = vmatpush1.msra.mxu0 0.0
    %115 = vmatprep.subr.mxu0 0.0
    %116 = vmatpush1.msra.mxu0 0.0
    %117 = vmatprep.subr.mxu0 0.0
    %118 = vmatpush1.msra.mxu0 0.0
    %119 = vmatprep.subr.mxu0 0.0
    %120 = vmatpush1.msra.mxu0 0.0
    %121 = vmatprep.subr.mxu0 0.0
    %122 = vmatpush1.msra.mxu0 0.0
    %123 = vmatprep.subr.mxu0 0.0
    %124 = vmatpush1.msra.mxu0 0.0
    %125 = vmatprep.subr.mxu0 0.0
    %126 = vmatpush1.msra.mxu0 0.0
    %127 = vmatprep.mubr.f32.mxu0 0.0
    %128 = vmatmul.mubr.f32.gmra.mrb[0].mxu0 %v45
    %v129 = vpop.f32.mrb[0].mxu0
    %v130 = vadd.f32 0.0, %v129
    %v131 = vpop.f32.mrb[0].mxu0
    %132 = vmatprep.mubr.f32.mxu0 0.0
    %133 = vmatmul.mubr.f32.gmra.mrb[0].mxu0 %v46
    %v134 = vpop.f32.mrb[0].mxu0
    %v135 = vadd.f32 0.0, %v134
    %v136 = vpop.f32.mrb[0].mxu0
    %137 = vdwg.mxu0
    %v138 = vld [vmem:[%s3] sm:$0xff]
    %v139 = vadd.f32 %v130, %v138
    %v140 = vadd.f32 %v135, %v138
    %v141 = vsub.f32 1.0, %v30
    %v142 = vmul.f32 %v141, -1e+09
    %v145 = vunpack.c.l.s4 1966171168
    %v146 = vunpack.c.0.s8 %v145
    %v147 = vlaneseq
    %v148 = vshrl.u32 %v147, 7
    %v149 = vsub.s32 %v146, %v148
    %v150 = vrot.slane %v142, %v149
    %v151 = vcombine.high %v150, %v150
    %v153 = vunpack.c.l.s4 1966171168
    %v154 = vunpack.c.0.s8 %v153
    %v155 = vlaneseq
    %v156 = vshrl.u32 %v155, 7
    %v157 = vsub.s32 %v154, %v156
    %v158 = vrot.slane %v150, %v157
    %v160 = vunpack.c.l.s4 1966171168
    %v161 = vunpack.c.0.s8 %v160
    %v162 = vlaneseq
    %v163 = vshrl.u32 %v162, 7
    %v164 = vsub.s32 %v161, %v163
    %v165 = vrot.slane %v151, %v164
    %v166 = vlaneseq
    %v167 = vshrl.u32 %v166, 7
    %v168 = vsub.s32 0, %v167
    %v169 = vrot.slane %v158, %v168
    %v170 = vlaneseq
    %v171 = vshrl.u32 %v170, 7
    %v172 = vsub.s32 0, %v171
    %v173 = vrot.slane %v165, %v172
    %vm176 = vcmp.ge.s32.totalorder %v32, 0
    %vm177 = vcmp.lt.s32.totalorder %v32, 8
    %vm178 = vmand %vm176, %vm177
    %v179 = vsel %vm178, 1, 0
    %v180 = vcvt.s32.f32 %v179
    %vm181 = vcmp.ge.s32.totalorder %v32, 8
    %vm182 = vcmp.lt.s32.totalorder %v32, 16
    %vm183 = vmand %vm181, %vm182
    %v184 = vsel %vm183, 1, 0
    %v185 = vcvt.s32.f32 %v184
    %vm186 = vcmp.ge.s32.totalorder %v32, 16
    %vm187 = vcmp.lt.s32.totalorder %v32, 24
    %vm188 = vmand %vm186, %vm187
    %v189 = vsel %vm188, 1, 0
    %v190 = vcvt.s32.f32 %v189
    %vm191 = vcmp.ge.s32.totalorder %v32, 24
    %vm192 = vcmp.lt.s32.totalorder %v32, 32
    %vm193 = vmand %vm191, %vm192
    %v194 = vsel %vm193, 1, 0
    %v195 = vcvt.s32.f32 %v194
    %v196 = vld [vmem:[%s4] sm:$0xff]
    %v197 = vld [vmem:[%s4 + $0x8] sm:$0xff]
    %v198 = vld [vmem:[%s4 + $0x10] sm:$0xff]
    %v199 = vld [vmem:[%s4 + $0x18] sm:$0xff]
    %v200 = vld [vmem:[%s4 + $0x20] sm:$0xff]
    %v201 = vld [vmem:[%s4 + $0x28] sm:$0xff]
    %v202 = vld [vmem:[%s4 + $0x30] sm:$0xff]
    %v203 = vld [vmem:[%s4 + $0x38] sm:$0xff]
    %v204 = vld [vmem:[%s4 + $0x40] sm:$0xff]
    %v205 = vld [vmem:[%s4 + $0x48] sm:$0xff]
    %v206 = vld [vmem:[%s4 + $0x50] sm:$0xff]
    %v207 = vld [vmem:[%s4 + $0x58] sm:$0xff]
    %v208 = vld [vmem:[%s4 + $0x60] sm:$0xff]
    %v209 = vld [vmem:[%s4 + $0x68] sm:$0xff]
    %v210 = vld [vmem:[%s4 + $0x70] sm:$0xff]
    %v211 = vld [vmem:[%s4 + $0x78] sm:$0xff]
    %v212 = vld [vmem:[%s7] sm:$0xff]
    %v213 = vld [vmem:[%s7 + $0x8] sm:$0x3]
    %v214 = vlaneseq
    %v215 = vshrl.u32 %v214, 7
    %v216 = vsub.s32 0, %v215
    %v217 = vrot.slane %v212, %v216
    %vm218 = vcmask 261120
    %v220 = vsel %vm218, %v139, 0
    %v223 = vsel %vm218, %v140, 0
    %225 = vmatprep.subr.mxu0 0.0
    %226 = vmatpush1.msra.mxu0 %v196
    %227 = vmatprep.subr.mxu0 0.0
    %228 = vmatpush1.msra.mxu0 %v197
    %229 = vmatprep.subr.mxu0 0.0
    %230 = vmatpush1.msra.mxu0 %v198
    %231 = vmatprep.subr.mxu0 0.0
    %232 = vmatpush1.msra.mxu0 %v199
    %233 = vmatprep.subr.mxu0 0.0
    %234 = vmatpush1.msra.mxu0 0.0
    %235 = vmatprep.subr.mxu0 0.0
    %236 = vmatpush1.msra.mxu0 0.0
    %237 = vmatprep.subr.mxu0 0.0
    %238 = vmatpush1.msra.mxu0 0.0
    %239 = vmatprep.subr.mxu0 0.0
    %240 = vmatpush1.msra.mxu0 0.0
    %241 = vmatprep.subr.mxu0 0.0
    %242 = vmatpush1.msra.mxu0 0.0
    %243 = vmatprep.subr.mxu0 0.0
    %244 = vmatpush1.msra.mxu0 0.0
    %245 = vmatprep.subr.mxu0 0.0
    %246 = vmatpush1.msra.mxu0 0.0
    %247 = vmatprep.subr.mxu0 0.0
    %248 = vmatpush1.msra.mxu0 0.0
    %249 = vmatprep.subr.mxu0 0.0
    %250 = vmatpush1.msra.mxu0 0.0
    %251 = vmatprep.subr.mxu0 0.0
    %252 = vmatpush1.msra.mxu0 0.0
    %253 = vmatprep.subr.mxu0 0.0
    %254 = vmatpush1.msra.mxu0 0.0
    %255 = vmatprep.subr.mxu0 0.0
    %256 = vmatpush1.msra.mxu0 0.0
    %257 = vmatprep.subr.mxu0 0.0
    %258 = vmatpush1.msra.mxu0 0.0
    %259 = vmatprep.subr.mxu0 0.0
    %260 = vmatpush1.msra.mxu0 0.0
    %261 = vmatprep.subr.mxu0 0.0
    %262 = vmatpush1.msra.mxu0 0.0
    %263 = vmatprep.subr.mxu0 0.0
    %264 = vmatpush1.msra.mxu0 0.0
    %265 = vmatprep.subr.mxu0 0.0
    %266 = vmatpush1.msra.mxu0 0.0
    %267 = vmatprep.subr.mxu0 0.0
    %268 = vmatpush1.msra.mxu0 0.0
    %269 = vmatprep.subr.mxu0 0.0
    %270 = vmatpush1.msra.mxu0 0.0
    %271 = vmatprep.subr.mxu0 0.0
    %272 = vmatpush1.msra.mxu0 0.0
    %273 = vmatprep.subr.mxu0 0.0
    %274 = vmatpush1.msra.mxu0 0.0
    %275 = vmatprep.subr.mxu0 0.0
    %276 = vmatpush1.msra.mxu0 0.0
    %277 = vmatprep.subr.mxu0 0.0
    %278 = vmatpush1.msra.mxu0 0.0
    %279 = vmatprep.subr.mxu0 0.0
    %280 = vmatpush1.msra.mxu0 0.0
    %281 = vmatprep.subr.mxu0 0.0
    %282 = vmatpush1.msra.mxu0 0.0
    %283 = vmatprep.subr.mxu0 0.0
    %284 = vmatpush1.msra.mxu0 0.0
    %285 = vmatprep.subr.mxu0 0.0
    %286 = vmatpush1.msra.mxu0 0.0
    %287 = vmatprep.subr.mxu0 0.0
    %288 = vmatpush1.msra.mxu0 0.0
    %289 = vmatprep.mubr.f32.mxu0 0.0
    %290 = vmatmul.mubr.f32.gmra.mrb[0].mxu0 %v220
    %v291 = vpop.f32.mrb[0].mxu0
    %v292 = vadd.f32 %v217, %v291
    %v293 = vpop.f32.mrb[0].mxu0
    %294 = vmatprep.mubr.f32.mxu0 0.0
    %295 = vmatmul.mubr.f32.gmra.mrb[0].mxu0 %v223
    %v296 = vpop.f32.mrb[0].mxu0
    %v297 = vadd.f32 %v217, %v296
    %v298 = vpop.f32.mrb[0].mxu0
    %299 = vdwg.mxu0
    %v300 = vlaneseq
    %v301 = vshrl.u32 %v300, 7
    %v302 = vsub.s32 1, %v301
    %v303 = vrot.slane %v212, %v302
    %304 = vmatprep.subr.mxu0 0.0
    %305 = vmatpush1.msra.mxu0 %v200
    %306 = vmatprep.subr.mxu0 0.0
    %307 = vmatpush1.msra.mxu0 %v201
    %308 = vmatprep.subr.mxu0 0.0
    %309 = vmatpush1.msra.mxu0 %v202
    %310 = vmatprep.subr.mxu0 0.0
    %311 = vmatpush1.msra.mxu0 %v203
    %312 = vmatprep.subr.mxu0 0.0
    %313 = vmatpush1.msra.mxu0 0.0
    %314 = vmatprep.subr.mxu0 0.0
    %315 = vmatpush1.msra.mxu0 0.0
    %316 = vmatprep.subr.mxu0 0.0
    %317 = vmatpush1.msra.mxu0 0.0
    %318 = vmatprep.subr.mxu0 0.0
    %319 = vmatpush1.msra.mxu0 0.0
    %320 = vmatprep.subr.mxu0 0.0
    %321 = vmatpush1.msra.mxu0 0.0
    %322 = vmatprep.subr.mxu0 0.0
    %323 = vmatpush1.msra.mxu0 0.0
    %324 = vmatprep.subr.mxu0 0.0
    %325 = vmatpush1.msra.mxu0 0.0
    %326 = vmatprep.subr.mxu0 0.0
    %327 = vmatpush1.msra.mxu0 0.0
    %328 = vmatprep.subr.mxu0 0.0
    %329 = vmatpush1.msra.mxu0 0.0
    %330 = vmatprep.subr.mxu0 0.0
    %331 = vmatpush1.msra.mxu0 0.0
    %332 = vmatprep.subr.mxu0 0.0
    %333 = vmatpush1.msra.mxu0 0.0
    %334 = vmatprep.subr.mxu0 0.0
    %335 = vmatpush1.msra.mxu0 0.0
    %336 = vmatprep.subr.mxu0 0.0
    %337 = vmatpush1.msra.mxu0 0.0
    %338 = vmatprep.subr.mxu0 0.0
    %339 = vmatpush1.msra.mxu0 0.0
    %340 = vmatprep.subr.mxu0 0.0
    %341 = vmatpush1.msra.mxu0 0.0
    %342 = vmatprep.subr.mxu0 0.0
    %343 = vmatpush1.msra.mxu0 0.0
    %344 = vmatprep.subr.mxu0 0.0
    %345 = vmatpush1.msra.mxu0 0.0
    %346 = vmatprep.subr.mxu0 0.0
    %347 = vmatpush1.msra.mxu0 0.0
    %348 = vmatprep.subr.mxu0 0.0
    %349 = vmatpush1.msra.mxu0 0.0
    %350 = vmatprep.subr.mxu0 0.0
    %351 = vmatpush1.msra.mxu0 0.0
    %352 = vmatprep.subr.mxu0 0.0
    %353 = vmatpush1.msra.mxu0 0.0
    %354 = vmatprep.subr.mxu0 0.0
    %355 = vmatpush1.msra.mxu0 0.0
    %356 = vmatprep.subr.mxu0 0.0
    %357 = vmatpush1.msra.mxu0 0.0
    %358 = vmatprep.subr.mxu0 0.0
    %359 = vmatpush1.msra.mxu0 0.0
    %360 = vmatprep.subr.mxu0 0.0
    %361 = vmatpush1.msra.mxu0 0.0
    %362 = vmatprep.subr.mxu0 0.0
    %363 = vmatpush1.msra.mxu0 0.0
    %364 = vmatprep.subr.mxu0 0.0
    %365 = vmatpush1.msra.mxu0 0.0
    %366 = vmatprep.subr.mxu0 0.0
    %367 = vmatpush1.msra.mxu0 0.0
    %368 = vmatprep.mubr.f32.mxu0 0.0
    %369 = vmatmul.mubr.f32.gmra.mrb[0].mxu0 %v220
    %v370 = vpop.f32.mrb[0].mxu0
    %v371 = vadd.f32 %v303, %v370
    %v372 = vpop.f32.mrb[0].mxu0
    %373 = vmatprep.mubr.f32.mxu0 0.0
    %374 = vmatmul.mubr.f32.gmra.mrb[0].mxu0 %v223
    %v375 = vpop.f32.mrb[0].mxu0
    %v376 = vadd.f32 %v303, %v375
    %v377 = vpop.f32.mrb[0].mxu0
    %378 = vdwg.mxu0
    %v379 = vlaneseq
    %v380 = vshrl.u32 %v379, 7
    %v381 = vsub.s32 2, %v380
    %v382 = vrot.slane %v212, %v381
    %383 = vmatprep.subr.mxu0 0.0
    %384 = vmatpush1.msra.mxu0 %v204
    %385 = vmatprep.subr.mxu0 0.0
    %386 = vmatpush1.msra.mxu0 %v205
    %387 = vmatprep.subr.mxu0 0.0
    %388 = vmatpush1.msra.mxu0 %v206
    %389 = vmatprep.subr.mxu0 0.0
    %390 = vmatpush1.msra.mxu0 %v207
    %391 = vmatprep.subr.mxu0 0.0
    %392 = vmatpush1.msra.mxu0 0.0
    %393 = vmatprep.subr.mxu0 0.0
    %394 = vmatpush1.msra.mxu0 0.0
    %395 = vmatprep.subr.mxu0 0.0
    %396 = vmatpush1.msra.mxu0 0.0
    %397 = vmatprep.subr.mxu0 0.0
    %398 = vmatpush1.msra.mxu0 0.0
    %399 = vmatprep.subr.mxu0 0.0
    %400 = vmatpush1.msra.mxu0 0.0
    %401 = vmatprep.subr.mxu0 0.0
    %402 = vmatpush1.msra.mxu0 0.0
    %403 = vmatprep.subr.mxu0 0.0
    %404 = vmatpush1.msra.mxu0 0.0
    %405 = vmatprep.subr.mxu0 0.0
    %406 = vmatpush1.msra.mxu0 0.0
    %407 = vmatprep.subr.mxu0 0.0
    %408 = vmatpush1.msra.mxu0 0.0
    %409 = vmatprep.subr.mxu0 0.0
    %410 = vmatpush1.msra.mxu0 0.0
    %411 = vmatprep.subr.mxu0 0.0
    %412 = vmatpush1.msra.mxu0 0.0
    %413 = vmatprep.subr.mxu0 0.0
    %414 = vmatpush1.msra.mxu0 0.0
    %415 = vmatprep.subr.mxu0 0.0
    %416 = vmatpush1.msra.mxu0 0.0
    %417 = vmatprep.subr.mxu0 0.0
    %418 = vmatpush1.msra.mxu0 0.0
    %419 = vmatprep.subr.mxu0 0.0
    %420 = vmatpush1.msra.mxu0 0.0
    %421 = vmatprep.subr.mxu0 0.0
    %422 = vmatpush1.msra.mxu0 0.0
    %423 = vmatprep.subr.mxu0 0.0
    %424 = vmatpush1.msra.mxu0 0.0
    %425 = vmatprep.subr.mxu0 0.0
    %426 = vmatpush1.msra.mxu0 0.0
    %427 = vmatprep.subr.mxu0 0.0
    %428 = vmatpush1.msra.mxu0 0.0
    %429 = vmatprep.subr.mxu0 0.0
    %430 = vmatpush1.msra.mxu0 0.0
    %431 = vmatprep.subr.mxu0 0.0
    %432 = vmatpush1.msra.mxu0 0.0
    %433 = vmatprep.subr.mxu0 0.0
    %434 = vmatpush1.msra.mxu0 0.0
    %435 = vmatprep.subr.mxu0 0.0
    %436 = vmatpush1.msra.mxu0 0.0
    %437 = vmatprep.subr.mxu0 0.0
    %438 = vmatpush1.msra.mxu0 0.0
    %439 = vmatprep.subr.mxu0 0.0
    %440 = vmatpush1.msra.mxu0 0.0
    %441 = vmatprep.subr.mxu0 0.0
    %442 = vmatpush1.msra.mxu0 0.0
    %443 = vmatprep.subr.mxu0 0.0
    %444 = vmatpush1.msra.mxu0 0.0
    %445 = vmatprep.subr.mxu0 0.0
    %446 = vmatpush1.msra.mxu0 0.0
    %447 = vmatprep.mubr.f32.mxu0 0.0
    %448 = vmatmul.mubr.f32.gmra.mrb[0].mxu0 %v220
    %v449 = vpop.f32.mrb[0].mxu0
    %v450 = vadd.f32 %v382, %v449
    %v451 = vpop.f32.mrb[0].mxu0
    %452 = vmatprep.mubr.f32.mxu0 0.0
    %453 = vmatmul.mubr.f32.gmra.mrb[0].mxu0 %v223
    %v454 = vpop.f32.mrb[0].mxu0
    %v455 = vadd.f32 %v382, %v454
    %v456 = vpop.f32.mrb[0].mxu0
    %457 = vdwg.mxu0
    %v458 = vmul.f32 %v292, %v180
    %v459 = vmul.f32 %v297, %v180
    %v461 = vsel %vm218, %v458, 0
    %v464 = vsel %vm218, %v371, 0
    %466 = vmatprep.subr.mxu0 0.0
    %467 = vmatpush1.xpose.msra.mxu0 %v464
    %468 = vmatprep.subr.mxu0 0.0
    %469 = vmatpush1.xpose.msra.mxu0 0.0
    %470 = vmatprep.subr.mxu0 0.0
    %471 = vmatpush1.xpose.msra.mxu0 0.0
    %472 = vmatprep.subr.mxu0 0.0
    %473 = vmatpush1.xpose.msra.mxu0 0.0
    %474 = vmatprep.subr.mxu0 0.0
    %475 = vmatpush1.xpose.msra.mxu0 0.0
    %476 = vmatprep.subr.mxu0 0.0
    %477 = vmatpush1.xpose.msra.mxu0 0.0
    %478 = vmatprep.subr.mxu0 0.0
    %479 = vmatpush1.xpose.msra.mxu0 0.0
    %480 = vmatprep.subr.mxu0 0.0
    %481 = vmatpush1.xpose.msra.mxu0 0.0
    %482 = vmatprep.subr.mxu0 0.0
    %483 = vmatpush1.xpose.msra.mxu0 0.0
    %484 = vmatprep.subr.mxu0 0.0
    %485 = vmatpush1.xpose.msra.mxu0 0.0
    %486 = vmatprep.subr.mxu0 0.0
    %487 = vmatpush1.xpose.msra.mxu0 0.0
    %488 = vmatprep.subr.mxu0 0.0
    %489 = vmatpush1.xpose.msra.mxu0 0.0
    %490 = vmatprep.subr.mxu0 0.0
    %491 = vmatpush1.xpose.msra.mxu0 0.0
    %492 = vmatprep.subr.mxu0 0.0
    %493 = vmatpush1.xpose.msra.mxu0 0.0
    %494 = vmatprep.subr.mxu0 0.0
    %495 = vmatpush1.xpose.msra.mxu0 0.0
    %496 = vmatprep.subr.mxu0 0.0
    %497 = vmatpush1.xpose.msra.mxu0 0.0
    %498 = vmatprep.subr.mxu0 0.0
    %499 = vmatpush1.xpose.msra.mxu0 0.0
    %500 = vmatprep.subr.mxu0 0.0
    %501 = vmatpush1.xpose.msra.mxu0 0.0
    %502 = vmatprep.subr.mxu0 0.0
    %503 = vmatpush1.xpose.msra.mxu0 0.0
    %504 = vmatprep.subr.mxu0 0.0
    %505 = vmatpush1.xpose.msra.mxu0 0.0
    %506 = vmatprep.subr.mxu0 0.0
    %507 = vmatpush1.xpose.msra.mxu0 0.0
    %508 = vmatprep.subr.mxu0 0.0
    %509 = vmatpush1.xpose.msra.mxu0 0.0
    %510 = vmatprep.subr.mxu0 0.0
    %511 = vmatpush1.xpose.msra.mxu0 0.0
    %512 = vmatprep.subr.mxu0 0.0
    %513 = vmatpush1.xpose.msra.mxu0 0.0
    %514 = vmatprep.subr.mxu0 0.0
    %515 = vmatpush1.xpose.msra.mxu0 0.0
    %516 = vmatprep.subr.mxu0 0.0
    %517 = vmatpush1.xpose.msra.mxu0 0.0
    %518 = vmatprep.subr.mxu0 0.0
    %519 = vmatpush1.xpose.msra.mxu0 0.0
    %520 = vmatprep.subr.mxu0 0.0
    %521 = vmatpush1.xpose.msra.mxu0 0.0
    %522 = vmatprep.subr.mxu0 0.0
    %523 = vmatpush1.xpose.msra.mxu0 0.0
    %524 = vmatprep.subr.mxu0 0.0
    %525 = vmatpush1.xpose.msra.mxu0 0.0
    %526 = vmatprep.subr.mxu0 0.0
    %527 = vmatpush1.xpose.msra.mxu0 0.0
    %528 = vmatprep.subr.mxu0 0.0
    %529 = vmatpush1.xpose.msra.mxu0 0.0
    %530 = vmatprep.mubr.f32.mxu0 0.0
    %531 = vmatmul.mubr.f32.gmra.mrb[0].mxu0 %v461
    %v532 = vpop.f32.mrb[0].mxu0
    %v533 = vadd.f32 0.0, %v532
    %v534 = vpop.f32.mrb[0].mxu0
    %535 = vdwg.mxu0
    %v537 = vsel %vm218, %v459, 0
    %v540 = vsel %vm218, %v376, 0
    %542 = vmatprep.subr.mxu0 0.0
    %543 = vmatpush1.xpose.msra.mxu0 %v540
    %544 = vmatprep.subr.mxu0 0.0
    %545 = vmatpush1.xpose.msra.mxu0 0.0
    %546 = vmatprep.subr.mxu0 0.0
    %547 = vmatpush1.xpose.msra.mxu0 0.0
    %548 = vmatprep.subr.mxu0 0.0
    %549 = vmatpush1.xpose.msra.mxu0 0.0
    %550 = vmatprep.subr.mxu0 0.0
    %551 = vmatpush1.xpose.msra.mxu0 0.0
    %552 = vmatprep.subr.mxu0 0.0
    %553 = vmatpush1.xpose.msra.mxu0 0.0
    %554 = vmatprep.subr.mxu0 0.0
    %555 = vmatpush1.xpose.msra.mxu0 0.0
    %556 = vmatprep.subr.mxu0 0.0
    %557 = vmatpush1.xpose.msra.mxu0 0.0
    %558 = vmatprep.subr.mxu0 0.0
    %559 = vmatpush1.xpose.msra.mxu0 0.0
    %560 = vmatprep.subr.mxu0 0.0
    %561 = vmatpush1.xpose.msra.mxu0 0.0
    %562 = vmatprep.subr.mxu0 0.0
    %563 = vmatpush1.xpose.msra.mxu0 0.0
    %564 = vmatprep.subr.mxu0 0.0
    %565 = vmatpush1.xpose.msra.mxu0 0.0
    %566 = vmatprep.subr.mxu0 0.0
    %567 = vmatpush1.xpose.msra.mxu0 0.0
    %568 = vmatprep.subr.mxu0 0.0
    %569 = vmatpush1.xpose.msra.mxu0 0.0
    %570 = vmatprep.subr.mxu0 0.0
    %571 = vmatpush1.xpose.msra.mxu0 0.0
    %572 = vmatprep.subr.mxu0 0.0
    %573 = vmatpush1.xpose.msra.mxu0 0.0
    %574 = vmatprep.subr.mxu0 0.0
    %575 = vmatpush1.xpose.msra.mxu0 0.0
    %576 = vmatprep.subr.mxu0 0.0
    %577 = vmatpush1.xpose.msra.mxu0 0.0
    %578 = vmatprep.subr.mxu0 0.0
    %579 = vmatpush1.xpose.msra.mxu0 0.0
    %580 = vmatprep.subr.mxu0 0.0
    %581 = vmatpush1.xpose.msra.mxu0 0.0
    %582 = vmatprep.subr.mxu0 0.0
    %583 = vmatpush1.xpose.msra.mxu0 0.0
    %584 = vmatprep.subr.mxu0 0.0
    %585 = vmatpush1.xpose.msra.mxu0 0.0
    %586 = vmatprep.subr.mxu0 0.0
    %587 = vmatpush1.xpose.msra.mxu0 0.0
    %588 = vmatprep.subr.mxu0 0.0
    %589 = vmatpush1.xpose.msra.mxu0 0.0
    %590 = vmatprep.subr.mxu0 0.0
    %591 = vmatpush1.xpose.msra.mxu0 0.0
    %592 = vmatprep.subr.mxu0 0.0
    %593 = vmatpush1.xpose.msra.mxu0 0.0
    %594 = vmatprep.subr.mxu0 0.0
    %595 = vmatpush1.xpose.msra.mxu0 0.0
    %596 = vmatprep.subr.mxu0 0.0
    %597 = vmatpush1.xpose.msra.mxu0 0.0
    %598 = vmatprep.subr.mxu0 0.0
    %599 = vmatpush1.xpose.msra.mxu0 0.0
    %600 = vmatprep.subr.mxu0 0.0
    %601 = vmatpush1.xpose.msra.mxu0 0.0
    %602 = vmatprep.subr.mxu0 0.0
    %603 = vmatpush1.xpose.msra.mxu0 0.0
    %604 = vmatprep.subr.mxu0 0.0
    %605 = vmatpush1.xpose.msra.mxu0 0.0
    %606 = vmatprep.mubr.f32.mxu0 0.0
    %607 = vmatmul.mubr.f32.gmra.mrb[0].mxu0 %v537
    %v608 = vpop.f32.mrb[0].mxu0
    %v609 = vadd.f32 0.0, %v608
    %v610 = vpop.f32.mrb[0].mxu0
    %611 = vdwg.mxu0
    %v612 = vmul.f32 %v533, 0.35355338
    %v613 = vmul.f32 %v609, 0.35355338
    %v614 = vadd.f32 %v612, %v169
    %v615 = vadd.f32 %v613, %v173
    %vm616 = vcmask 64512
    %v617 = vsel %vm616, %v614, -inf
    %618 = vmax.xlane.f32.xlu0 %v617
    %v619 = vpop.xlane.xlu0 %618
    %v620 = vsel %vm616, %v615, -inf
    %621 = vmax.xlane.f32.xlu0 %v620
    %v622 = vpop.xlane.xlu0 %621
    %v623 = vsub.f32 %v614, %v619
    %v624 = vsub.f32 %v615, %v622
    %v625 = vmul.f32 %v623, 1.442695
    %v626 = vpow.pop %v625
    %v627 = vmul.f32 %v624, 1.442695
    %v628 = vpow.pop %v627
    %v629 = vsel %vm616, %v626, 0.0
    %630 = vadd.xlane.f32.xlu0 %v629
    %v631 = vpop.xlane.xlu0 %630
    %v632 = vsel %vm616, %v628, 0.0
    %633 = vadd.xlane.f32.xlu0 %v632
    %v634 = vpop.xlane.xlu0 %633
    %v635 = vrcp.pop %v631
    %v636 = vrcp.pop %v634
    %v637 = vmul.f32 %v626, %v635
    %v638 = vmul.f32 %v628, %v636
    %v639 = vmul.f32 %v450, %v180
    %v640 = vmul.f32 %v455, %v180
    %v641 = vmul.f32 %v292, %v185
    %v642 = vmul.f32 %v297, %v185
    %v644 = vsel %vm218, %v641, 0
    %646 = vmatprep.subr.mxu0 0.0
    %647 = vmatpush1.xpose.msra.mxu0 %v464
    %648 = vmatprep.subr.mxu0 0.0
    %649 = vmatpush1.xpose.msra.mxu0 0.0
    %650 = vmatprep.subr.mxu0 0.0
    %651 = vmatpush1.xpose.msra.mxu0 0.0
    %652 = vmatprep.subr.mxu0 0.0
    %653 = vmatpush1.xpose.msra.mxu0 0.0
    %654 = vmatprep.subr.mxu0 0.0
    %655 = vmatpush1.xpose.msra.mxu0 0.0
    %656 = vmatprep.subr.mxu0 0.0
    %657 = vmatpush1.xpose.msra.mxu0 0.0
    %658 = vmatprep.subr.mxu0 0.0
    %659 = vmatpush1.xpose.msra.mxu0 0.0
    %660 = vmatprep.subr.mxu0 0.0
    %661 = vmatpush1.xpose.msra.mxu0 0.0
    %662 = vmatprep.subr.mxu0 0.0
    %663 = vmatpush1.xpose.msra.mxu0 0.0
    %664 = vmatprep.subr.mxu0 0.0
    %665 = vmatpush1.xpose.msra.mxu0 0.0
    %666 = vmatprep.subr.mxu0 0.0
    %667 = vmatpush1.xpose.msra.mxu0 0.0
    %668 = vmatprep.subr.mxu0 0.0
    %669 = vmatpush1.xpose.msra.mxu0 0.0
    %670 = vmatprep.subr.mxu0 0.0
    %671 = vmatpush1.xpose.msra.mxu0 0.0
    %672 = vmatprep.subr.mxu0 0.0
    %673 = vmatpush1.xpose.msra.mxu0 0.0
    %674 = vmatprep.subr.mxu0 0.0
    %675 = vmatpush1.xpose.msra.mxu0 0.0
    %676 = vmatprep.subr.mxu0 0.0
    %677 = vmatpush1.xpose.msra.mxu0 0.0
    %678 = vmatprep.subr.mxu0 0.0
    %679 = vmatpush1.xpose.msra.mxu0 0.0
    %680 = vmatprep.subr.mxu0 0.0
    %681 = vmatpush1.xpose.msra.mxu0 0.0
    %682 = vmatprep.subr.mxu0 0.0
    %683 = vmatpush1.xpose.msra.mxu0 0.0
    %684 = vmatprep.subr.mxu0 0.0
    %685 = vmatpush1.xpose.msra.mxu0 0.0
    %686 = vmatprep.subr.mxu0 0.0
    %687 = vmatpush1.xpose.msra.mxu0 0.0
    %688 = vmatprep.subr.mxu0 0.0
    %689 = vmatpush1.xpose.msra.mxu0 0.0
    %690 = vmatprep.subr.mxu0 0.0
    %691 = vmatpush1.xpose.msra.mxu0 0.0
    %692 = vmatprep.subr.mxu0 0.0
    %693 = vmatpush1.xpose.msra.mxu0 0.0
    %694 = vmatprep.subr.mxu0 0.0
    %695 = vmatpush1.xpose.msra.mxu0 0.0
    %696 = vmatprep.subr.mxu0 0.0
    %697 = vmatpush1.xpose.msra.mxu0 0.0
    %698 = vmatprep.subr.mxu0 0.0
    %699 = vmatpush1.xpose.msra.mxu0 0.0
    %700 = vmatprep.subr.mxu0 0.0
    %701 = vmatpush1.xpose.msra.mxu0 0.0
    %702 = vmatprep.subr.mxu0 0.0
    %703 = vmatpush1.xpose.msra.mxu0 0.0
    %704 = vmatprep.subr.mxu0 0.0
    %705 = vmatpush1.xpose.msra.mxu0 0.0
    %706 = vmatprep.subr.mxu0 0.0
    %707 = vmatpush1.xpose.msra.mxu0 0.0
    %708 = vmatprep.subr.mxu0 0.0
    %709 = vmatpush1.xpose.msra.mxu0 0.0
    %710 = vmatprep.mubr.f32.mxu0 0.0
    %711 = vmatmul.mubr.f32.gmra.mrb[0].mxu0 %v644
    %v712 = vpop.f32.mrb[0].mxu0
    %v713 = vadd.f32 0.0, %v712
    %v714 = vpop.f32.mrb[0].mxu0
    %715 = vdwg.mxu0
    %v717 = vsel %vm218, %v642, 0
    %719 = vmatprep.subr.mxu0 0.0
    %720 = vmatpush1.xpose.msra.mxu0 %v540
    %721 = vmatprep.subr.mxu0 0.0
    %722 = vmatpush1.xpose.msra.mxu0 0.0
    %723 = vmatprep.subr.mxu0 0.0
    %724 = vmatpush1.xpose.msra.mxu0 0.0
    %725 = vmatprep.subr.mxu0 0.0
    %726 = vmatpush1.xpose.msra.mxu0 0.0
    %727 = vmatprep.subr.mxu0 0.0
    %728 = vmatpush1.xpose.msra.mxu0 0.0
    %729 = vmatprep.subr.mxu0 0.0
    %730 = vmatpush1.xpose.msra.mxu0 0.0
    %731 = vmatprep.subr.mxu0 0.0
    %732 = vmatpush1.xpose.msra.mxu0 0.0
    %733 = vmatprep.subr.mxu0 0.0
    %734 = vmatpush1.xpose.msra.mxu0 0.0
    %735 = vmatprep.subr.mxu0 0.0
    %736 = vmatpush1.xpose.msra.mxu0 0.0
    %737 = vmatprep.subr.mxu0 0.0
    %738 = vmatpush1.xpose.msra.mxu0 0.0
    %739 = vmatprep.subr.mxu0 0.0
    %740 = vmatpush1.xpose.msra.mxu0 0.0
    %741 = vmatprep.subr.mxu0 0.0
    %742 = vmatpush1.xpose.msra.mxu0 0.0
    %743 = vmatprep.subr.mxu0 0.0
    %744 = vmatpush1.xpose.msra.mxu0 0.0
    %745 = vmatprep.subr.mxu0 0.0
    %746 = vmatpush1.xpose.msra.mxu0 0.0
    %747 = vmatprep.subr.mxu0 0.0
    %748 = vmatpush1.xpose.msra.mxu0 0.0
    %749 = vmatprep.subr.mxu0 0.0
    %750 = vmatpush1.xpose.msra.mxu0 0.0
    %751 = vmatprep.subr.mxu0 0.0
    %752 = vmatpush1.xpose.msra.mxu0 0.0
    %753 = vmatprep.subr.mxu0 0.0
    %754 = vmatpush1.xpose.msra.mxu0 0.0
    %755 = vmatprep.subr.mxu0 0.0
    %756 = vmatpush1.xpose.msra.mxu0 0.0
    %757 = vmatprep.subr.mxu0 0.0
    %758 = vmatpush1.xpose.msra.mxu0 0.0
    %759 = vmatprep.subr.mxu0 0.0
    %760 = vmatpush1.xpose.msra.mxu0 0.0
    %761 = vmatprep.subr.mxu0 0.0
    %762 = vmatpush1.xpose.msra.mxu0 0.0
    %763 = vmatprep.subr.mxu0 0.0
    %764 = vmatpush1.xpose.msra.mxu0 0.0
    %765 = vmatprep.subr.mxu0 0.0
    %766 = vmatpush1.xpose.msra.mxu0 0.0
    %767 = vmatprep.subr.mxu0 0.0
    %768 = vmatpush1.xpose.msra.mxu0 0.0
    %769 = vmatprep.subr.mxu0 0.0
    %770 = vmatpush1.xpose.msra.mxu0 0.0
    %771 = vmatprep.subr.mxu0 0.0
    %772 = vmatpush1.xpose.msra.mxu0 0.0
    %773 = vmatprep.subr.mxu0 0.0
    %774 = vmatpush1.xpose.msra.mxu0 0.0
    %775 = vmatprep.subr.mxu0 0.0
    %776 = vmatpush1.xpose.msra.mxu0 0.0
    %777 = vmatprep.subr.mxu0 0.0
    %778 = vmatpush1.xpose.msra.mxu0 0.0
    %779 = vmatprep.subr.mxu0 0.0
    %780 = vmatpush1.xpose.msra.mxu0 0.0
    %781 = vmatprep.subr.mxu0 0.0
    %782 = vmatpush1.xpose.msra.mxu0 0.0
    %783 = vmatprep.mubr.f32.mxu0 0.0
    %784 = vmatmul.mubr.f32.gmra.mrb[0].mxu0 %v717
    %v785 = vpop.f32.mrb[0].mxu0
    %v786 = vadd.f32 0.0, %v785
    %v787 = vpop.f32.mrb[0].mxu0
    %788 = vdwg.mxu0
    %v789 = vmul.f32 %v713, 0.35355338
    %v790 = vmul.f32 %v786, 0.35355338
    %v791 = vadd.f32 %v789, %v169
    %v792 = vadd.f32 %v790, %v173
    %v793 = vsel %vm616, %v791, -inf
    %794 = vmax.xlane.f32.xlu0 %v793
    %v795 = vpop.xlane.xlu0 %794
    %v796 = vsel %vm616, %v792, -inf
    %797 = vmax.xlane.f32.xlu0 %v796
    %v798 = vpop.xlane.xlu0 %797
    %v799 = vsub.f32 %v791, %v795
    %v800 = vsub.f32 %v792, %v798
    %v801 = vmul.f32 %v799, 1.442695
    %v802 = vpow.pop %v801
    %v803 = vmul.f32 %v800, 1.442695
    %v804 = vpow.pop %v803
    %v805 = vsel %vm616, %v802, 0.0
    %806 = vadd.xlane.f32.xlu0 %v805
    %v807 = vpop.xlane.xlu0 %806
    %v808 = vsel %vm616, %v804, 0.0
    %809 = vadd.xlane.f32.xlu0 %v808
    %v810 = vpop.xlane.xlu0 %809
    %v811 = vrcp.pop %v807
    %v812 = vrcp.pop %v810
    %v813 = vmul.f32 %v802, %v811
    %v814 = vmul.f32 %v804, %v812
    %v815 = vmul.f32 %v450, %v185
    %v816 = vmul.f32 %v455, %v185
    %v818 = vsel %vm616, %v813, 0
    %820 = vmatprep.subr.mxu0 0.0
    %821 = vmatpush1.msra.mxu0 %v815
    %822 = vmatprep.subr.mxu0 0.0
    %823 = vmatpush1.msra.mxu0 0.0
    %824 = vmatprep.subr.mxu0 0.0
    %825 = vmatpush1.msra.mxu0 0.0
    %826 = vmatprep.subr.mxu0 0.0
    %827 = vmatpush1.msra.mxu0 0.0
    %828 = vmatprep.subr.mxu0 0.0
    %829 = vmatpush1.msra.mxu0 0.0
    %830 = vmatprep.subr.mxu0 0.0
    %831 = vmatpush1.msra.mxu0 0.0
    %832 = vmatprep.subr.mxu0 0.0
    %833 = vmatpush1.msra.mxu0 0.0
    %834 = vmatprep.subr.mxu0 0.0
    %835 = vmatpush1.msra.mxu0 0.0
    %836 = vmatprep.subr.mxu0 0.0
    %837 = vmatpush1.msra.mxu0 0.0
    %838 = vmatprep.subr.mxu0 0.0
    %839 = vmatpush1.msra.mxu0 0.0
    %840 = vmatprep.subr.mxu0 0.0
    %841 = vmatpush1.msra.mxu0 0.0
    %842 = vmatprep.subr.mxu0 0.0
    %843 = vmatpush1.msra.mxu0 0.0
    %844 = vmatprep.subr.mxu0 0.0
    %845 = vmatpush1.msra.mxu0 0.0
    %846 = vmatprep.subr.mxu0 0.0
    %847 = vmatpush1.msra.mxu0 0.0
    %848 = vmatprep.subr.mxu0 0.0
    %849 = vmatpush1.msra.mxu0 0.0
    %850 = vmatprep.subr.mxu0 0.0
    %851 = vmatpush1.msra.mxu0 0.0
    %852 = vmatprep.subr.mxu0 0.0
    %853 = vmatpush1.msra.mxu0 0.0
    %854 = vmatprep.subr.mxu0 0.0
    %855 = vmatpush1.msra.mxu0 0.0
    %856 = vmatprep.subr.mxu0 0.0
    %857 = vmatpush1.msra.mxu0 0.0
    %858 = vmatprep.subr.mxu0 0.0
    %859 = vmatpush1.msra.mxu0 0.0
    %860 = vmatprep.subr.mxu0 0.0
    %861 = vmatpush1.msra.mxu0 0.0
    %862 = vmatprep.subr.mxu0 0.0
    %863 = vmatpush1.msra.mxu0 0.0
    %864 = vmatprep.subr.mxu0 0.0
    %865 = vmatpush1.msra.mxu0 0.0
    %866 = vmatprep.subr.mxu0 0.0
    %867 = vmatpush1.msra.mxu0 0.0
    %868 = vmatprep.subr.mxu0 0.0
    %869 = vmatpush1.msra.mxu0 0.0
    %870 = vmatprep.subr.mxu0 0.0
    %871 = vmatpush1.msra.mxu0 0.0
    %872 = vmatprep.subr.mxu0 0.0
    %873 = vmatpush1.msra.mxu0 0.0
    %874 = vmatprep.subr.mxu0 0.0
    %875 = vmatpush1.msra.mxu0 0.0
    %876 = vmatprep.subr.mxu0 0.0
    %877 = vmatpush1.msra.mxu0 0.0
    %878 = vmatprep.subr.mxu0 0.0
    %879 = vmatpush1.msra.mxu0 0.0
    %880 = vmatprep.subr.mxu0 0.0
    %881 = vmatpush1.msra.mxu0 0.0
    %882 = vmatprep.subr.mxu0 0.0
    %883 = vmatpush1.msra.mxu0 0.0
    %884 = vmatprep.mubr.f32.mxu0 0.0
    %885 = vmatmul.mubr.f32.gmra.mrb[0].mxu0 %v818
    %v886 = vpop.f32.mrb[0].mxu0
    %v887 = vadd.f32 0.0, %v886
    %v888 = vpop.f32.mrb[0].mxu0
    %889 = vdwg.mxu0
    %v891 = vsel %vm616, %v814, 0
    %893 = vmatprep.subr.mxu0 0.0
    %894 = vmatpush1.msra.mxu0 %v816
    %895 = vmatprep.subr.mxu0 0.0
    %896 = vmatpush1.msra.mxu0 0.0
    %897 = vmatprep.subr.mxu0 0.0
    %898 = vmatpush1.msra.mxu0 0.0
    %899 = vmatprep.subr.mxu0 0.0
    %900 = vmatpush1.msra.mxu0 0.0
    %901 = vmatprep.subr.mxu0 0.0
    %902 = vmatpush1.msra.mxu0 0.0
    %903 = vmatprep.subr.mxu0 0.0
    %904 = vmatpush1.msra.mxu0 0.0
    %905 = vmatprep.subr.mxu0 0.0
    %906 = vmatpush1.msra.mxu0 0.0
    %907 = vmatprep.subr.mxu0 0.0
    %908 = vmatpush1.msra.mxu0 0.0
    %909 = vmatprep.subr.mxu0 0.0
    %910 = vmatpush1.msra.mxu0 0.0
    %911 = vmatprep.subr.mxu0 0.0
    %912 = vmatpush1.msra.mxu0 0.0
    %913 = vmatprep.subr.mxu0 0.0
    %914 = vmatpush1.msra.mxu0 0.0
    %915 = vmatprep.subr.mxu0 0.0
    %916 = vmatpush1.msra.mxu0 0.0
    %917 = vmatprep.subr.mxu0 0.0
    %918 = vmatpush1.msra.mxu0 0.0
    %919 = vmatprep.subr.mxu0 0.0
    %920 = vmatpush1.msra.mxu0 0.0
    %921 = vmatprep.subr.mxu0 0.0
    %922 = vmatpush1.msra.mxu0 0.0
    %923 = vmatprep.subr.mxu0 0.0
    %924 = vmatpush1.msra.mxu0 0.0
    %925 = vmatprep.subr.mxu0 0.0
    %926 = vmatpush1.msra.mxu0 0.0
    %927 = vmatprep.subr.mxu0 0.0
    %928 = vmatpush1.msra.mxu0 0.0
    %929 = vmatprep.subr.mxu0 0.0
    %930 = vmatpush1.msra.mxu0 0.0
    %931 = vmatprep.subr.mxu0 0.0
    %932 = vmatpush1.msra.mxu0 0.0
    %933 = vmatprep.subr.mxu0 0.0
    %934 = vmatpush1.msra.mxu0 0.0
    %935 = vmatprep.subr.mxu0 0.0
    %936 = vmatpush1.msra.mxu0 0.0
    %937 = vmatprep.subr.mxu0 0.0
    %938 = vmatpush1.msra.mxu0 0.0
    %939 = vmatprep.subr.mxu0 0.0
    %940 = vmatpush1.msra.mxu0 0.0
    %941 = vmatprep.subr.mxu0 0.0
    %942 = vmatpush1.msra.mxu0 0.0
    %943 = vmatprep.subr.mxu0 0.0
    %944 = vmatpush1.msra.mxu0 0.0
    %945 = vmatprep.subr.mxu0 0.0
    %946 = vmatpush1.msra.mxu0 0.0
    %947 = vmatprep.subr.mxu0 0.0
    %948 = vmatpush1.msra.mxu0 0.0
    %949 = vmatprep.subr.mxu0 0.0
    %950 = vmatpush1.msra.mxu0 0.0
    %951 = vmatprep.subr.mxu0 0.0
    %952 = vmatpush1.msra.mxu0 0.0
    %953 = vmatprep.subr.mxu0 0.0
    %954 = vmatpush1.msra.mxu0 0.0
    %955 = vmatprep.subr.mxu0 0.0
    %956 = vmatpush1.msra.mxu0 0.0
    %957 = vmatprep.mubr.f32.mxu0 0.0
    %958 = vmatmul.mubr.f32.gmra.mrb[0].mxu0 %v891
    %v959 = vpop.f32.mrb[0].mxu0
    %v960 = vadd.f32 0.0, %v959
    %v961 = vpop.f32.mrb[0].mxu0
    %962 = vdwg.mxu0
    %v964 = vsel %vm616, %v637, 0
    %966 = vmatprep.subr.mxu0 0.0
    %967 = vmatpush1.msra.mxu0 %v639
    %968 = vmatprep.subr.mxu0 0.0
    %969 = vmatpush1.msra.mxu0 0.0
    %970 = vmatprep.subr.mxu0 0.0
    %971 = vmatpush1.msra.mxu0 0.0
    %972 = vmatprep.subr.mxu0 0.0
    %973 = vmatpush1.msra.mxu0 0.0
    %974 = vmatprep.subr.mxu0 0.0
    %975 = vmatpush1.msra.mxu0 0.0
    %976 = vmatprep.subr.mxu0 0.0
    %977 = vmatpush1.msra.mxu0 0.0
    %978 = vmatprep.subr.mxu0 0.0
    %979 = vmatpush1.msra.mxu0 0.0
    %980 = vmatprep.subr.mxu0 0.0
    %981 = vmatpush1.msra.mxu0 0.0
    %982 = vmatprep.subr.mxu0 0.0
    %983 = vmatpush1.msra.mxu0 0.0
    %984 = vmatprep.subr.mxu0 0.0
    %985 = vmatpush1.msra.mxu0 0.0
    %986 = vmatprep.subr.mxu0 0.0
    %987 = vmatpush1.msra.mxu0 0.0
    %988 = vmatprep.subr.mxu0 0.0
    %989 = vmatpush1.msra.mxu0 0.0
    %990 = vmatprep.subr.mxu0 0.0
    %991 = vmatpush1.msra.mxu0 0.0
    %992 = vmatprep.subr.mxu0 0.0
    %993 = vmatpush1.msra.mxu0 0.0
    %994 = vmatprep.subr.mxu0 0.0
    %995 = vmatpush1.msra.mxu0 0.0
    %996 = vmatprep.subr.mxu0 0.0
    %997 = vmatpush1.msra.mxu0 0.0
    %998 = vmatprep.subr.mxu0 0.0
    %999 = vmatpush1.msra.mxu0 0.0
    %1000 = vmatprep.subr.mxu0 0.0
    %1001 = vmatpush1.msra.mxu0 0.0
    %1002 = vmatprep.subr.mxu0 0.0
    %1003 = vmatpush1.msra.mxu0 0.0
    %1004 = vmatprep.subr.mxu0 0.0
    %1005 = vmatpush1.msra.mxu0 0.0
    %1006 = vmatprep.subr.mxu0 0.0
    %1007 = vmatpush1.msra.mxu0 0.0
    %1008 = vmatprep.subr.mxu0 0.0
    %1009 = vmatpush1.msra.mxu0 0.0
    %1010 = vmatprep.subr.mxu0 0.0
    %1011 = vmatpush1.msra.mxu0 0.0
    %1012 = vmatprep.subr.mxu0 0.0
    %1013 = vmatpush1.msra.mxu0 0.0
    %1014 = vmatprep.subr.mxu0 0.0
    %1015 = vmatpush1.msra.mxu0 0.0
    %1016 = vmatprep.subr.mxu0 0.0
    %1017 = vmatpush1.msra.mxu0 0.0
    %1018 = vmatprep.subr.mxu0 0.0
    %1019 = vmatpush1.msra.mxu0 0.0
    %1020 = vmatprep.subr.mxu0 0.0
    %1021 = vmatpush1.msra.mxu0 0.0
    %1022 = vmatprep.subr.mxu0 0.0
    %1023 = vmatpush1.msra.mxu0 0.0
    %1024 = vmatprep.subr.mxu0 0.0
    %1025 = vmatpush1.msra.mxu0 0.0
    %1026 = vmatprep.subr.mxu0 0.0
    %1027 = vmatpush1.msra.mxu0 0.0
    %1028 = vmatprep.subr.mxu0 0.0
    %1029 = vmatpush1.msra.mxu0 0.0
    %1030 = vmatprep.mubr.f32.mxu0 0.0
    %1031 = vmatmul.mubr.f32.gmra.mrb[0].mxu0 %v964
    %v1032 = vpop.f32.mrb[0].mxu0
    %v1033 = vadd.f32 %v887, %v1032
    %v1034 = vpop.f32.mrb[0].mxu0
    %1035 = vdwg.mxu0
    %v1037 = vsel %vm616, %v638, 0
    %1039 = vmatprep.subr.mxu0 0.0
    %1040 = vmatpush1.msra.mxu0 %v640
    %1041 = vmatprep.subr.mxu0 0.0
    %1042 = vmatpush1.msra.mxu0 0.0
    %1043 = vmatprep.subr.mxu0 0.0
    %1044 = vmatpush1.msra.mxu0 0.0
    %1045 = vmatprep.subr.mxu0 0.0
    %1046 = vmatpush1.msra.mxu0 0.0
    %1047 = vmatprep.subr.mxu0 0.0
    %1048 = vmatpush1.msra.mxu0 0.0
    %1049 = vmatprep.subr.mxu0 0.0
    %1050 = vmatpush1.msra.mxu0 0.0
    %1051 = vmatprep.subr.mxu0 0.0
    %1052 = vmatpush1.msra.mxu0 0.0
    %1053 = vmatprep.subr.mxu0 0.0
    %1054 = vmatpush1.msra.mxu0 0.0
    %1055 = vmatprep.subr.mxu0 0.0
    %1056 = vmatpush1.msra.mxu0 0.0
    %1057 = vmatprep.subr.mxu0 0.0
    %1058 = vmatpush1.msra.mxu0 0.0
    %1059 = vmatprep.subr.mxu0 0.0
    %1060 = vmatpush1.msra.mxu0 0.0
    %1061 = vmatprep.subr.mxu0 0.0
    %1062 = vmatpush1.msra.mxu0 0.0
    %1063 = vmatprep.subr.mxu0 0.0
    %1064 = vmatpush1.msra.mxu0 0.0
    %1065 = vmatprep.subr.mxu0 0.0
    %1066 = vmatpush1.msra.mxu0 0.0
    %1067 = vmatprep.subr.mxu0 0.0
    %1068 = vmatpush1.msra.mxu0 0.0
    %1069 = vmatprep.subr.mxu0 0.0
    %1070 = vmatpush1.msra.mxu0 0.0
    %1071 = vmatprep.subr.mxu0 0.0
    %1072 = vmatpush1.msra.mxu0 0.0
    %1073 = vmatprep.subr.mxu0 0.0
    %1074 = vmatpush1.msra.mxu0 0.0
    %1075 = vmatprep.subr.mxu0 0.0
    %1076 = vmatpush1.msra.mxu0 0.0
    %1077 = vmatprep.subr.mxu0 0.0
    %1078 = vmatpush1.msra.mxu0 0.0
    %1079 = vmatprep.subr.mxu0 0.0
    %1080 = vmatpush1.msra.mxu0 0.0
    %1081 = vmatprep.subr.mxu0 0.0
    %1082 = vmatpush1.msra.mxu0 0.0
    %1083 = vmatprep.subr.mxu0 0.0
    %1084 = vmatpush1.msra.mxu0 0.0
    %1085 = vmatprep.subr.mxu0 0.0
    %1086 = vmatpush1.msra.mxu0 0.0
    %1087 = vmatprep.subr.mxu0 0.0
    %1088 = vmatpush1.msra.mxu0 0.0
    %1089 = vmatprep.subr.mxu0 0.0
    %1090 = vmatpush1.msra.mxu0 0.0
    %1091 = vmatprep.subr.mxu0 0.0
    %1092 = vmatpush1.msra.mxu0 0.0
    %1093 = vmatprep.subr.mxu0 0.0
    %1094 = vmatpush1.msra.mxu0 0.0
    %1095 = vmatprep.subr.mxu0 0.0
    %1096 = vmatpush1.msra.mxu0 0.0
    %1097 = vmatprep.subr.mxu0 0.0
    %1098 = vmatpush1.msra.mxu0 0.0
    %1099 = vmatprep.subr.mxu0 0.0
    %1100 = vmatpush1.msra.mxu0 0.0
    %1101 = vmatprep.subr.mxu0 0.0
    %1102 = vmatpush1.msra.mxu0 0.0
    %1103 = vmatprep.mubr.f32.mxu0 0.0
    %1104 = vmatmul.mubr.f32.gmra.mrb[0].mxu0 %v1037
    %v1105 = vpop.f32.mrb[0].mxu0
    %v1106 = vadd.f32 %v960, %v1105
    %v1107 = vpop.f32.mrb[0].mxu0
    %1108 = vdwg.mxu0
    %v1109 = vmul.f32 %v292, %v190
    %v1110 = vmul.f32 %v297, %v190
    %v1112 = vsel %vm218, %v1109, 0
    %1114 = vmatprep.subr.mxu0 0.0
    %1115 = vmatpush1.xpose.msra.mxu0 %v464
    %1116 = vmatprep.subr.mxu0 0.0
    %1117 = vmatpush1.xpose.msra.mxu0 0.0
    %1118 = vmatprep.subr.mxu0 0.0
    %1119 = vmatpush1.xpose.msra.mxu0 0.0
    %1120 = vmatprep.subr.mxu0 0.0
    %1121 = vmatpush1.xpose.msra.mxu0 0.0
    %1122 = vmatprep.subr.mxu0 0.0
    %1123 = vmatpush1.xpose.msra.mxu0 0.0
    %1124 = vmatprep.subr.mxu0 0.0
    %1125 = vmatpush1.xpose.msra.mxu0 0.0
    %1126 = vmatprep.subr.mxu0 0.0
    %1127 = vmatpush1.xpose.msra.mxu0 0.0
    %1128 = vmatprep.subr.mxu0 0.0
    %1129 = vmatpush1.xpose.msra.mxu0 0.0
    %1130 = vmatprep.subr.mxu0 0.0
    %1131 = vmatpush1.xpose.msra.mxu0 0.0
    %1132 = vmatprep.subr.mxu0 0.0
    %1133 = vmatpush1.xpose.msra.mxu0 0.0
    %1134 = vmatprep.subr.mxu0 0.0
    %1135 = vmatpush1.xpose.msra.mxu0 0.0
    %1136 = vmatprep.subr.mxu0 0.0
    %1137 = vmatpush1.xpose.msra.mxu0 0.0
    %1138 = vmatprep.subr.mxu0 0.0
    %1139 = vmatpush1.xpose.msra.mxu0 0.0
    %1140 = vmatprep.subr.mxu0 0.0
    %1141 = vmatpush1.xpose.msra.mxu0 0.0
    %1142 = vmatprep.subr.mxu0 0.0
    %1143 = vmatpush1.xpose.msra.mxu0 0.0
    %1144 = vmatprep.subr.mxu0 0.0
    %1145 = vmatpush1.xpose.msra.mxu0 0.0
    %1146 = vmatprep.subr.mxu0 0.0
    %1147 = vmatpush1.xpose.msra.mxu0 0.0
    %1148 = vmatprep.subr.mxu0 0.0
    %1149 = vmatpush1.xpose.msra.mxu0 0.0
    %1150 = vmatprep.subr.mxu0 0.0
    %1151 = vmatpush1.xpose.msra.mxu0 0.0
    %1152 = vmatprep.subr.mxu0 0.0
    %1153 = vmatpush1.xpose.msra.mxu0 0.0
    %1154 = vmatprep.subr.mxu0 0.0
    %1155 = vmatpush1.xpose.msra.mxu0 0.0
    %1156 = vmatprep.subr.mxu0 0.0
    %1157 = vmatpush1.xpose.msra.mxu0 0.0
    %1158 = vmatprep.subr.mxu0 0.0
    %1159 = vmatpush1.xpose.msra.mxu0 0.0
    %1160 = vmatprep.subr.mxu0 0.0
    %1161 = vmatpush1.xpose.msra.mxu0 0.0
    %1162 = vmatprep.subr.mxu0 0.0
    %1163 = vmatpush1.xpose.msra.mxu0 0.0
    %1164 = vmatprep.subr.mxu0 0.0
    %1165 = vmatpush1.xpose.msra.mxu0 0.0
    %1166 = vmatprep.subr.mxu0 0.0
    %1167 = vmatpush1.xpose.msra.mxu0 0.0
    %1168 = vmatprep.subr.mxu0 0.0
    %1169 = vmatpush1.xpose.msra.mxu0 0.0
    %1170 = vmatprep.subr.mxu0 0.0
    %1171 = vmatpush1.xpose.msra.mxu0 0.0
    %1172 = vmatprep.subr.mxu0 0.0
    %1173 = vmatpush1.xpose.msra.mxu0 0.0
    %1174 = vmatprep.subr.mxu0 0.0
    %1175 = vmatpush1.xpose.msra.mxu0 0.0
    %1176 = vmatprep.subr.mxu0 0.0
    %1177 = vmatpush1.xpose.msra.mxu0 0.0
    %1178 = vmatprep.mubr.f32.mxu0 0.0
    %1179 = vmatmul.mubr.f32.gmra.mrb[0].mxu0 %v1112
    %v1180 = vpop.f32.mrb[0].mxu0
    %v1181 = vadd.f32 0.0, %v1180
    %v1182 = vpop.f32.mrb[0].mxu0
    %1183 = vdwg.mxu0
    %v1185 = vsel %vm218, %v1110, 0
    %1187 = vmatprep.subr.mxu0 0.0
    %1188 = vmatpush1.xpose.msra.mxu0 %v540
    %1189 = vmatprep.subr.mxu0 0.0
    %1190 = vmatpush1.xpose.msra.mxu0 0.0
    %1191 = vmatprep.subr.mxu0 0.0
    %1192 = vmatpush1.xpose.msra.mxu0 0.0
    %1193 = vmatprep.subr.mxu0 0.0
    %1194 = vmatpush1.xpose.msra.mxu0 0.0
    %1195 = vmatprep.subr.mxu0 0.0
    %1196 = vmatpush1.xpose.msra.mxu0 0.0
    %1197 = vmatprep.subr.mxu0 0.0
    %1198 = vmatpush1.xpose.msra.mxu0 0.0
    %1199 = vmatprep.subr.mxu0 0.0
    %1200 = vmatpush1.xpose.msra.mxu0 0.0
    %1201 = vmatprep.subr.mxu0 0.0
    %1202 = vmatpush1.xpose.msra.mxu0 0.0
    %1203 = vmatprep.subr.mxu0 0.0
    %1204 = vmatpush1.xpose.msra.mxu0 0.0
    %1205 = vmatprep.subr.mxu0 0.0
    %1206 = vmatpush1.xpose.msra.mxu0 0.0
    %1207 = vmatprep.subr.mxu0 0.0
    %1208 = vmatpush1.xpose.msra.mxu0 0.0
    %1209 = vmatprep.subr.mxu0 0.0
    %1210 = vmatpush1.xpose.msra.mxu0 0.0
    %1211 = vmatprep.subr.mxu0 0.0
    %1212 = vmatpush1.xpose.msra.mxu0 0.0
    %1213 = vmatprep.subr.mxu0 0.0
    %1214 = vmatpush1.xpose.msra.mxu0 0.0
    %1215 = vmatprep.subr.mxu0 0.0
    %1216 = vmatpush1.xpose.msra.mxu0 0.0
    %1217 = vmatprep.subr.mxu0 0.0
    %1218 = vmatpush1.xpose.msra.mxu0 0.0
    %1219 = vmatprep.subr.mxu0 0.0
    %1220 = vmatpush1.xpose.msra.mxu0 0.0
    %1221 = vmatprep.subr.mxu0 0.0
    %1222 = vmatpush1.xpose.msra.mxu0 0.0
    %1223 = vmatprep.subr.mxu0 0.0
    %1224 = vmatpush1.xpose.msra.mxu0 0.0
    %1225 = vmatprep.subr.mxu0 0.0
    %1226 = vmatpush1.xpose.msra.mxu0 0.0
    %1227 = vmatprep.subr.mxu0 0.0
    %1228 = vmatpush1.xpose.msra.mxu0 0.0
    %1229 = vmatprep.subr.mxu0 0.0
    %1230 = vmatpush1.xpose.msra.mxu0 0.0
    %1231 = vmatprep.subr.mxu0 0.0
    %1232 = vmatpush1.xpose.msra.mxu0 0.0
    %1233 = vmatprep.subr.mxu0 0.0
    %1234 = vmatpush1.xpose.msra.mxu0 0.0
    %1235 = vmatprep.subr.mxu0 0.0
    %1236 = vmatpush1.xpose.msra.mxu0 0.0
    %1237 = vmatprep.subr.mxu0 0.0
    %1238 = vmatpush1.xpose.msra.mxu0 0.0
    %1239 = vmatprep.subr.mxu0 0.0
    %1240 = vmatpush1.xpose.msra.mxu0 0.0
    %1241 = vmatprep.subr.mxu0 0.0
    %1242 = vmatpush1.xpose.msra.mxu0 0.0
    %1243 = vmatprep.subr.mxu0 0.0
    %1244 = vmatpush1.xpose.msra.mxu0 0.0
    %1245 = vmatprep.subr.mxu0 0.0
    %1246 = vmatpush1.xpose.msra.mxu0 0.0
    %1247 = vmatprep.subr.mxu0 0.0
    %1248 = vmatpush1.xpose.msra.mxu0 0.0
    %1249 = vmatprep.subr.mxu0 0.0
    %1250 = vmatpush1.xpose.msra.mxu0 0.0
    %1251 = vmatprep.mubr.f32.mxu0 0.0
    %1252 = vmatmul.mubr.f32.gmra.mrb[0].mxu0 %v1185
    %v1253 = vpop.f32.mrb[0].mxu0
    %v1254 = vadd.f32 0.0, %v1253
    %v1255 = vpop.f32.mrb[0].mxu0
    %1256 = vdwg.mxu0
    %v1257 = vmul.f32 %v1181, 0.35355338
    %v1258 = vmul.f32 %v1254, 0.35355338
    %v1259 = vadd.f32 %v1257, %v169
    %v1260 = vadd.f32 %v1258, %v173
    %v1261 = vsel %vm616, %v1259, -inf
    %1262 = vmax.xlane.f32.xlu0 %v1261
    %v1263 = vpop.xlane.xlu0 %1262
    %v1264 = vsel %vm616, %v1260, -inf
    %1265 = vmax.xlane.f32.xlu0 %v1264
    %v1266 = vpop.xlane.xlu0 %1265
    %v1267 = vsub.f32 %v1259, %v1263
    %v1268 = vsub.f32 %v1260, %v1266
    %v1269 = vmul.f32 %v1267, 1.442695
    %v1270 = vpow.pop %v1269
    %v1271 = vmul.f32 %v1268, 1.442695
    %v1272 = vpow.pop %v1271
    %v1273 = vsel %vm616, %v1270, 0.0
    %1274 = vadd.xlane.f32.xlu0 %v1273
    %v1275 = vpop.xlane.xlu0 %1274
    %v1276 = vsel %vm616, %v1272, 0.0
    %1277 = vadd.xlane.f32.xlu0 %v1276
    %v1278 = vpop.xlane.xlu0 %1277
    %v1279 = vrcp.pop %v1275
    %v1280 = vrcp.pop %v1278
    %v1281 = vmul.f32 %v1270, %v1279
    %v1282 = vmul.f32 %v1272, %v1280
    %v1283 = vmul.f32 %v450, %v190
    %v1284 = vmul.f32 %v455, %v190
    %v1286 = vsel %vm616, %v1281, 0
    %1288 = vmatprep.subr.mxu0 0.0
    %1289 = vmatpush1.msra.mxu0 %v1283
    %1290 = vmatprep.subr.mxu0 0.0
    %1291 = vmatpush1.msra.mxu0 0.0
    %1292 = vmatprep.subr.mxu0 0.0
    %1293 = vmatpush1.msra.mxu0 0.0
    %1294 = vmatprep.subr.mxu0 0.0
    %1295 = vmatpush1.msra.mxu0 0.0
    %1296 = vmatprep.subr.mxu0 0.0
    %1297 = vmatpush1.msra.mxu0 0.0
    %1298 = vmatprep.subr.mxu0 0.0
    %1299 = vmatpush1.msra.mxu0 0.0
    %1300 = vmatprep.subr.mxu0 0.0
    %1301 = vmatpush1.msra.mxu0 0.0
    %1302 = vmatprep.subr.mxu0 0.0
    %1303 = vmatpush1.msra.mxu0 0.0
    %1304 = vmatprep.subr.mxu0 0.0
    %1305 = vmatpush1.msra.mxu0 0.0
    %1306 = vmatprep.subr.mxu0 0.0
    %1307 = vmatpush1.msra.mxu0 0.0
    %1308 = vmatprep.subr.mxu0 0.0
    %1309 = vmatpush1.msra.mxu0 0.0
    %1310 = vmatprep.subr.mxu0 0.0
    %1311 = vmatpush1.msra.mxu0 0.0
    %1312 = vmatprep.subr.mxu0 0.0
    %1313 = vmatpush1.msra.mxu0 0.0
    %1314 = vmatprep.subr.mxu0 0.0
    %1315 = vmatpush1.msra.mxu0 0.0
    %1316 = vmatprep.subr.mxu0 0.0
    %1317 = vmatpush1.msra.mxu0 0.0
    %1318 = vmatprep.subr.mxu0 0.0
    %1319 = vmatpush1.msra.mxu0 0.0
    %1320 = vmatprep.subr.mxu0 0.0
    %1321 = vmatpush1.msra.mxu0 0.0
    %1322 = vmatprep.subr.mxu0 0.0
    %1323 = vmatpush1.msra.mxu0 0.0
    %1324 = vmatprep.subr.mxu0 0.0
    %1325 = vmatpush1.msra.mxu0 0.0
    %1326 = vmatprep.subr.mxu0 0.0
    %1327 = vmatpush1.msra.mxu0 0.0
    %1328 = vmatprep.subr.mxu0 0.0
    %1329 = vmatpush1.msra.mxu0 0.0
    %1330 = vmatprep.subr.mxu0 0.0
    %1331 = vmatpush1.msra.mxu0 0.0
    %1332 = vmatprep.subr.mxu0 0.0
    %1333 = vmatpush1.msra.mxu0 0.0
    %1334 = vmatprep.subr.mxu0 0.0
    %1335 = vmatpush1.msra.mxu0 0.0
    %1336 = vmatprep.subr.mxu0 0.0
    %1337 = vmatpush1.msra.mxu0 0.0
    %1338 = vmatprep.subr.mxu0 0.0
    %1339 = vmatpush1.msra.mxu0 0.0
    %1340 = vmatprep.subr.mxu0 0.0
    %1341 = vmatpush1.msra.mxu0 0.0
    %1342 = vmatprep.subr.mxu0 0.0
    %1343 = vmatpush1.msra.mxu0 0.0
    %1344 = vmatprep.subr.mxu0 0.0
    %1345 = vmatpush1.msra.mxu0 0.0
    %1346 = vmatprep.subr.mxu0 0.0
    %1347 = vmatpush1.msra.mxu0 0.0
    %1348 = vmatprep.subr.mxu0 0.0
    %1349 = vmatpush1.msra.mxu0 0.0
    %1350 = vmatprep.subr.mxu0 0.0
    %1351 = vmatpush1.msra.mxu0 0.0
    %1352 = vmatprep.mubr.f32.mxu0 0.0
    %1353 = vmatmul.mubr.f32.gmra.mrb[0].mxu0 %v1286
    %v1354 = vpop.f32.mrb[0].mxu0
    %v1355 = vadd.f32 0.0, %v1354
    %v1356 = vpop.f32.mrb[0].mxu0
    %1357 = vdwg.mxu0
    %v1359 = vsel %vm616, %v1282, 0
    %1361 = vmatprep.subr.mxu0 0.0
    %1362 = vmatpush1.msra.mxu0 %v1284
    %1363 = vmatprep.subr.mxu0 0.0
    %1364 = vmatpush1.msra.mxu0 0.0
    %1365 = vmatprep.subr.mxu0 0.0
    %1366 = vmatpush1.msra.mxu0 0.0
    %1367 = vmatprep.subr.mxu0 0.0
    %1368 = vmatpush1.msra.mxu0 0.0
    %1369 = vmatprep.subr.mxu0 0.0
    %1370 = vmatpush1.msra.mxu0 0.0
    %1371 = vmatprep.subr.mxu0 0.0
    %1372 = vmatpush1.msra.mxu0 0.0
    %1373 = vmatprep.subr.mxu0 0.0
    %1374 = vmatpush1.msra.mxu0 0.0
    %1375 = vmatprep.subr.mxu0 0.0
    %1376 = vmatpush1.msra.mxu0 0.0
    %1377 = vmatprep.subr.mxu0 0.0
    %1378 = vmatpush1.msra.mxu0 0.0
    %1379 = vmatprep.subr.mxu0 0.0
    %1380 = vmatpush1.msra.mxu0 0.0
    %1381 = vmatprep.subr.mxu0 0.0
    %1382 = vmatpush1.msra.mxu0 0.0
    %1383 = vmatprep.subr.mxu0 0.0
    %1384 = vmatpush1.msra.mxu0 0.0
    %1385 = vmatprep.subr.mxu0 0.0
    %1386 = vmatpush1.msra.mxu0 0.0
    %1387 = vmatprep.subr.mxu0 0.0
    %1388 = vmatpush1.msra.mxu0 0.0
    %1389 = vmatprep.subr.mxu0 0.0
    %1390 = vmatpush1.msra.mxu0 0.0
    %1391 = vmatprep.subr.mxu0 0.0
    %1392 = vmatpush1.msra.mxu0 0.0
    %1393 = vmatprep.subr.mxu0 0.0
    %1394 = vmatpush1.msra.mxu0 0.0
    %1395 = vmatprep.subr.mxu0 0.0
    %1396 = vmatpush1.msra.mxu0 0.0
    %1397 = vmatprep.subr.mxu0 0.0
    %1398 = vmatpush1.msra.mxu0 0.0
    %1399 = vmatprep.subr.mxu0 0.0
    %1400 = vmatpush1.msra.mxu0 0.0
    %1401 = vmatprep.subr.mxu0 0.0
    %1402 = vmatpush1.msra.mxu0 0.0
    %1403 = vmatprep.subr.mxu0 0.0
    %1404 = vmatpush1.msra.mxu0 0.0
    %1405 = vmatprep.subr.mxu0 0.0
    %1406 = vmatpush1.msra.mxu0 0.0
    %1407 = vmatprep.subr.mxu0 0.0
    %1408 = vmatpush1.msra.mxu0 0.0
    %1409 = vmatprep.subr.mxu0 0.0
    %1410 = vmatpush1.msra.mxu0 0.0
    %1411 = vmatprep.subr.mxu0 0.0
    %1412 = vmatpush1.msra.mxu0 0.0
    %1413 = vmatprep.subr.mxu0 0.0
    %1414 = vmatpush1.msra.mxu0 0.0
    %1415 = vmatprep.subr.mxu0 0.0
    %1416 = vmatpush1.msra.mxu0 0.0
    %1417 = vmatprep.subr.mxu0 0.0
    %1418 = vmatpush1.msra.mxu0 0.0
    %1419 = vmatprep.subr.mxu0 0.0
    %1420 = vmatpush1.msra.mxu0 0.0
    %1421 = vmatprep.subr.mxu0 0.0
    %1422 = vmatpush1.msra.mxu0 0.0
    %1423 = vmatprep.subr.mxu0 0.0
    %1424 = vmatpush1.msra.mxu0 0.0
    %1425 = vmatprep.mubr.f32.mxu0 0.0
    %1426 = vmatmul.mubr.f32.gmra.mrb[0].mxu0 %v1359
    %v1427 = vpop.f32.mrb[0].mxu0
    %v1428 = vadd.f32 0.0, %v1427
    %v1429 = vpop.f32.mrb[0].mxu0
    %1430 = vdwg.mxu0
    %v1431 = vadd.f32 %v1033, %v1355
    %v1432 = vadd.f32 %v1106, %v1428
    %v1433 = vmul.f32 %v292, %v195
    %v1434 = vmul.f32 %v297, %v195
    %v1436 = vsel %vm218, %v1433, 0
    %1438 = vmatprep.subr.mxu0 0.0
    %1439 = vmatpush1.xpose.msra.mxu0 %v464
    %1440 = vmatprep.subr.mxu0 0.0
    %1441 = vmatpush1.xpose.msra.mxu0 0.0
    %1442 = vmatprep.subr.mxu0 0.0
    %1443 = vmatpush1.xpose.msra.mxu0 0.0
    %1444 = vmatprep.subr.mxu0 0.0
    %1445 = vmatpush1.xpose.msra.mxu0 0.0
    %1446 = vmatprep.subr.mxu0 0.0
    %1447 = vmatpush1.xpose.msra.mxu0 0.0
    %1448 = vmatprep.subr.mxu0 0.0
    %1449 = vmatpush1.xpose.msra.mxu0 0.0
    %1450 = vmatprep.subr.mxu0 0.0
    %1451 = vmatpush1.xpose.msra.mxu0 0.0
    %1452 = vmatprep.subr.mxu0 0.0
    %1453 = vmatpush1.xpose.msra.mxu0 0.0
    %1454 = vmatprep.subr.mxu0 0.0
    %1455 = vmatpush1.xpose.msra.mxu0 0.0
    %1456 = vmatprep.subr.mxu0 0.0
    %1457 = vmatpush1.xpose.msra.mxu0 0.0
    %1458 = vmatprep.subr.mxu0 0.0
    %1459 = vmatpush1.xpose.msra.mxu0 0.0
    %1460 = vmatprep.subr.mxu0 0.0
    %1461 = vmatpush1.xpose.msra.mxu0 0.0
    %1462 = vmatprep.subr.mxu0 0.0
    %1463 = vmatpush1.xpose.msra.mxu0 0.0
    %1464 = vmatprep.subr.mxu0 0.0
    %1465 = vmatpush1.xpose.msra.mxu0 0.0
    %1466 = vmatprep.subr.mxu0 0.0
    %1467 = vmatpush1.xpose.msra.mxu0 0.0
    %1468 = vmatprep.subr.mxu0 0.0
    %1469 = vmatpush1.xpose.msra.mxu0 0.0
    %1470 = vmatprep.subr.mxu0 0.0
    %1471 = vmatpush1.xpose.msra.mxu0 0.0
    %1472 = vmatprep.subr.mxu0 0.0
    %1473 = vmatpush1.xpose.msra.mxu0 0.0
    %1474 = vmatprep.subr.mxu0 0.0
    %1475 = vmatpush1.xpose.msra.mxu0 0.0
    %1476 = vmatprep.subr.mxu0 0.0
    %1477 = vmatpush1.xpose.msra.mxu0 0.0
    %1478 = vmatprep.subr.mxu0 0.0
    %1479 = vmatpush1.xpose.msra.mxu0 0.0
    %1480 = vmatprep.subr.mxu0 0.0
    %1481 = vmatpush1.xpose.msra.mxu0 0.0
    %1482 = vmatprep.subr.mxu0 0.0
    %1483 = vmatpush1.xpose.msra.mxu0 0.0
    %1484 = vmatprep.subr.mxu0 0.0
    %1485 = vmatpush1.xpose.msra.mxu0 0.0
    %1486 = vmatprep.subr.mxu0 0.0
    %1487 = vmatpush1.xpose.msra.mxu0 0.0
    %1488 = vmatprep.subr.mxu0 0.0
    %1489 = vmatpush1.xpose.msra.mxu0 0.0
    %1490 = vmatprep.subr.mxu0 0.0
    %1491 = vmatpush1.xpose.msra.mxu0 0.0
    %1492 = vmatprep.subr.mxu0 0.0
    %1493 = vmatpush1.xpose.msra.mxu0 0.0
    %1494 = vmatprep.subr.mxu0 0.0
    %1495 = vmatpush1.xpose.msra.mxu0 0.0
    %1496 = vmatprep.subr.mxu0 0.0
    %1497 = vmatpush1.xpose.msra.mxu0 0.0
    %1498 = vmatprep.subr.mxu0 0.0
    %1499 = vmatpush1.xpose.msra.mxu0 0.0
    %1500 = vmatprep.subr.mxu0 0.0
    %1501 = vmatpush1.xpose.msra.mxu0 0.0
    %1502 = vmatprep.mubr.f32.mxu0 0.0
    %1503 = vmatmul.mubr.f32.gmra.mrb[0].mxu0 %v1436
    %v1504 = vpop.f32.mrb[0].mxu0
    %v1505 = vadd.f32 0.0, %v1504
    %v1506 = vpop.f32.mrb[0].mxu0
    %1507 = vdwg.mxu0
    %v1509 = vsel %vm218, %v1434, 0
    %1511 = vmatprep.subr.mxu0 0.0
    %1512 = vmatpush1.xpose.msra.mxu0 %v540
    %1513 = vmatprep.subr.mxu0 0.0
    %1514 = vmatpush1.xpose.msra.mxu0 0.0
    %1515 = vmatprep.subr.mxu0 0.0
    %1516 = vmatpush1.xpose.msra.mxu0 0.0
    %1517 = vmatprep.subr.mxu0 0.0
    %1518 = vmatpush1.xpose.msra.mxu0 0.0
    %1519 = vmatprep.subr.mxu0 0.0
    %1520 = vmatpush1.xpose.msra.mxu0 0.0
    %1521 = vmatprep.subr.mxu0 0.0
    %1522 = vmatpush1.xpose.msra.mxu0 0.0
    %1523 = vmatprep.subr.mxu0 0.0
    %1524 = vmatpush1.xpose.msra.mxu0 0.0
    %1525 = vmatprep.subr.mxu0 0.0
    %1526 = vmatpush1.xpose.msra.mxu0 0.0
    %1527 = vmatprep.subr.mxu0 0.0
    %1528 = vmatpush1.xpose.msra.mxu0 0.0
    %1529 = vmatprep.subr.mxu0 0.0
    %1530 = vmatpush1.xpose.msra.mxu0 0.0
    %1531 = vmatprep.subr.mxu0 0.0
    %1532 = vmatpush1.xpose.msra.mxu0 0.0
    %1533 = vmatprep.subr.mxu0 0.0
    %1534 = vmatpush1.xpose.msra.mxu0 0.0
    %1535 = vmatprep.subr.mxu0 0.0
    %1536 = vmatpush1.xpose.msra.mxu0 0.0
    %1537 = vmatprep.subr.mxu0 0.0
    %1538 = vmatpush1.xpose.msra.mxu0 0.0
    %1539 = vmatprep.subr.mxu0 0.0
    %1540 = vmatpush1.xpose.msra.mxu0 0.0
    %1541 = vmatprep.subr.mxu0 0.0
    %1542 = vmatpush1.xpose.msra.mxu0 0.0
    %1543 = vmatprep.subr.mxu0 0.0
    %1544 = vmatpush1.xpose.msra.mxu0 0.0
    %1545 = vmatprep.subr.mxu0 0.0
    %1546 = vmatpush1.xpose.msra.mxu0 0.0
    %1547 = vmatprep.subr.mxu0 0.0
    %1548 = vmatpush1.xpose.msra.mxu0 0.0
    %1549 = vmatprep.subr.mxu0 0.0
    %1550 = vmatpush1.xpose.msra.mxu0 0.0
    %1551 = vmatprep.subr.mxu0 0.0
    %1552 = vmatpush1.xpose.msra.mxu0 0.0
    %1553 = vmatprep.subr.mxu0 0.0
    %1554 = vmatpush1.xpose.msra.mxu0 0.0
    %1555 = vmatprep.subr.mxu0 0.0
    %1556 = vmatpush1.xpose.msra.mxu0 0.0
    %1557 = vmatprep.subr.mxu0 0.0
    %1558 = vmatpush1.xpose.msra.mxu0 0.0
    %1559 = vmatprep.subr.mxu0 0.0
    %1560 = vmatpush1.xpose.msra.mxu0 0.0
    %1561 = vmatprep.subr.mxu0 0.0
    %1562 = vmatpush1.xpose.msra.mxu0 0.0
    %1563 = vmatprep.subr.mxu0 0.0
    %1564 = vmatpush1.xpose.msra.mxu0 0.0
    %1565 = vmatprep.subr.mxu0 0.0
    %1566 = vmatpush1.xpose.msra.mxu0 0.0
    %1567 = vmatprep.subr.mxu0 0.0
    %1568 = vmatpush1.xpose.msra.mxu0 0.0
    %1569 = vmatprep.subr.mxu0 0.0
    %1570 = vmatpush1.xpose.msra.mxu0 0.0
    %1571 = vmatprep.subr.mxu0 0.0
    %1572 = vmatpush1.xpose.msra.mxu0 0.0
    %1573 = vmatprep.subr.mxu0 0.0
    %1574 = vmatpush1.xpose.msra.mxu0 0.0
    %1575 = vmatprep.mubr.f32.mxu0 0.0
    %1576 = vmatmul.mubr.f32.gmra.mrb[0].mxu0 %v1509
    %v1577 = vpop.f32.mrb[0].mxu0
    %v1578 = vadd.f32 0.0, %v1577
    %v1579 = vpop.f32.mrb[0].mxu0
    %1580 = vdwg.mxu0
    %v1581 = vmul.f32 %v1505, 0.35355338
    %v1582 = vmul.f32 %v1578, 0.35355338
    %v1583 = vadd.f32 %v1581, %v169
    %v1584 = vadd.f32 %v1582, %v173
    %v1585 = vsel %vm616, %v1583, -inf
    %1586 = vmax.xlane.f32.xlu0 %v1585
    %v1587 = vpop.xlane.xlu0 %1586
    %v1588 = vsel %vm616, %v1584, -inf
    %1589 = vmax.xlane.f32.xlu0 %v1588
    %v1590 = vpop.xlane.xlu0 %1589
    %v1591 = vsub.f32 %v1583, %v1587
    %v1592 = vsub.f32 %v1584, %v1590
    %v1593 = vmul.f32 %v1591, 1.442695
    %v1594 = vpow.pop %v1593
    %v1595 = vmul.f32 %v1592, 1.442695
    %v1596 = vpow.pop %v1595
    %v1597 = vsel %vm616, %v1594, 0.0
    %1598 = vadd.xlane.f32.xlu0 %v1597
    %v1599 = vpop.xlane.xlu0 %1598
    %v1600 = vsel %vm616, %v1596, 0.0
    %1601 = vadd.xlane.f32.xlu0 %v1600
    %v1602 = vpop.xlane.xlu0 %1601
    %v1603 = vrcp.pop %v1599
    %v1604 = vrcp.pop %v1602
    %v1605 = vmul.f32 %v1594, %v1603
    %v1606 = vmul.f32 %v1596, %v1604
    %v1607 = vmul.f32 %v450, %v195
    %v1608 = vmul.f32 %v455, %v195
    %v1610 = vsel %vm616, %v1605, 0
    %1612 = vmatprep.subr.mxu0 0.0
    %1613 = vmatpush1.msra.mxu0 %v1607
    %1614 = vmatprep.subr.mxu0 0.0
    %1615 = vmatpush1.msra.mxu0 0.0
    %1616 = vmatprep.subr.mxu0 0.0
    %1617 = vmatpush1.msra.mxu0 0.0
    %1618 = vmatprep.subr.mxu0 0.0
    %1619 = vmatpush1.msra.mxu0 0.0
    %1620 = vmatprep.subr.mxu0 0.0
    %1621 = vmatpush1.msra.mxu0 0.0
    %1622 = vmatprep.subr.mxu0 0.0
    %1623 = vmatpush1.msra.mxu0 0.0
    %1624 = vmatprep.subr.mxu0 0.0
    %1625 = vmatpush1.msra.mxu0 0.0
    %1626 = vmatprep.subr.mxu0 0.0
    %1627 = vmatpush1.msra.mxu0 0.0
    %1628 = vmatprep.subr.mxu0 0.0
    %1629 = vmatpush1.msra.mxu0 0.0
    %1630 = vmatprep.subr.mxu0 0.0
    %1631 = vmatpush1.msra.mxu0 0.0
    %1632 = vmatprep.subr.mxu0 0.0
    %1633 = vmatpush1.msra.mxu0 0.0
    %1634 = vmatprep.subr.mxu0 0.0
    %1635 = vmatpush1.msra.mxu0 0.0
    %1636 = vmatprep.subr.mxu0 0.0
    %1637 = vmatpush1.msra.mxu0 0.0
    %1638 = vmatprep.subr.mxu0 0.0
    %1639 = vmatpush1.msra.mxu0 0.0
    %1640 = vmatprep.subr.mxu0 0.0
    %1641 = vmatpush1.msra.mxu0 0.0
    %1642 = vmatprep.subr.mxu0 0.0
    %1643 = vmatpush1.msra.mxu0 0.0
    %1644 = vmatprep.subr.mxu0 0.0
    %1645 = vmatpush1.msra.mxu0 0.0
    %1646 = vmatprep.subr.mxu0 0.0
    %1647 = vmatpush1.msra.mxu0 0.0
    %1648 = vmatprep.subr.mxu0 0.0
    %1649 = vmatpush1.msra.mxu0 0.0
    %1650 = vmatprep.subr.mxu0 0.0
    %1651 = vmatpush1.msra.mxu0 0.0
    %1652 = vmatprep.subr.mxu0 0.0
    %1653 = vmatpush1.msra.mxu0 0.0
    %1654 = vmatprep.subr.mxu0 0.0
    %1655 = vmatpush1.msra.mxu0 0.0
    %1656 = vmatprep.subr.mxu0 0.0
    %1657 = vmatpush1.msra.mxu0 0.0
    %1658 = vmatprep.subr.mxu0 0.0
    %1659 = vmatpush1.msra.mxu0 0.0
    %1660 = vmatprep.subr.mxu0 0.0
    %1661 = vmatpush1.msra.mxu0 0.0
    %1662 = vmatprep.subr.mxu0 0.0
    %1663 = vmatpush1.msra.mxu0 0.0
    %1664 = vmatprep.subr.mxu0 0.0
    %1665 = vmatpush1.msra.mxu0 0.0
    %1666 = vmatprep.subr.mxu0 0.0
    %1667 = vmatpush1.msra.mxu0 0.0
    %1668 = vmatprep.subr.mxu0 0.0
    %1669 = vmatpush1.msra.mxu0 0.0
    %1670 = vmatprep.subr.mxu0 0.0
    %1671 = vmatpush1.msra.mxu0 0.0
    %1672 = vmatprep.subr.mxu0 0.0
    %1673 = vmatpush1.msra.mxu0 0.0
    %1674 = vmatprep.subr.mxu0 0.0
    %1675 = vmatpush1.msra.mxu0 0.0
    %1676 = vmatprep.mubr.f32.mxu0 0.0
    %1677 = vmatmul.mubr.f32.gmra.mrb[0].mxu0 %v1610
    %v1678 = vpop.f32.mrb[0].mxu0
    %v1679 = vadd.f32 0.0, %v1678
    %v1680 = vpop.f32.mrb[0].mxu0
    %1681 = vdwg.mxu0
    %v1683 = vsel %vm616, %v1606, 0
    %1685 = vmatprep.subr.mxu0 0.0
    %1686 = vmatpush1.msra.mxu0 %v1608
    %1687 = vmatprep.subr.mxu0 0.0
    %1688 = vmatpush1.msra.mxu0 0.0
    %1689 = vmatprep.subr.mxu0 0.0
    %1690 = vmatpush1.msra.mxu0 0.0
    %1691 = vmatprep.subr.mxu0 0.0
    %1692 = vmatpush1.msra.mxu0 0.0
    %1693 = vmatprep.subr.mxu0 0.0
    %1694 = vmatpush1.msra.mxu0 0.0
    %1695 = vmatprep.subr.mxu0 0.0
    %1696 = vmatpush1.msra.mxu0 0.0
    %1697 = vmatprep.subr.mxu0 0.0
    %1698 = vmatpush1.msra.mxu0 0.0
    %1699 = vmatprep.subr.mxu0 0.0
    %1700 = vmatpush1.msra.mxu0 0.0
    %1701 = vmatprep.subr.mxu0 0.0
    %1702 = vmatpush1.msra.mxu0 0.0
    %1703 = vmatprep.subr.mxu0 0.0
    %1704 = vmatpush1.msra.mxu0 0.0
    %1705 = vmatprep.subr.mxu0 0.0
    %1706 = vmatpush1.msra.mxu0 0.0
    %1707 = vmatprep.subr.mxu0 0.0
    %1708 = vmatpush1.msra.mxu0 0.0
    %1709 = vmatprep.subr.mxu0 0.0
    %1710 = vmatpush1.msra.mxu0 0.0
    %1711 = vmatprep.subr.mxu0 0.0
    %1712 = vmatpush1.msra.mxu0 0.0
    %1713 = vmatprep.subr.mxu0 0.0
    %1714 = vmatpush1.msra.mxu0 0.0
    %1715 = vmatprep.subr.mxu0 0.0
    %1716 = vmatpush1.msra.mxu0 0.0
    %1717 = vmatprep.subr.mxu0 0.0
    %1718 = vmatpush1.msra.mxu0 0.0
    %1719 = vmatprep.subr.mxu0 0.0
    %1720 = vmatpush1.msra.mxu0 0.0
    %1721 = vmatprep.subr.mxu0 0.0
    %1722 = vmatpush1.msra.mxu0 0.0
    %1723 = vmatprep.subr.mxu0 0.0
    %1724 = vmatpush1.msra.mxu0 0.0
    %1725 = vmatprep.subr.mxu0 0.0
    %1726 = vmatpush1.msra.mxu0 0.0
    %1727 = vmatprep.subr.mxu0 0.0
    %1728 = vmatpush1.msra.mxu0 0.0
    %1729 = vmatprep.subr.mxu0 0.0
    %1730 = vmatpush1.msra.mxu0 0.0
    %1731 = vmatprep.subr.mxu0 0.0
    %1732 = vmatpush1.msra.mxu0 0.0
    %1733 = vmatprep.subr.mxu0 0.0
    %1734 = vmatpush1.msra.mxu0 0.0
    %1735 = vmatprep.subr.mxu0 0.0
    %1736 = vmatpush1.msra.mxu0 0.0
    %1737 = vmatprep.subr.mxu0 0.0
    %1738 = vmatpush1.msra.mxu0 0.0
    %1739 = vmatprep.subr.mxu0 0.0
    %1740 = vmatpush1.msra.mxu0 0.0
    %1741 = vmatprep.subr.mxu0 0.0
    %1742 = vmatpush1.msra.mxu0 0.0
    %1743 = vmatprep.subr.mxu0 0.0
    %1744 = vmatpush1.msra.mxu0 0.0
    %1745 = vmatprep.subr.mxu0 0.0
    %1746 = vmatpush1.msra.mxu0 0.0
    %1747 = vmatprep.subr.mxu0 0.0
    %1748 = vmatpush1.msra.mxu0 0.0
    %1749 = vmatprep.mubr.f32.mxu0 0.0
    %1750 = vmatmul.mubr.f32.gmra.mrb[0].mxu0 %v1683
    %v1751 = vpop.f32.mrb[0].mxu0
    %v1752 = vadd.f32 0.0, %v1751
    %v1753 = vpop.f32.mrb[0].mxu0
    %1754 = vdwg.mxu0
    %v1755 = vadd.f32 %v1431, %v1679
    %v1756 = vadd.f32 %v1432, %v1752
    %v1757 = vlaneseq
    %v1758 = vshrl.u32 %v1757, 7
    %v1759 = vsub.s32 3, %v1758
    %v1760 = vrot.slane %v212, %v1759
    %v1762 = vsel %vm218, %v1755, 0
    %v1765 = vsel %vm218, %v1756, 0
    %1767 = vmatprep.subr.mxu0 0.0
    %1768 = vmatpush1.msra.mxu0 %v208
    %1769 = vmatprep.subr.mxu0 0.0
    %1770 = vmatpush1.msra.mxu0 %v209
    %1771 = vmatprep.subr.mxu0 0.0
    %1772 = vmatpush1.msra.mxu0 %v210
    %1773 = vmatprep.subr.mxu0 0.0
    %1774 = vmatpush1.msra.mxu0 %v211
    %1775 = vmatprep.subr.mxu0 0.0
    %1776 = vmatpush1.msra.mxu0 0.0
    %1777 = vmatprep.subr.mxu0 0.0
    %1778 = vmatpush1.msra.mxu0 0.0
    %1779 = vmatprep.subr.mxu0 0.0
    %1780 = vmatpush1.msra.mxu0 0.0
    %1781 = vmatprep.subr.mxu0 0.0
    %1782 = vmatpush1.msra.mxu0 0.0
    %1783 = vmatprep.subr.mxu0 0.0
    %1784 = vmatpush1.msra.mxu0 0.0
    %1785 = vmatprep.subr.mxu0 0.0
    %1786 = vmatpush1.msra.mxu0 0.0
    %1787 = vmatprep.subr.mxu0 0.0
    %1788 = vmatpush1.msra.mxu0 0.0
    %1789 = vmatprep.subr.mxu0 0.0
    %1790 = vmatpush1.msra.mxu0 0.0
    %1791 = vmatprep.subr.mxu0 0.0
    %1792 = vmatpush1.msra.mxu0 0.0
    %1793 = vmatprep.subr.mxu0 0.0
    %1794 = vmatpush1.msra.mxu0 0.0
    %1795 = vmatprep.subr.mxu0 0.0
    %1796 = vmatpush1.msra.mxu0 0.0
    %1797 = vmatprep.subr.mxu0 0.0
    %1798 = vmatpush1.msra.mxu0 0.0
    %1799 = vmatprep.subr.mxu0 0.0
    %1800 = vmatpush1.msra.mxu0 0.0
    %1801 = vmatprep.subr.mxu0 0.0
    %1802 = vmatpush1.msra.mxu0 0.0
    %1803 = vmatprep.subr.mxu0 0.0
    %1804 = vmatpush1.msra.mxu0 0.0
    %1805 = vmatprep.subr.mxu0 0.0
    %1806 = vmatpush1.msra.mxu0 0.0
    %1807 = vmatprep.subr.mxu0 0.0
    %1808 = vmatpush1.msra.mxu0 0.0
    %1809 = vmatprep.subr.mxu0 0.0
    %1810 = vmatpush1.msra.mxu0 0.0
    %1811 = vmatprep.subr.mxu0 0.0
    %1812 = vmatpush1.msra.mxu0 0.0
    %1813 = vmatprep.subr.mxu0 0.0
    %1814 = vmatpush1.msra.mxu0 0.0
    %1815 = vmatprep.subr.mxu0 0.0
    %1816 = vmatpush1.msra.mxu0 0.0
    %1817 = vmatprep.subr.mxu0 0.0
    %1818 = vmatpush1.msra.mxu0 0.0
    %1819 = vmatprep.subr.mxu0 0.0
    %1820 = vmatpush1.msra.mxu0 0.0
    %1821 = vmatprep.subr.mxu0 0.0
    %1822 = vmatpush1.msra.mxu0 0.0
    %1823 = vmatprep.subr.mxu0 0.0
    %1824 = vmatpush1.msra.mxu0 0.0
    %1825 = vmatprep.subr.mxu0 0.0
    %1826 = vmatpush1.msra.mxu0 0.0
    %1827 = vmatprep.subr.mxu0 0.0
    %1828 = vmatpush1.msra.mxu0 0.0
    %1829 = vmatprep.subr.mxu0 0.0
    %1830 = vmatpush1.msra.mxu0 0.0
    %1831 = vmatprep.mubr.f32.mxu0 0.0
    %1832 = vmatmul.mubr.f32.gmra.mrb[0].mxu0 %v1762
    %v1833 = vpop.f32.mrb[0].mxu0
    %v1834 = vadd.f32 %v1760, %v1833
    %v1835 = vpop.f32.mrb[0].mxu0
    %1836 = vmatprep.mubr.f32.mxu0 0.0
    %1837 = vmatmul.mubr.f32.gmra.mrb[0].mxu0 %v1765
    %v1838 = vpop.f32.mrb[0].mxu0
    %v1839 = vadd.f32 %v1760, %v1838
    %v1840 = vpop.f32.mrb[0].mxu0
    %1841 = vdwg.mxu0
    %v1842 = vadd.f32 %v139, %v1834
    %v1843 = vadd.f32 %v140, %v1839
    %v1844 = vsel %vm218, %v1842, 0.0
    %1845 = vadd.xlane.f32.xlu0 %v1844
    %v1846 = vpop.xlane.xlu0 %1845
    %v1847 = vsel %vm218, %v1843, 0.0
    %1848 = vadd.xlane.f32.xlu0 %v1847
    %v1849 = vpop.xlane.xlu0 %1848
    %v1850 = vrcp.pop 32.0
    %v1851 = vmul.f32 %v1846, %v1850
    %v1852 = vmul.f32 %v1849, %v1850
    %v1853 = vsub.f32 %v1842, %v1851
    %v1854 = vsub.f32 %v1843, %v1852
    %v1855 = vmul.f32 %v1853, %v1853
    %v1856 = vmul.f32 %v1854, %v1854
    %v1857 = vsel %vm218, %v1855, 0.0
    %1858 = vadd.xlane.f32.xlu0 %v1857
    %v1859 = vpop.xlane.xlu0 %1858
    %v1860 = vsel %vm218, %v1856, 0.0
    %1861 = vadd.xlane.f32.xlu0 %v1860
    %v1862 = vpop.xlane.xlu0 %1861
    %v1863 = vmul.f32 %v1859, %v1850
    %v1864 = vmul.f32 %v1862, %v1850
    %v1865 = vadd.f32 %v1863, 1e-05
    %v1866 = vadd.f32 %v1864, 1e-05
    %v1867 = vrsqrt.pop %v1865
    %v1868 = vrsqrt.pop %v1866
    %v1869 = vmul.f32 %v1853, %v1867
    %v1870 = vmul.f32 %v1854, %v1868
    %v1871 = vlaneseq
    %v1872 = vshrl.u32 %v1871, 7
    %v1873 = vsub.s32 4, %v1872
    %v1874 = vrot.slane %v212, %v1873
    %v1875 = vmul.f32 %v1869, %v1874
    %v1876 = vmul.f32 %v1870, %v1874
    %v1877 = vlaneseq
    %v1878 = vshrl.u32 %v1877, 7
    %v1879 = vsub.s32 5, %v1878
    %v1880 = vrot.slane %v212, %v1879
    %v1881 = vadd.f32 %v1875, %v1880
    %v1882 = vadd.f32 %v1876, %v1880
    %v1883 = vld [vmem:[%s5] sm:$0xff]
    %v1884 = vld [vmem:[%s5 + $0x8] sm:$0xff]
    %v1885 = vld [vmem:[%s5 + $0x10] sm:$0xff]
    %v1886 = vld [vmem:[%s5 + $0x18] sm:$0xff]
    %v1887 = vlaneseq
    %v1888 = vshrl.u32 %v1887, 7
    %v1889 = vsub.s32 6, %v1888
    %v1890 = vrot.slane %v212, %v1889
    %v1892 = vsel %vm218, %v1881, 0
    %v1895 = vsel %vm218, %v1882, 0
    %1897 = vmatprep.subr.mxu0 0.0
    %1898 = vmatpush1.msra.mxu0 %v1883
    %1899 = vmatprep.subr.mxu0 0.0
    %1900 = vmatpush1.msra.mxu0 %v1884
    %1901 = vmatprep.subr.mxu0 0.0
    %1902 = vmatpush1.msra.mxu0 %v1885
    %1903 = vmatprep.subr.mxu0 0.0
    %1904 = vmatpush1.msra.mxu0 %v1886
    %1905 = vmatprep.subr.mxu0 0.0
    %1906 = vmatpush1.msra.mxu0 0.0
    %1907 = vmatprep.subr.mxu0 0.0
    %1908 = vmatpush1.msra.mxu0 0.0
    %1909 = vmatprep.subr.mxu0 0.0
    %1910 = vmatpush1.msra.mxu0 0.0
    %1911 = vmatprep.subr.mxu0 0.0
    %1912 = vmatpush1.msra.mxu0 0.0
    %1913 = vmatprep.subr.mxu0 0.0
    %1914 = vmatpush1.msra.mxu0 0.0
    %1915 = vmatprep.subr.mxu0 0.0
    %1916 = vmatpush1.msra.mxu0 0.0
    %1917 = vmatprep.subr.mxu0 0.0
    %1918 = vmatpush1.msra.mxu0 0.0
    %1919 = vmatprep.subr.mxu0 0.0
    %1920 = vmatpush1.msra.mxu0 0.0
    %1921 = vmatprep.subr.mxu0 0.0
    %1922 = vmatpush1.msra.mxu0 0.0
    %1923 = vmatprep.subr.mxu0 0.0
    %1924 = vmatpush1.msra.mxu0 0.0
    %1925 = vmatprep.subr.mxu0 0.0
    %1926 = vmatpush1.msra.mxu0 0.0
    %1927 = vmatprep.subr.mxu0 0.0
    %1928 = vmatpush1.msra.mxu0 0.0
    %1929 = vmatprep.subr.mxu0 0.0
    %1930 = vmatpush1.msra.mxu0 0.0
    %1931 = vmatprep.subr.mxu0 0.0
    %1932 = vmatpush1.msra.mxu0 0.0
    %1933 = vmatprep.subr.mxu0 0.0
    %1934 = vmatpush1.msra.mxu0 0.0
    %1935 = vmatprep.subr.mxu0 0.0
    %1936 = vmatpush1.msra.mxu0 0.0
    %1937 = vmatprep.subr.mxu0 0.0
    %1938 = vmatpush1.msra.mxu0 0.0
    %1939 = vmatprep.subr.mxu0 0.0
    %1940 = vmatpush1.msra.mxu0 0.0
    %1941 = vmatprep.subr.mxu0 0.0
    %1942 = vmatpush1.msra.mxu0 0.0
    %1943 = vmatprep.subr.mxu0 0.0
    %1944 = vmatpush1.msra.mxu0 0.0
    %1945 = vmatprep.subr.mxu0 0.0
    %1946 = vmatpush1.msra.mxu0 0.0
    %1947 = vmatprep.subr.mxu0 0.0
    %1948 = vmatpush1.msra.mxu0 0.0
    %1949 = vmatprep.subr.mxu0 0.0
    %1950 = vmatpush1.msra.mxu0 0.0
    %1951 = vmatprep.subr.mxu0 0.0
    %1952 = vmatpush1.msra.mxu0 0.0
    %1953 = vmatprep.subr.mxu0 0.0
    %1954 = vmatpush1.msra.mxu0 0.0
    %1955 = vmatprep.subr.mxu0 0.0
    %1956 = vmatpush1.msra.mxu0 0.0
    %1957 = vmatprep.subr.mxu0 0.0
    %1958 = vmatpush1.msra.mxu0 0.0
    %1959 = vmatprep.subr.mxu0 0.0
    %1960 = vmatpush1.msra.mxu0 0.0
    %1961 = vmatprep.mubr.f32.mxu0 0.0
    %1962 = vmatmul.mubr.f32.gmra.mrb[0].mxu0 %v1892
    %v1963 = vpop.f32.mrb[0].mxu0
    %v1964 = vadd.f32 %v1890, %v1963
    %v1965 = vpop.f32.mrb[0].mxu0
    %1966 = vmatprep.mubr.f32.mxu0 0.0
    %1967 = vmatmul.mubr.f32.gmra.mrb[0].mxu0 %v1895
    %v1968 = vpop.f32.mrb[0].mxu0
    %v1969 = vadd.f32 %v1890, %v1968
    %v1970 = vpop.f32.mrb[0].mxu0
    %1971 = vdwg.mxu0
    %v1972 = vmul.f32 %v1964, 0.5
    %v1973 = vmul.f32 %v1969, 0.5
    %v1974 = vmul.f32 %v1964, 0.044715
    %v1975 = vmul.f32 %v1969, 0.044715
    %v1976 = vmul.f32 %v1974, %v1964
    %v1977 = vmul.f32 %v1975, %v1969
    %v1978 = vmul.f32 %v1976, %v1964
    %v1979 = vmul.f32 %v1977, %v1969
    %v1980 = vadd.f32 %v1964, %v1978
    %v1981 = vadd.f32 %v1969, %v1979
    %v1982 = vmul.f32 %v1980, 0.7978846
    %v1983 = vmul.f32 %v1981, 0.7978846
    %v1984 = vtanh.pop %v1982
    %v1985 = vtanh.pop %v1983
    %v1986 = vadd.f32 %v1984, 1.0
    %v1987 = vadd.f32 %v1985, 1.0
    %v1988 = vmul.f32 %v1972, %v1986
    %v1989 = vmul.f32 %v1973, %v1987
    %v1990 = vld [vmem:[%s6] sm:$0xff]
    %v1991 = vld [vmem:[%s6 + $0x8] sm:$0xff]
    %v1992 = vld [vmem:[%s6 + $0x10] sm:$0xff]
    %v1993 = vld [vmem:[%s6 + $0x18] sm:$0xff]
    %v1994 = vld [vmem:[%s6 + $0x20] sm:$0xff]
    %v1995 = vld [vmem:[%s6 + $0x28] sm:$0xff]
    %v1996 = vld [vmem:[%s6 + $0x30] sm:$0xff]
    %v1997 = vld [vmem:[%s6 + $0x38] sm:$0xff]
    %v1998 = vlaneseq
    %v1999 = vshrl.u32 %v1998, 7
    %v2000 = vsub.s32 7, %v1999
    %v2001 = vrot.slane %v212, %v2000
    %vm2002 = vcmask 523264
    %v2004 = vsel %vm2002, %v1988, 0
    %v2007 = vsel %vm2002, %v1989, 0
    %2009 = vmatprep.subr.mxu0 0.0
    %2010 = vmatpush1.msra.mxu0 %v1990
    %2011 = vmatprep.subr.mxu0 0.0
    %2012 = vmatpush1.msra.mxu0 %v1991
    %2013 = vmatprep.subr.mxu0 0.0
    %2014 = vmatpush1.msra.mxu0 %v1992
    %2015 = vmatprep.subr.mxu0 0.0
    %2016 = vmatpush1.msra.mxu0 %v1993
    %2017 = vmatprep.subr.mxu0 0.0
    %2018 = vmatpush1.msra.mxu0 %v1994
    %2019 = vmatprep.subr.mxu0 0.0
    %2020 = vmatpush1.msra.mxu0 %v1995
    %2021 = vmatprep.subr.mxu0 0.0
    %2022 = vmatpush1.msra.mxu0 %v1996
    %2023 = vmatprep.subr.mxu0 0.0
    %2024 = vmatpush1.msra.mxu0 %v1997
    %2025 = vmatprep.subr.mxu0 0.0
    %2026 = vmatpush1.msra.mxu0 0.0
    %2027 = vmatprep.subr.mxu0 0.0
    %2028 = vmatpush1.msra.mxu0 0.0
    %2029 = vmatprep.subr.mxu0 0.0
    %2030 = vmatpush1.msra.mxu0 0.0
    %2031 = vmatprep.subr.mxu0 0.0
    %2032 = vmatpush1.msra.mxu0 0.0
    %2033 = vmatprep.subr.mxu0 0.0
    %2034 = vmatpush1.msra.mxu0 0.0
    %2035 = vmatprep.subr.mxu0 0.0
    %2036 = vmatpush1.msra.mxu0 0.0
    %2037 = vmatprep.subr.mxu0 0.0
    %2038 = vmatpush1.msra.mxu0 0.0
    %2039 = vmatprep.subr.mxu0 0.0
    %2040 = vmatpush1.msra.mxu0 0.0
    %2041 = vmatprep.subr.mxu0 0.0
    %2042 = vmatpush1.msra.mxu0 0.0
    %2043 = vmatprep.subr.mxu0 0.0
    %2044 = vmatpush1.msra.mxu0 0.0
    %2045 = vmatprep.subr.mxu0 0.0
    %2046 = vmatpush1.msra.mxu0 0.0
    %2047 = vmatprep.subr.mxu0 0.0
    %2048 = vmatpush1.msra.mxu0 0.0
    %2049 = vmatprep.subr.mxu0 0.0
    %2050 = vmatpush1.msra.mxu0 0.0
    %2051 = vmatprep.subr.mxu0 0.0
    %2052 = vmatpush1.msra.mxu0 0.0
    %2053 = vmatprep.subr.mxu0 0.0
    %2054 = vmatpush1.msra.mxu0 0.0
    %2055 = vmatprep.subr.mxu0 0.0
    %2056 = vmatpush1.msra.mxu0 0.0
    %2057 = vmatprep.subr.mxu0 0.0
    %2058 = vmatpush1.msra.mxu0 0.0
    %2059 = vmatprep.subr.mxu0 0.0
    %2060 = vmatpush1.msra.mxu0 0.0
    %2061 = vmatprep.subr.mxu0 0.0
    %2062 = vmatpush1.msra.mxu0 0.0
    %2063 = vmatprep.subr.mxu0 0.0
    %2064 = vmatpush1.msra.mxu0 0.0
    %2065 = vmatprep.subr.mxu0 0.0
    %2066 = vmatpush1.msra.mxu0 0.0
    %2067 = vmatprep.subr.mxu0 0.0
    %2068 = vmatpush1.msra.mxu0 0.0
    %2069 = vmatprep.subr.mxu0 0.0
    %2070 = vmatpush1.msra.mxu0 0.0
    %2071 = vmatprep.subr.mxu0 0.0
    %2072 = vmatpush1.msra.mxu0 0.0
    %2073 = vmatprep.mubr.f32.mxu0 0.0
    %2074 = vmatmul.mubr.f32.gmra.mrb[0].mxu0 %v2004
    %v2075 = vpop.f32.mrb[0].mxu0
    %v2076 = vadd.f32 %v2001, %v2075
    %v2077 = vpop.f32.mrb[0].mxu0
    %2078 = vmatprep.mubr.f32.mxu0 0.0
    %2079 = vmatmul.mubr.f32.gmra.mrb[0].mxu0 %v2007
    %v2080 = vpop.f32.mrb[0].mxu0
    %v2081 = vadd.f32 %v2001, %v2080
    %v2082 = vpop.f32.mrb[0].mxu0
    %2083 = vdwg.mxu0
    %v2084 = vadd.f32 %v1881, %v2076
    %v2085 = vadd.f32 %v1882, %v2081
    %v2086 = vsel %vm218, %v2084, 0.0
    %2087 = vadd.xlane.f32.xlu0 %v2086
    %v2088 = vpop.xlane.xlu0 %2087
    %v2089 = vsel %vm218, %v2085, 0.0
    %2090 = vadd.xlane.f32.xlu0 %v2089
    %v2091 = vpop.xlane.xlu0 %2090
    %v2092 = vmul.f32 %v2088, %v1850
    %v2093 = vmul.f32 %v2091, %v1850
    %v2094 = vsub.f32 %v2084, %v2092
    %v2095 = vsub.f32 %v2085, %v2093
    %v2096 = vmul.f32 %v2094, %v2094
    %v2097 = vmul.f32 %v2095, %v2095
    %v2098 = vsel %vm218, %v2096, 0.0
    %2099 = vadd.xlane.f32.xlu0 %v2098
    %v2100 = vpop.xlane.xlu0 %2099
    %v2101 = vsel %vm218, %v2097, 0.0
    %2102 = vadd.xlane.f32.xlu0 %v2101
    %v2103 = vpop.xlane.xlu0 %2102
    %v2104 = vmul.f32 %v2100, %v1850
    %v2105 = vmul.f32 %v2103, %v1850
    %v2106 = vadd.f32 %v2104, 1e-05
    %v2107 = vadd.f32 %v2105, 1e-05
    %v2108 = vrsqrt.pop %v2106
    %v2109 = vrsqrt.pop %v2107
    %v2110 = vmul.f32 %v2094, %v2108
    %v2111 = vmul.f32 %v2095, %v2109
    %v2112 = vlaneseq
    %v2113 = vshrl.u32 %v2112, 7
    %v2114 = vsub.s32 0, %v2113
    %v2115 = vrot.slane %v213, %v2114
    %v2116 = vmul.f32 %v2110, %v2115
    %v2117 = vmul.f32 %v2111, %v2115
    %v2118 = vlaneseq
    %v2119 = vshrl.u32 %v2118, 7
    %v2120 = vsub.s32 1, %v2119
    %v2121 = vrot.slane %v213, %v2120
    %v2122 = vadd.f32 %v2116, %v2121
    %v2123 = vadd.f32 %v2117, %v2121
    %s2124 = scalar_lea.vmem %s4, 128
    %v2125 = vld [vmem:[%s2124] sm:$0xff]
    %v2126 = vld [vmem:[%s2124 + $0x8] sm:$0xff]
    %v2127 = vld [vmem:[%s2124 + $0x10] sm:$0xff]
    %v2128 = vld [vmem:[%s2124 + $0x18] sm:$0xff]
    %v2129 = vld [vmem:[%s2124 + $0x20] sm:$0xff]
    %v2130 = vld [vmem:[%s2124 + $0x28] sm:$0xff]
    %v2131 = vld [vmem:[%s2124 + $0x30] sm:$0xff]
    %v2132 = vld [vmem:[%s2124 + $0x38] sm:$0xff]
    %v2133 = vld [vmem:[%s2124 + $0x40] sm:$0xff]
    %v2134 = vld [vmem:[%s2124 + $0x48] sm:$0xff]
    %v2135 = vld [vmem:[%s2124 + $0x50] sm:$0xff]
    %v2136 = vld [vmem:[%s2124 + $0x58] sm:$0xff]
    %v2137 = vld [vmem:[%s2124 + $0x60] sm:$0xff]
    %v2138 = vld [vmem:[%s2124 + $0x68] sm:$0xff]
    %v2139 = vld [vmem:[%s2124 + $0x70] sm:$0xff]
    %v2140 = vld [vmem:[%s2124 + $0x78] sm:$0xff]
    %s2141 = scalar_lea.vmem %s7, 16
    %v2142 = vld [vmem:[%s2141] sm:$0xff]
    %v2143 = vld [vmem:[%s2141 + $0x8] sm:$0x3]
    %v2144 = vlaneseq
    %v2145 = vshrl.u32 %v2144, 7
    %v2146 = vsub.s32 0, %v2145
    %v2147 = vrot.slane %v2142, %v2146
    %v2149 = vsel %vm218, %v2122, 0
    %v2152 = vsel %vm218, %v2123, 0
    %2154 = vmatprep.subr.mxu0 0.0
    %2155 = vmatpush1.msra.mxu0 %v2125
    %2156 = vmatprep.subr.mxu0 0.0
    %2157 = vmatpush1.msra.mxu0 %v2126
    %2158 = vmatprep.subr.mxu0 0.0
    %2159 = vmatpush1.msra.mxu0 %v2127
    %2160 = vmatprep.subr.mxu0 0.0
    %2161 = vmatpush1.msra.mxu0 %v2128
    %2162 = vmatprep.subr.mxu0 0.0
    %2163 = vmatpush1.msra.mxu0 0.0
    %2164 = vmatprep.subr.mxu0 0.0
    %2165 = vmatpush1.msra.mxu0 0.0
    %2166 = vmatprep.subr.mxu0 0.0
    %2167 = vmatpush1.msra.mxu0 0.0
    %2168 = vmatprep.subr.mxu0 0.0
    %2169 = vmatpush1.msra.mxu0 0.0
    %2170 = vmatprep.subr.mxu0 0.0
    %2171 = vmatpush1.msra.mxu0 0.0
    %2172 = vmatprep.subr.mxu0 0.0
    %2173 = vmatpush1.msra.mxu0 0.0
    %2174 = vmatprep.subr.mxu0 0.0
    %2175 = vmatpush1.msra.mxu0 0.0
    %2176 = vmatprep.subr.mxu0 0.0
    %2177 = vmatpush1.msra.mxu0 0.0
    %2178 = vmatprep.subr.mxu0 0.0
    %2179 = vmatpush1.msra.mxu0 0.0
    %2180 = vmatprep.subr.mxu0 0.0
    %2181 = vmatpush1.msra.mxu0 0.0
    %2182 = vmatprep.subr.mxu0 0.0
    %2183 = vmatpush1.msra.mxu0 0.0
    %2184 = vmatprep.subr.mxu0 0.0
    %2185 = vmatpush1.msra.mxu0 0.0
    %2186 = vmatprep.subr.mxu0 0.0
    %2187 = vmatpush1.msra.mxu0 0.0
    %2188 = vmatprep.subr.mxu0 0.0
    %2189 = vmatpush1.msra.mxu0 0.0
    %2190 = vmatprep.subr.mxu0 0.0
    %2191 = vmatpush1.msra.mxu0 0.0
    %2192 = vmatprep.subr.mxu0 0.0
    %2193 = vmatpush1.msra.mxu0 0.0
    %2194 = vmatprep.subr.mxu0 0.0
    %2195 = vmatpush1.msra.mxu0 0.0
    %2196 = vmatprep.subr.mxu0 0.0
    %2197 = vmatpush1.msra.mxu0 0.0
    %2198 = vmatprep.subr.mxu0 0.0
    %2199 = vmatpush1.msra.mxu0 0.0
    %2200 = vmatprep.subr.mxu0 0.0
    %2201 = vmatpush1.msra.mxu0 0.0
    %2202 = vmatprep.subr.mxu0 0.0
    %2203 = vmatpush1.msra.mxu0 0.0
    %2204 = vmatprep.subr.mxu0 0.0
    %2205 = vmatpush1.msra.mxu0 0.0
    %2206 = vmatprep.subr.mxu0 0.0
    %2207 = vmatpush1.msra.mxu0 0.0
    %2208 = vmatprep.subr.mxu0 0.0
    %2209 = vmatpush1.msra.mxu0 0.0
    %2210 = vmatprep.subr.mxu0 0.0
    %2211 = vmatpush1.msra.mxu0 0.0
    %2212 = vmatprep.subr.mxu0 0.0
    %2213 = vmatpush1.msra.mxu0 0.0
    %2214 = vmatprep.subr.mxu0 0.0
    %2215 = vmatpush1.msra.mxu0 0.0
    %2216 = vmatprep.subr.mxu0 0.0
    %2217 = vmatpush1.msra.mxu0 0.0
    %2218 = vmatprep.mubr.f32.mxu0 0.0
    %2219 = vmatmul.mubr.f32.gmra.mrb[0].mxu0 %v2149
    %v2220 = vpop.f32.mrb[0].mxu0
    %v2221 = vadd.f32 %v2147, %v2220
    %v2222 = vpop.f32.mrb[0].mxu0
    %2223 = vmatprep.mubr.f32.mxu0 0.0
    %2224 = vmatmul.mubr.f32.gmra.mrb[0].mxu0 %v2152
    %v2225 = vpop.f32.mrb[0].mxu0
    %v2226 = vadd.f32 %v2147, %v2225
    %v2227 = vpop.f32.mrb[0].mxu0
    %2228 = vdwg.mxu0
    %v2229 = vlaneseq
    %v2230 = vshrl.u32 %v2229, 7
    %v2231 = vsub.s32 1, %v2230
    %v2232 = vrot.slane %v2142, %v2231
    %2233 = vmatprep.subr.mxu0 0.0
    %2234 = vmatpush1.msra.mxu0 %v2129
    %2235 = vmatprep.subr.mxu0 0.0
    %2236 = vmatpush1.msra.mxu0 %v2130
    %2237 = vmatprep.subr.mxu0 0.0
    %2238 = vmatpush1.msra.mxu0 %v2131
    %2239 = vmatprep.subr.mxu0 0.0
    %2240 = vmatpush1.msra.mxu0 %v2132
    %2241 = vmatprep.subr.mxu0 0.0
    %2242 = vmatpush1.msra.mxu0 0.0
    %2243 = vmatprep.subr.mxu0 0.0
    %2244 = vmatpush1.msra.mxu0 0.0
    %2245 = vmatprep.subr.mxu0 0.0
    %2246 = vmatpush1.msra.mxu0 0.0
    %2247 = vmatprep.subr.mxu0 0.0
    %2248 = vmatpush1.msra.mxu0 0.0
    %2249 = vmatprep.subr.mxu0 0.0
    %2250 = vmatpush1.msra.mxu0 0.0
    %2251 = vmatprep.subr.mxu0 0.0
    %2252 = vmatpush1.msra.mxu0 0.0
    %2253 = vmatprep.subr.mxu0 0.0
    %2254 = vmatpush1.msra.mxu0 0.0
    %2255 = vmatprep.subr.mxu0 0.0
    %2256 = vmatpush1.msra.mxu0 0.0
    %2257 = vmatprep.subr.mxu0 0.0
    %2258 = vmatpush1.msra.mxu0 0.0
    %2259 = vmatprep.subr.mxu0 0.0
    %2260 = vmatpush1.msra.mxu0 0.0
    %2261 = vmatprep.subr.mxu0 0.0
    %2262 = vmatpush1.msra.mxu0 0.0
    %2263 = vmatprep.subr.mxu0 0.0
    %2264 = vmatpush1.msra.mxu0 0.0
    %2265 = vmatprep.subr.mxu0 0.0
    %2266 = vmatpush1.msra.mxu0 0.0
    %2267 = vmatprep.subr.mxu0 0.0
    %2268 = vmatpush1.msra.mxu0 0.0
    %2269 = vmatprep.subr.mxu0 0.0
    %2270 = vmatpush1.msra.mxu0 0.0
    %2271 = vmatprep.subr.mxu0 0.0
    %2272 = vmatpush1.msra.mxu0 0.0
    %2273 = vmatprep.subr.mxu0 0.0
    %2274 = vmatpush1.msra.mxu0 0.0
    %2275 = vmatprep.subr.mxu0 0.0
    %2276 = vmatpush1.msra.mxu0 0.0
    %2277 = vmatprep.subr.mxu0 0.0
    %2278 = vmatpush1.msra.mxu0 0.0
    %2279 = vmatprep.subr.mxu0 0.0
    %2280 = vmatpush1.msra.mxu0 0.0
    %2281 = vmatprep.subr.mxu0 0.0
    %2282 = vmatpush1.msra.mxu0 0.0
    %2283 = vmatprep.subr.mxu0 0.0
    %2284 = vmatpush1.msra.mxu0 0.0
    %2285 = vmatprep.subr.mxu0 0.0
    %2286 = vmatpush1.msra.mxu0 0.0
    %2287 = vmatprep.subr.mxu0 0.0
    %2288 = vmatpush1.msra.mxu0 0.0
    %2289 = vmatprep.subr.mxu0 0.0
    %2290 = vmatpush1.msra.mxu0 0.0
    %2291 = vmatprep.subr.mxu0 0.0
    %2292 = vmatpush1.msra.mxu0 0.0
    %2293 = vmatprep.subr.mxu0 0.0
    %2294 = vmatpush1.msra.mxu0 0.0
    %2295 = vmatprep.subr.mxu0 0.0
    %2296 = vmatpush1.msra.mxu0 0.0
    %2297 = vmatprep.mubr.f32.mxu0 0.0
    %2298 = vmatmul.mubr.f32.gmra.mrb[0].mxu0 %v2149
    %v2299 = vpop.f32.mrb[0].mxu0
    %v2300 = vadd.f32 %v2232, %v2299
    %v2301 = vpop.f32.mrb[0].mxu0
    %2302 = vmatprep.mubr.f32.mxu0 0.0
    %2303 = vmatmul.mubr.f32.gmra.mrb[0].mxu0 %v2152
    %v2304 = vpop.f32.mrb[0].mxu0
    %v2305 = vadd.f32 %v2232, %v2304
    %v2306 = vpop.f32.mrb[0].mxu0
    %2307 = vdwg.mxu0
    %v2308 = vlaneseq
    %v2309 = vshrl.u32 %v2308, 7
    %v2310 = vsub.s32 2, %v2309
    %v2311 = vrot.slane %v2142, %v2310
    %2312 = vmatprep.subr.mxu0 0.0
    %2313 = vmatpush1.msra.mxu0 %v2133
    %2314 = vmatprep.subr.mxu0 0.0
    %2315 = vmatpush1.msra.mxu0 %v2134
    %2316 = vmatprep.subr.mxu0 0.0
    %2317 = vmatpush1.msra.mxu0 %v2135
    %2318 = vmatprep.subr.mxu0 0.0
    %2319 = vmatpush1.msra.mxu0 %v2136
    %2320 = vmatprep.subr.mxu0 0.0
    %2321 = vmatpush1.msra.mxu0 0.0
    %2322 = vmatprep.subr.mxu0 0.0
    %2323 = vmatpush1.msra.mxu0 0.0
    %2324 = vmatprep.subr.mxu0 0.0
    %2325 = vmatpush1.msra.mxu0 0.0
    %2326 = vmatprep.subr.mxu0 0.0
    %2327 = vmatpush1.msra.mxu0 0.0
    %2328 = vmatprep.subr.mxu0 0.0
    %2329 = vmatpush1.msra.mxu0 0.0
    %2330 = vmatprep.subr.mxu0 0.0
    %2331 = vmatpush1.msra.mxu0 0.0
    %2332 = vmatprep.subr.mxu0 0.0
    %2333 = vmatpush1.msra.mxu0 0.0
    %2334 = vmatprep.subr.mxu0 0.0
    %2335 = vmatpush1.msra.mxu0 0.0
    %2336 = vmatprep.subr.mxu0 0.0
    %2337 = vmatpush1.msra.mxu0 0.0
    %2338 = vmatprep.subr.mxu0 0.0
    %2339 = vmatpush1.msra.mxu0 0.0
    %2340 = vmatprep.subr.mxu0 0.0
    %2341 = vmatpush1.msra.mxu0 0.0
    %2342 = vmatprep.subr.mxu0 0.0
    %2343 = vmatpush1.msra.mxu0 0.0
    %2344 = vmatprep.subr.mxu0 0.0
    %2345 = vmatpush1.msra.mxu0 0.0
    %2346 = vmatprep.subr.mxu0 0.0
    %2347 = vmatpush1.msra.mxu0 0.0
    %2348 = vmatprep.subr.mxu0 0.0
    %2349 = vmatpush1.msra.mxu0 0.0
    %2350 = vmatprep.subr.mxu0 0.0
    %2351 = vmatpush1.msra.mxu0 0.0
    %2352 = vmatprep.subr.mxu0 0.0
    %2353 = vmatpush1.msra.mxu0 0.0
    %2354 = vmatprep.subr.mxu0 0.0
    %2355 = vmatpush1.msra.mxu0 0.0
    %2356 = vmatprep.subr.mxu0 0.0
    %2357 = vmatpush1.msra.mxu0 0.0
    %2358 = vmatprep.subr.mxu0 0.0
    %2359 = vmatpush1.msra.mxu0 0.0
    %2360 = vmatprep.subr.mxu0 0.0
    %2361 = vmatpush1.msra.mxu0 0.0
    %2362 = vmatprep.subr.mxu0 0.0
    %2363 = vmatpush1.msra.mxu0 0.0
    %2364 = vmatprep.subr.mxu0 0.0
    %2365 = vmatpush1.msra.mxu0 0.0
    %2366 = vmatprep.subr.mxu0 0.0
    %2367 = vmatpush1.msra.mxu0 0.0
    %2368 = vmatprep.subr.mxu0 0.0
    %2369 = vmatpush1.msra.mxu0 0.0
    %2370 = vmatprep.subr.mxu0 0.0
    %2371 = vmatpush1.msra.mxu0 0.0
    %2372 = vmatprep.subr.mxu0 0.0
    %2373 = vmatpush1.msra.mxu0 0.0
    %2374 = vmatprep.subr.mxu0 0.0
    %2375 = vmatpush1.msra.mxu0 0.0
    %2376 = vmatprep.mubr.f32.mxu0 0.0
    %2377 = vmatmul.mubr.f32.gmra.mrb[0].mxu0 %v2149
    %v2378 = vpop.f32.mrb[0].mxu0
    %v2379 = vadd.f32 %v2311, %v2378
    %v2380 = vpop.f32.mrb[0].mxu0
    %2381 = vmatprep.mubr.f32.mxu0 0.0
    %2382 = vmatmul.mubr.f32.gmra.mrb[0].mxu0 %v2152
    %v2383 = vpop.f32.mrb[0].mxu0
    %v2384 = vadd.f32 %v2311, %v2383
    %v2385 = vpop.f32.mrb[0].mxu0
    %2386 = vdwg.mxu0
    %v2387 = vmul.f32 %v2221, %v180
    %v2388 = vmul.f32 %v2226, %v180
    %v2390 = vsel %vm218, %v2387, 0
    %v2393 = vsel %vm218, %v2300, 0
    %2395 = vmatprep.subr.mxu0 0.0
    %2396 = vmatpush1.xpose.msra.mxu0 %v2393
    %2397 = vmatprep.subr.mxu0 0.0
    %2398 = vmatpush1.xpose.msra.mxu0 0.0
    %2399 = vmatprep.subr.mxu0 0.0
    %2400 = vmatpush1.xpose.msra.mxu0 0.0
    %2401 = vmatprep.subr.mxu0 0.0
    %2402 = vmatpush1.xpose.msra.mxu0 0.0
    %2403 = vmatprep.subr.mxu0 0.0
    %2404 = vmatpush1.xpose.msra.mxu0 0.0
    %2405 = vmatprep.subr.mxu0 0.0
    %2406 = vmatpush1.xpose.msra.mxu0 0.0
    %2407 = vmatprep.subr.mxu0 0.0
    %2408 = vmatpush1.xpose.msra.mxu0 0.0
    %2409 = vmatprep.subr.mxu0 0.0
    %2410 = vmatpush1.xpose.msra.mxu0 0.0
    %2411 = vmatprep.subr.mxu0 0.0
    %2412 = vmatpush1.xpose.msra.mxu0 0.0
    %2413 = vmatprep.subr.mxu0 0.0
    %2414 = vmatpush1.xpose.msra.mxu0 0.0
    %2415 = vmatprep.subr.mxu0 0.0
    %2416 = vmatpush1.xpose.msra.mxu0 0.0
    %2417 = vmatprep.subr.mxu0 0.0
    %2418 = vmatpush1.xpose.msra.mxu0 0.0
    %2419 = vmatprep.subr.mxu0 0.0
    %2420 = vmatpush1.xpose.msra.mxu0 0.0
    %2421 = vmatprep.subr.mxu0 0.0
    %2422 = vmatpush1.xpose.msra.mxu0 0.0
    %2423 = vmatprep.subr.mxu0 0.0
    %2424 = vmatpush1.xpose.msra.mxu0 0.0
    %2425 = vmatprep.subr.mxu0 0.0
    %2426 = vmatpush1.xpose.msra.mxu0 0.0
    %2427 = vmatprep.subr.mxu0 0.0
    %2428 = vmatpush1.xpose.msra.mxu0 0.0
    %2429 = vmatprep.subr.mxu0 0.0
    %2430 = vmatpush1.xpose.msra.mxu0 0.0
    %2431 = vmatprep.subr.mxu0 0.0
    %2432 = vmatpush1.xpose.msra.mxu0 0.0
    %2433 = vmatprep.subr.mxu0 0.0
    %2434 = vmatpush1.xpose.msra.mxu0 0.0
    %2435 = vmatprep.subr.mxu0 0.0
    %2436 = vmatpush1.xpose.msra.mxu0 0.0
    %2437 = vmatprep.subr.mxu0 0.0
    %2438 = vmatpush1.xpose.msra.mxu0 0.0
    %2439 = vmatprep.subr.mxu0 0.0
    %2440 = vmatpush1.xpose.msra.mxu0 0.0
    %2441 = vmatprep.subr.mxu0 0.0
    %2442 = vmatpush1.xpose.msra.mxu0 0.0
    %2443 = vmatprep.subr.mxu0 0.0
    %2444 = vmatpush1.xpose.msra.mxu0 0.0
    %2445 = vmatprep.subr.mxu0 0.0
    %2446 = vmatpush1.xpose.msra.mxu0 0.0
    %2447 = vmatprep.subr.mxu0 0.0
    %2448 = vmatpush1.xpose.msra.mxu0 0.0
    %2449 = vmatprep.subr.mxu0 0.0
    %2450 = vmatpush1.xpose.msra.mxu0 0.0
    %2451 = vmatprep.subr.mxu0 0.0
    %2452 = vmatpush1.xpose.msra.mxu0 0.0
    %2453 = vmatprep.subr.mxu0 0.0
    %2454 = vmatpush1.xpose.msra.mxu0 0.0
    %2455 = vmatprep.subr.mxu0 0.0
    %2456 = vmatpush1.xpose.msra.mxu0 0.0
    %2457 = vmatprep.subr.mxu0 0.0
    %2458 = vmatpush1.xpose.msra.mxu0 0.0
    %2459 = vmatprep.mubr.f32.mxu0 0.0
    %2460 = vmatmul.mubr.f32.gmra.mrb[0].mxu0 %v2390
    %v2461 = vpop.f32.mrb[0].mxu0
    %v2462 = vadd.f32 0.0, %v2461
    %v2463 = vpop.f32.mrb[0].mxu0
    %2464 = vdwg.mxu0
    %v2466 = vsel %vm218, %v2388, 0
    %v2469 = vsel %vm218, %v2305, 0
    %2471 = vmatprep.subr.mxu0 0.0
    %2472 = vmatpush1.xpose.msra.mxu0 %v2469
    %2473 = vmatprep.subr.mxu0 0.0
    %2474 = vmatpush1.xpose.msra.mxu0 0.0
    %2475 = vmatprep.subr.mxu0 0.0
    %2476 = vmatpush1.xpose.msra.mxu0 0.0
    %2477 = vmatprep.subr.mxu0 0.0
    %2478 = vmatpush1.xpose.msra.mxu0 0.0
    %2479 = vmatprep.subr.mxu0 0.0
    %2480 = vmatpush1.xpose.msra.mxu0 0.0
    %2481 = vmatprep.subr.mxu0 0.0
    %2482 = vmatpush1.xpose.msra.mxu0 0.0
    %2483 = vmatprep.subr.mxu0 0.0
    %2484 = vmatpush1.xpose.msra.mxu0 0.0
    %2485 = vmatprep.subr.mxu0 0.0
    %2486 = vmatpush1.xpose.msra.mxu0 0.0
    %2487 = vmatprep.subr.mxu0 0.0
    %2488 = vmatpush1.xpose.msra.mxu0 0.0
    %2489 = vmatprep.subr.mxu0 0.0
    %2490 = vmatpush1.xpose.msra.mxu0 0.0
    %2491 = vmatprep.subr.mxu0 0.0
    %2492 = vmatpush1.xpose.msra.mxu0 0.0
    %2493 = vmatprep.subr.mxu0 0.0
    %2494 = vmatpush1.xpose.msra.mxu0 0.0
    %2495 = vmatprep.subr.mxu0 0.0
    %2496 = vmatpush1.xpose.msra.mxu0 0.0
    %2497 = vmatprep.subr.mxu0 0.0
    %2498 = vmatpush1.xpose.msra.mxu0 0.0
    %2499 = vmatprep.subr.mxu0 0.0
    %2500 = vmatpush1.xpose.msra.mxu0 0.0
    %2501 = vmatprep.subr.mxu0 0.0
    %2502 = vmatpush1.xpose.msra.mxu0 0.0
    %2503 = vmatprep.subr.mxu0 0.0
    %2504 = vmatpush1.xpose.msra.mxu0 0.0
    %2505 = vmatprep.subr.mxu0 0.0
    %2506 = vmatpush1.xpose.msra.mxu0 0.0
    %2507 = vmatprep.subr.mxu0 0.0
    %2508 = vmatpush1.xpose.msra.mxu0 0.0
    %2509 = vmatprep.subr.mxu0 0.0
    %2510 = vmatpush1.xpose.msra.mxu0 0.0
    %2511 = vmatprep.subr.mxu0 0.0
    %2512 = vmatpush1.xpose.msra.mxu0 0.0
    %2513 = vmatprep.subr.mxu0 0.0
    %2514 = vmatpush1.xpose.msra.mxu0 0.0
    %2515 = vmatprep.subr.mxu0 0.0
    %2516 = vmatpush1.xpose.msra.mxu0 0.0
    %2517 = vmatprep.subr.mxu0 0.0
    %2518 = vmatpush1.xpose.msra.mxu0 0.0
    %2519 = vmatprep.subr.mxu0 0.0
    %2520 = vmatpush1.xpose.msra.mxu0 0.0
    %2521 = vmatprep.subr.mxu0 0.0
    %2522 = vmatpush1.xpose.msra.mxu0 0.0
    %2523 = vmatprep.subr.mxu0 0.0
    %2524 = vmatpush1.xpose.msra.mxu0 0.0
    %2525 = vmatprep.subr.mxu0 0.0
    %2526 = vmatpush1.xpose.msra.mxu0 0.0
    %2527 = vmatprep.subr.mxu0 0.0
    %2528 = vmatpush1.xpose.msra.mxu0 0.0
    %2529 = vmatprep.subr.mxu0 0.0
    %2530 = vmatpush1.xpose.msra.mxu0 0.0
    %2531 = vmatprep.subr.mxu0 0.0
    %2532 = vmatpush1.xpose.msra.mxu0 0.0
    %2533 = vmatprep.subr.mxu0 0.0
    %2534 = vmatpush1.xpose.msra.mxu0 0.0
    %2535 = vmatprep.mubr.f32.mxu0 0.0
    %2536 = vmatmul.mubr.f32.gmra.mrb[0].mxu0 %v2466
    %v2537 = vpop.f32.mrb[0].mxu0
    %v2538 = vadd.f32 0.0, %v2537
    %v2539 = vpop.f32.mrb[0].mxu0
    %2540 = vdwg.mxu0
    %v2541 = vmul.f32 %v2462, 0.35355338
    %v2542 = vmul.f32 %v2538, 0.35355338
    %v2543 = vadd.f32 %v2541, %v169
    %v2544 = vadd.f32 %v2542, %v173
    %v2545 = vsel %vm616, %v2543, -inf
    %2546 = vmax.xlane.f32.xlu0 %v2545
    %v2547 = vpop.xlane.xlu0 %2546
    %v2548 = vsel %vm616, %v2544, -inf
    %2549 = vmax.xlane.f32.xlu0 %v2548
    %v2550 = vpop.xlane.xlu0 %2549
    %v2551 = vsub.f32 %v2543, %v2547
    %v2552 = vsub.f32 %v2544, %v2550
    %v2553 = vmul.f32 %v2551, 1.442695
    %v2554 = vpow.pop %v2553
    %v2555 = vmul.f32 %v2552, 1.442695
    %v2556 = vpow.pop %v2555
    %v2557 = vsel %vm616, %v2554, 0.0
    %2558 = vadd.xlane.f32.xlu0 %v2557
    %v2559 = vpop.xlane.xlu0 %2558
    %v2560 = vsel %vm616, %v2556, 0.0
    %2561 = vadd.xlane.f32.xlu0 %v2560
    %v2562 = vpop.xlane.xlu0 %2561
    %v2563 = vrcp.pop %v2559
    %v2564 = vrcp.pop %v2562
    %v2565 = vmul.f32 %v2554, %v2563
    %v2566 = vmul.f32 %v2556, %v2564
    %v2567 = vmul.f32 %v2379, %v180
    %v2568 = vmul.f32 %v2384, %v180
    %v2569 = vmul.f32 %v2221, %v185
    %v2570 = vmul.f32 %v2226, %v185
    %v2572 = vsel %vm218, %v2569, 0
    %2574 = vmatprep.subr.mxu0 0.0
    %2575 = vmatpush1.xpose.msra.mxu0 %v2393
    %2576 = vmatprep.subr.mxu0 0.0
    %2577 = vmatpush1.xpose.msra.mxu0 0.0
    %2578 = vmatprep.subr.mxu0 0.0
    %2579 = vmatpush1.xpose.msra.mxu0 0.0
    %2580 = vmatprep.subr.mxu0 0.0
    %2581 = vmatpush1.xpose.msra.mxu0 0.0
    %2582 = vmatprep.subr.mxu0 0.0
    %2583 = vmatpush1.xpose.msra.mxu0 0.0
    %2584 = vmatprep.subr.mxu0 0.0
    %2585 = vmatpush1.xpose.msra.mxu0 0.0
    %2586 = vmatprep.subr.mxu0 0.0
    %2587 = vmatpush1.xpose.msra.mxu0 0.0
    %2588 = vmatprep.subr.mxu0 0.0
    %2589 = vmatpush1.xpose.msra.mxu0 0.0
    %2590 = vmatprep.subr.mxu0 0.0
    %2591 = vmatpush1.xpose.msra.mxu0 0.0
    %2592 = vmatprep.subr.mxu0 0.0
    %2593 = vmatpush1.xpose.msra.mxu0 0.0
    %2594 = vmatprep.subr.mxu0 0.0
    %2595 = vmatpush1.xpose.msra.mxu0 0.0
    %2596 = vmatprep.subr.mxu0 0.0
    %2597 = vmatpush1.xpose.msra.mxu0 0.0
    %2598 = vmatprep.subr.mxu0 0.0
    %2599 = vmatpush1.xpose.msra.mxu0 0.0
    %2600 = vmatprep.subr.mxu0 0.0
    %2601 = vmatpush1.xpose.msra.mxu0 0.0
    %2602 = vmatprep.subr.mxu0 0.0
    %2603 = vmatpush1.xpose.msra.mxu0 0.0
    %2604 = vmatprep.subr.mxu0 0.0
    %2605 = vmatpush1.xpose.msra.mxu0 0.0
    %2606 = vmatprep.subr.mxu0 0.0
    %2607 = vmatpush1.xpose.msra.mxu0 0.0
    %2608 = vmatprep.subr.mxu0 0.0
    %2609 = vmatpush1.xpose.msra.mxu0 0.0
    %2610 = vmatprep.subr.mxu0 0.0
    %2611 = vmatpush1.xpose.msra.mxu0 0.0
    %2612 = vmatprep.subr.mxu0 0.0
    %2613 = vmatpush1.xpose.msra.mxu0 0.0
    %2614 = vmatprep.subr.mxu0 0.0
    %2615 = vmatpush1.xpose.msra.mxu0 0.0
    %2616 = vmatprep.subr.mxu0 0.0
    %2617 = vmatpush1.xpose.msra.mxu0 0.0
    %2618 = vmatprep.subr.mxu0 0.0
    %2619 = vmatpush1.xpose.msra.mxu0 0.0
    %2620 = vmatprep.subr.mxu0 0.0
    %2621 = vmatpush1.xpose.msra.mxu0 0.0
    %2622 = vmatprep.subr.mxu0 0.0
    %2623 = vmatpush1.xpose.msra.mxu0 0.0
    %2624 = vmatprep.subr.mxu0 0.0
    %2625 = vmatpush1.xpose.msra.mxu0 0.0
    %2626 = vmatprep.subr.mxu0 0.0
    %2627 = vmatpush1.xpose.msra.mxu0 0.0
    %2628 = vmatprep.subr.mxu0 0.0
    %2629 = vmatpush1.xpose.msra.mxu0 0.0
    %2630 = vmatprep.subr.mxu0 0.0
    %2631 = vmatpush1.xpose.msra.mxu0 0.0
    %2632 = vmatprep.subr.mxu0 0.0
    %2633 = vmatpush1.xpose.msra.mxu0 0.0
    %2634 = vmatprep.subr.mxu0 0.0
    %2635 = vmatpush1.xpose.msra.mxu0 0.0
    %2636 = vmatprep.subr.mxu0 0.0
    %2637 = vmatpush1.xpose.msra.mxu0 0.0
    %2638 = vmatprep.mubr.f32.mxu0 0.0
    %2639 = vmatmul.mubr.f32.gmra.mrb[0].mxu0 %v2572
    %v2640 = vpop.f32.mrb[0].mxu0
    %v2641 = vadd.f32 0.0, %v2640
    %v2642 = vpop.f32.mrb[0].mxu0
    %2643 = vdwg.mxu0
    %v2645 = vsel %vm218, %v2570, 0
    %2647 = vmatprep.subr.mxu0 0.0
    %2648 = vmatpush1.xpose.msra.mxu0 %v2469
    %2649 = vmatprep.subr.mxu0 0.0
    %2650 = vmatpush1.xpose.msra.mxu0 0.0
    %2651 = vmatprep.subr.mxu0 0.0
    %2652 = vmatpush1.xpose.msra.mxu0 0.0
    %2653 = vmatprep.subr.mxu0 0.0
    %2654 = vmatpush1.xpose.msra.mxu0 0.0
    %2655 = vmatprep.subr.mxu0 0.0
    %2656 = vmatpush1.xpose.msra.mxu0 0.0
    %2657 = vmatprep.subr.mxu0 0.0
    %2658 = vmatpush1.xpose.msra.mxu0 0.0
    %2659 = vmatprep.subr.mxu0 0.0
    %2660 = vmatpush1.xpose.msra.mxu0 0.0
    %2661 = vmatprep.subr.mxu0 0.0
    %2662 = vmatpush1.xpose.msra.mxu0 0.0
    %2663 = vmatprep.subr.mxu0 0.0
    %2664 = vmatpush1.xpose.msra.mxu0 0.0
    %2665 = vmatprep.subr.mxu0 0.0
    %2666 = vmatpush1.xpose.msra.mxu0 0.0
    %2667 = vmatprep.subr.mxu0 0.0
    %2668 = vmatpush1.xpose.msra.mxu0 0.0
    %2669 = vmatprep.subr.mxu0 0.0
    %2670 = vmatpush1.xpose.msra.mxu0 0.0
    %2671 = vmatprep.subr.mxu0 0.0
    %2672 = vmatpush1.xpose.msra.mxu0 0.0
    %2673 = vmatprep.subr.mxu0 0.0
    %2674 = vmatpush1.xpose.msra.mxu0 0.0
    %2675 = vmatprep.subr.mxu0 0.0
    %2676 = vmatpush1.xpose.msra.mxu0 0.0
    %2677 = vmatprep.subr.mxu0 0.0
    %2678 = vmatpush1.xpose.msra.mxu0 0.0
    %2679 = vmatprep.subr.mxu0 0.0
    %2680 = vmatpush1.xpose.msra.mxu0 0.0
    %2681 = vmatprep.subr.mxu0 0.0
    %2682 = vmatpush1.xpose.msra.mxu0 0.0
    %2683 = vmatprep.subr.mxu0 0.0
    %2684 = vmatpush1.xpose.msra.mxu0 0.0
    %2685 = vmatprep.subr.mxu0 0.0
    %2686 = vmatpush1.xpose.msra.mxu0 0.0
    %2687 = vmatprep.subr.mxu0 0.0
    %2688 = vmatpush1.xpose.msra.mxu0 0.0
    %2689 = vmatprep.subr.mxu0 0.0
    %2690 = vmatpush1.xpose.msra.mxu0 0.0
    %2691 = vmatprep.subr.mxu0 0.0
    %2692 = vmatpush1.xpose.msra.mxu0 0.0
    %2693 = vmatprep.subr.mxu0 0.0
    %2694 = vmatpush1.xpose.msra.mxu0 0.0
    %2695 = vmatprep.subr.mxu0 0.0
    %2696 = vmatpush1.xpose.msra.mxu0 0.0
    %2697 = vmatprep.subr.mxu0 0.0
    %2698 = vmatpush1.xpose.msra.mxu0 0.0
    %2699 = vmatprep.subr.mxu0 0.0
    %2700 = vmatpush1.xpose.msra.mxu0 0.0
    %2701 = vmatprep.subr.mxu0 0.0
    %2702 = vmatpush1.xpose.msra.mxu0 0.0
    %2703 = vmatprep.subr.mxu0 0.0
    %2704 = vmatpush1.xpose.msra.mxu0 0.0
    %2705 = vmatprep.subr.mxu0 0.0
    %2706 = vmatpush1.xpose.msra.mxu0 0.0
    %2707 = vmatprep.subr.mxu0 0.0
    %2708 = vmatpush1.xpose.msra.mxu0 0.0
    %2709 = vmatprep.subr.mxu0 0.0
    %2710 = vmatpush1.xpose.msra.mxu0 0.0
    %2711 = vmatprep.mubr.f32.mxu0 0.0
    %2712 = vmatmul.mubr.f32.gmra.mrb[0].mxu0 %v2645
    %v2713 = vpop.f32.mrb[0].mxu0
    %v2714 = vadd.f32 0.0, %v2713
    %v2715 = vpop.f32.mrb[0].mxu0
    %2716 = vdwg.mxu0
    %v2717 = vmul.f32 %v2641, 0.35355338
    %v2718 = vmul.f32 %v2714, 0.35355338
    %v2719 = vadd.f32 %v2717, %v169
    %v2720 = vadd.f32 %v2718, %v173
    %v2721 = vsel %vm616, %v2719, -inf
    %2722 = vmax.xlane.f32.xlu0 %v2721
    %v2723 = vpop.xlane.xlu0 %2722
    %v2724 = vsel %vm616, %v2720, -inf
    %2725 = vmax.xlane.f32.xlu0 %v2724
    %v2726 = vpop.xlane.xlu0 %2725
    %v2727 = vsub.f32 %v2719, %v2723
    %v2728 = vsub.f32 %v2720, %v2726
    %v2729 = vmul.f32 %v2727, 1.442695
    %v2730 = vpow.pop %v2729
    %v2731 = vmul.f32 %v2728, 1.442695
    %v2732 = vpow.pop %v2731
    %v2733 = vsel %vm616, %v2730, 0.0
    %2734 = vadd.xlane.f32.xlu0 %v2733
    %v2735 = vpop.xlane.xlu0 %2734
    %v2736 = vsel %vm616, %v2732, 0.0
    %2737 = vadd.xlane.f32.xlu0 %v2736
    %v2738 = vpop.xlane.xlu0 %2737
    %v2739 = vrcp.pop %v2735
    %v2740 = vrcp.pop %v2738
    %v2741 = vmul.f32 %v2730, %v2739
    %v2742 = vmul.f32 %v2732, %v2740
    %v2743 = vmul.f32 %v2379, %v185
    %v2744 = vmul.f32 %v2384, %v185
    %v2746 = vsel %vm616, %v2741, 0
    %2748 = vmatprep.subr.mxu0 0.0
    %2749 = vmatpush1.msra.mxu0 %v2743
    %2750 = vmatprep.subr.mxu0 0.0
    %2751 = vmatpush1.msra.mxu0 0.0
    %2752 = vmatprep.subr.mxu0 0.0
    %2753 = vmatpush1.msra.mxu0 0.0
    %2754 = vmatprep.subr.mxu0 0.0
    %2755 = vmatpush1.msra.mxu0 0.0
    %2756 = vmatprep.subr.mxu0 0.0
    %2757 = vmatpush1.msra.mxu0 0.0
    %2758 = vmatprep.subr.mxu0 0.0
    %2759 = vmatpush1.msra.mxu0 0.0
    %2760 = vmatprep.subr.mxu0 0.0
    %2761 = vmatpush1.msra.mxu0 0.0
    %2762 = vmatprep.subr.mxu0 0.0
    %2763 = vmatpush1.msra.mxu0 0.0
    %2764 = vmatprep.subr.mxu0 0.0
    %2765 = vmatpush1.msra.mxu0 0.0
    %2766 = vmatprep.subr.mxu0 0.0
    %2767 = vmatpush1.msra.mxu0 0.0
    %2768 = vmatprep.subr.mxu0 0.0
    %2769 = vmatpush1.msra.mxu0 0.0
    %2770 = vmatprep.subr.mxu0 0.0
    %2771 = vmatpush1.msra.mxu0 0.0
    %2772 = vmatprep.subr.mxu0 0.0
    %2773 = vmatpush1.msra.mxu0 0.0
    %2774 = vmatprep.subr.mxu0 0.0
    %2775 = vmatpush1.msra.mxu0 0.0
    %2776 = vmatprep.subr.mxu0 0.0
    %2777 = vmatpush1.msra.mxu0 0.0
    %2778 = vmatprep.subr.mxu0 0.0
    %2779 = vmatpush1.msra.mxu0 0.0
    %2780 = vmatprep.subr.mxu0 0.0
    %2781 = vmatpush1.msra.mxu0 0.0
    %2782 = vmatprep.subr.mxu0 0.0
    %2783 = vmatpush1.msra.mxu0 0.0
    %2784 = vmatprep.subr.mxu0 0.0
    %2785 = vmatpush1.msra.mxu0 0.0
    %2786 = vmatprep.subr.mxu0 0.0
    %2787 = vmatpush1.msra.mxu0 0.0
    %2788 = vmatprep.subr.mxu0 0.0
    %2789 = vmatpush1.msra.mxu0 0.0
    %2790 = vmatprep.subr.mxu0 0.0
    %2791 = vmatpush1.msra.mxu0 0.0
    %2792 = vmatprep.subr.mxu0 0.0
    %2793 = vmatpush1.msra.mxu0 0.0
    %2794 = vmatprep.subr.mxu0 0.0
    %2795 = vmatpush1.msra.mxu0 0.0
    %2796 = vmatprep.subr.mxu0 0.0
    %2797 = vmatpush1.msra.mxu0 0.0
    %2798 = vmatprep.subr.mxu0 0.0
    %2799 = vmatpush1.msra.mxu0 0.0
    %2800 = vmatprep.subr.mxu0 0.0
    %2801 = vmatpush1.msra.mxu0 0.0
    %2802 = vmatprep.subr.mxu0 0.0
    %2803 = vmatpush1.msra.mxu0 0.0
    %2804 = vmatprep.subr.mxu0 0.0
    %2805 = vmatpush1.msra.mxu0 0.0
    %2806 = vmatprep.subr.mxu0 0.0
    %2807 = vmatpush1.msra.mxu0 0.0
    %2808 = vmatprep.subr.mxu0 0.0
    %2809 = vmatpush1.msra.mxu0 0.0
    %2810 = vmatprep.subr.mxu0 0.0
    %2811 = vmatpush1.msra.mxu0 0.0
    %2812 = vmatprep.mubr.f32.mxu0 0.0
    %2813 = vmatmul.mubr.f32.gmra.mrb[0].mxu0 %v2746
    %v2814 = vpop.f32.mrb[0].mxu0
    %v2815 = vadd.f32 0.0, %v2814
    %v2816 = vpop.f32.mrb[0].mxu0
    %2817 = vdwg.mxu0
    %v2819 = vsel %vm616, %v2742, 0
    %2821 = vmatprep.subr.mxu0 0.0
    %2822 = vmatpush1.msra.mxu0 %v2744
    %2823 = vmatprep.subr.mxu0 0.0
    %2824 = vmatpush1.msra.mxu0 0.0
    %2825 = vmatprep.subr.mxu0 0.0
    %2826 = vmatpush1.msra.mxu0 0.0
    %2827 = vmatprep.subr.mxu0 0.0
    %2828 = vmatpush1.msra.mxu0 0.0
    %2829 = vmatprep.subr.mxu0 0.0
    %2830 = vmatpush1.msra.mxu0 0.0
    %2831 = vmatprep.subr.mxu0 0.0
    %2832 = vmatpush1.msra.mxu0 0.0
    %2833 = vmatprep.subr.mxu0 0.0
    %2834 = vmatpush1.msra.mxu0 0.0
    %2835 = vmatprep.subr.mxu0 0.0
    %2836 = vmatpush1.msra.mxu0 0.0
    %2837 = vmatprep.subr.mxu0 0.0
    %2838 = vmatpush1.msra.mxu0 0.0
    %2839 = vmatprep.subr.mxu0 0.0
    %2840 = vmatpush1.msra.mxu0 0.0
    %2841 = vmatprep.subr.mxu0 0.0
    %2842 = vmatpush1.msra.mxu0 0.0
    %2843 = vmatprep.subr.mxu0 0.0
    %2844 = vmatpush1.msra.mxu0 0.0
    %2845 = vmatprep.subr.mxu0 0.0
    %2846 = vmatpush1.msra.mxu0 0.0
    %2847 = vmatprep.subr.mxu0 0.0
    %2848 = vmatpush1.msra.mxu0 0.0
    %2849 = vmatprep.subr.mxu0 0.0
    %2850 = vmatpush1.msra.mxu0 0.0
    %2851 = vmatprep.subr.mxu0 0.0
    %2852 = vmatpush1.msra.mxu0 0.0
    %2853 = vmatprep.subr.mxu0 0.0
    %2854 = vmatpush1.msra.mxu0 0.0
    %2855 = vmatprep.subr.mxu0 0.0
    %2856 = vmatpush1.msra.mxu0 0.0
    %2857 = vmatprep.subr.mxu0 0.0
    %2858 = vmatpush1.msra.mxu0 0.0
    %2859 = vmatprep.subr.mxu0 0.0
    %2860 = vmatpush1.msra.mxu0 0.0
    %2861 = vmatprep.subr.mxu0 0.0
    %2862 = vmatpush1.msra.mxu0 0.0
    %2863 = vmatprep.subr.mxu0 0.0
    %2864 = vmatpush1.msra.mxu0 0.0
    %2865 = vmatprep.subr.mxu0 0.0
    %2866 = vmatpush1.msra.mxu0 0.0
    %2867 = vmatprep.subr.mxu0 0.0
    %2868 = vmatpush1.msra.mxu0 0.0
    %2869 = vmatprep.subr.mxu0 0.0
    %2870 = vmatpush1.msra.mxu0 0.0
    %2871 = vmatprep.subr.mxu0 0.0
    %2872 = vmatpush1.msra.mxu0 0.0
    %2873 = vmatprep.subr.mxu0 0.0
    %2874 = vmatpush1.msra.mxu0 0.0
    %2875 = vmatprep.subr.mxu0 0.0
    %2876 = vmatpush1.msra.mxu0 0.0
    %2877 = vmatprep.subr.mxu0 0.0
    %2878 = vmatpush1.msra.mxu0 0.0
    %2879 = vmatprep.subr.mxu0 0.0
    %2880 = vmatpush1.msra.mxu0 0.0
    %2881 = vmatprep.subr.mxu0 0.0
    %2882 = vmatpush1.msra.mxu0 0.0
    %2883 = vmatprep.subr.mxu0 0.0
    %2884 = vmatpush1.msra.mxu0 0.0
    %2885 = vmatprep.mubr.f32.mxu0 0.0
    %2886 = vmatmul.mubr.f32.gmra.mrb[0].mxu0 %v2819
    %v2887 = vpop.f32.mrb[0].mxu0
    %v2888 = vadd.f32 0.0, %v2887
    %v2889 = vpop.f32.mrb[0].mxu0
    %2890 = vdwg.mxu0
    %v2892 = vsel %vm616, %v2565, 0
    %2894 = vmatprep.subr.mxu0 0.0
    %2895 = vmatpush1.msra.mxu0 %v2567
    %2896 = vmatprep.subr.mxu0 0.0
    %2897 = vmatpush1.msra.mxu0 0.0
    %2898 = vmatprep.subr.mxu0 0.0
    %2899 = vmatpush1.msra.mxu0 0.0
    %2900 = vmatprep.subr.mxu0 0.0
    %2901 = vmatpush1.msra.mxu0 0.0
    %2902 = vmatprep.subr.mxu0 0.0
    %2903 = vmatpush1.msra.mxu0 0.0
    %2904 = vmatprep.subr.mxu0 0.0
    %2905 = vmatpush1.msra.mxu0 0.0
    %2906 = vmatprep.subr.mxu0 0.0
    %2907 = vmatpush1.msra.mxu0 0.0
    %2908 = vmatprep.subr.mxu0 0.0
    %2909 = vmatpush1.msra.mxu0 0.0
    %2910 = vmatprep.subr.mxu0 0.0
    %2911 = vmatpush1.msra.mxu0 0.0
    %2912 = vmatprep.subr.mxu0 0.0
    %2913 = vmatpush1.msra.mxu0 0.0
    %2914 = vmatprep.subr.mxu0 0.0
    %2915 = vmatpush1.msra.mxu0 0.0
    %2916 = vmatprep.subr.mxu0 0.0
    %2917 = vmatpush1.msra.mxu0 0.0
    %2918 = vmatprep.subr.mxu0 0.0
    %2919 = vmatpush1.msra.mxu0 0.0
    %2920 = vmatprep.subr.mxu0 0.0
    %2921 = vmatpush1.msra.mxu0 0.0
    %2922 = vmatprep.subr.mxu0 0.0
    %2923 = vmatpush1.msra.mxu0 0.0
    %2924 = vmatprep.subr.mxu0 0.0
    %2925 = vmatpush1.msra.mxu0 0.0
    %2926 = vmatprep.subr.mxu0 0.0
    %2927 = vmatpush1.msra.mxu0 0.0
    %2928 = vmatprep.subr.mxu0 0.0
    %2929 = vmatpush1.msra.mxu0 0.0
    %2930 = vmatprep.subr.mxu0 0.0
    %2931 = vmatpush1.msra.mxu0 0.0
    %2932 = vmatprep.subr.mxu0 0.0
    %2933 = vmatpush1.msra.mxu0 0.0
    %2934 = vmatprep.subr.mxu0 0.0
    %2935 = vmatpush1.msra.mxu0 0.0
    %2936 = vmatprep.subr.mxu0 0.0
    %2937 = vmatpush1.msra.mxu0 0.0
    %2938 = vmatprep.subr.mxu0 0.0
    %2939 = vmatpush1.msra.mxu0 0.0
    %2940 = vmatprep.subr.mxu0 0.0
    %2941 = vmatpush1.msra.mxu0 0.0
    %2942 = vmatprep.subr.mxu0 0.0
    %2943 = vmatpush1.msra.mxu0 0.0
    %2944 = vmatprep.subr.mxu0 0.0
    %2945 = vmatpush1.msra.mxu0 0.0
    %2946 = vmatprep.subr.mxu0 0.0
    %2947 = vmatpush1.msra.mxu0 0.0
    %2948 = vmatprep.subr.mxu0 0.0
    %2949 = vmatpush1.msra.mxu0 0.0
    %2950 = vmatprep.subr.mxu0 0.0
    %2951 = vmatpush1.msra.mxu0 0.0
    %2952 = vmatprep.subr.mxu0 0.0
    %2953 = vmatpush1.msra.mxu0 0.0
    %2954 = vmatprep.subr.mxu0 0.0
    %2955 = vmatpush1.msra.mxu0 0.0
    %2956 = vmatprep.subr.mxu0 0.0
    %2957 = vmatpush1.msra.mxu0 0.0
    %2958 = vmatprep.mubr.f32.mxu0 0.0
    %2959 = vmatmul.mubr.f32.gmra.mrb[0].mxu0 %v2892
    %v2960 = vpop.f32.mrb[0].mxu0
    %v2961 = vadd.f32 %v2815, %v2960
    %v2962 = vpop.f32.mrb[0].mxu0
    %2963 = vdwg.mxu0
    %v2965 = vsel %vm616, %v2566, 0
    %2967 = vmatprep.subr.mxu0 0.0
    %2968 = vmatpush1.msra.mxu0 %v2568
    %2969 = vmatprep.subr.mxu0 0.0
    %2970 = vmatpush1.msra.mxu0 0.0
    %2971 = vmatprep.subr.mxu0 0.0
    %2972 = vmatpush1.msra.mxu0 0.0
    %2973 = vmatprep.subr.mxu0 0.0
    %2974 = vmatpush1.msra.mxu0 0.0
    %2975 = vmatprep.subr.mxu0 0.0
    %2976 = vmatpush1.msra.mxu0 0.0
    %2977 = vmatprep.subr.mxu0 0.0
    %2978 = vmatpush1.msra.mxu0 0.0
    %2979 = vmatprep.subr.mxu0 0.0
    %2980 = vmatpush1.msra.mxu0 0.0
    %2981 = vmatprep.subr.mxu0 0.0
    %2982 = vmatpush1.msra.mxu0 0.0
    %2983 = vmatprep.subr.mxu0 0.0
    %2984 = vmatpush1.msra.mxu0 0.0
    %2985 = vmatprep.subr.mxu0 0.0
    %2986 = vmatpush1.msra.mxu0 0.0
    %2987 = vmatprep.subr.mxu0 0.0
    %2988 = vmatpush1.msra.mxu0 0.0
    %2989 = vmatprep.subr.mxu0 0.0
    %2990 = vmatpush1.msra.mxu0 0.0
    %2991 = vmatprep.subr.mxu0 0.0
    %2992 = vmatpush1.msra.mxu0 0.0
    %2993 = vmatprep.subr.mxu0 0.0
    %2994 = vmatpush1.msra.mxu0 0.0
    %2995 = vmatprep.subr.mxu0 0.0
    %2996 = vmatpush1.msra.mxu0 0.0
    %2997 = vmatprep.subr.mxu0 0.0
    %2998 = vmatpush1.msra.mxu0 0.0
    %2999 = vmatprep.subr.mxu0 0.0
    %3000 = vmatpush1.msra.mxu0 0.0
    %3001 = vmatprep.subr.mxu0 0.0
    %3002 = vmatpush1.msra.mxu0 0.0
    %3003 = vmatprep.subr.mxu0 0.0
    %3004 = vmatpush1.msra.mxu0 0.0
    %3005 = vmatprep.subr.mxu0 0.0
    %3006 = vmatpush1.msra.mxu0 0.0
    %3007 = vmatprep.subr.mxu0 0.0
    %3008 = vmatpush1.msra.mxu0 0.0
    %3009 = vmatprep.subr.mxu0 0.0
    %3010 = vmatpush1.msra.mxu0 0.0
    %3011 = vmatprep.subr.mxu0 0.0
    %3012 = vmatpush1.msra.mxu0 0.0
    %3013 = vmatprep.subr.mxu0 0.0
    %3014 = vmatpush1.msra.mxu0 0.0
    %3015 = vmatprep.subr.mxu0 0.0
    %3016 = vmatpush1.msra.mxu0 0.0
    %3017 = vmatprep.subr.mxu0 0.0
    %3018 = vmatpush1.msra.mxu0 0.0
    %3019 = vmatprep.subr.mxu0 0.0
    %3020 = vmatpush1.msra.mxu0 0.0
    %3021 = vmatprep.subr.mxu0 0.0
    %3022 = vmatpush1.msra.mxu0 0.0
    %3023 = vmatprep.subr.mxu0 0.0
    %3024 = vmatpush1.msra.mxu0 0.0
    %3025 = vmatprep.subr.mxu0 0.0
    %3026 = vmatpush1.msra.mxu0 0.0
    %3027 = vmatprep.subr.mxu0 0.0
    %3028 = vmatpush1.msra.mxu0 0.0
    %3029 = vmatprep.subr.mxu0 0.0
    %3030 = vmatpush1.msra.mxu0 0.0
    %3031 = vmatprep.mubr.f32.mxu0 0.0
    %3032 = vmatmul.mubr.f32.gmra.mrb[0].mxu0 %v2965
    %v3033 = vpop.f32.mrb[0].mxu0
    %v3034 = vadd.f32 %v2888, %v3033
    %v3035 = vpop.f32.mrb[0].mxu0
    %3036 = vdwg.mxu0
    %v3037 = vmul.f32 %v2221, %v190
    %v3038 = vmul.f32 %v2226, %v190
    %v3040 = vsel %vm218, %v3037, 0
    %3042 = vmatprep.subr.mxu0 0.0
    %3043 = vmatpush1.xpose.msra.mxu0 %v2393
    %3044 = vmatprep.subr.mxu0 0.0
    %3045 = vmatpush1.xpose.msra.mxu0 0.0
    %3046 = vmatprep.subr.mxu0 0.0
    %3047 = vmatpush1.xpose.msra.mxu0 0.0
    %3048 = vmatprep.subr.mxu0 0.0
    %3049 = vmatpush1.xpose.msra.mxu0 0.0
    %3050 = vmatprep.subr.mxu0 0.0
    %3051 = vmatpush1.xpose.msra.mxu0 0.0
    %3052 = vmatprep.subr.mxu0 0.0
    %3053 = vmatpush1.xpose.msra.mxu0 0.0
    %3054 = vmatprep.subr.mxu0 0.0
    %3055 = vmatpush1.xpose.msra.mxu0 0.0
    %3056 = vmatprep.subr.mxu0 0.0
    %3057 = vmatpush1.xpose.msra.mxu0 0.0
    %3058 = vmatprep.subr.mxu0 0.0
    %3059 = vmatpush1.xpose.msra.mxu0 0.0
    %3060 = vmatprep.subr.mxu0 0.0
    %3061 = vmatpush1.xpose.msra.mxu0 0.0
    %3062 = vmatprep.subr.mxu0 0.0
    %3063 = vmatpush1.xpose.msra.mxu0 0.0
    %3064 = vmatprep.subr.mxu0 0.0
    %3065 = vmatpush1.xpose.msra.mxu0 0.0
    %3066 = vmatprep.subr.mxu0 0.0
    %3067 = vmatpush1.xpose.msra.mxu0 0.0
    %3068 = vmatprep.subr.mxu0 0.0
    %3069 = vmatpush1.xpose.msra.mxu0 0.0
    %3070 = vmatprep.subr.mxu0 0.0
    %3071 = vmatpush1.xpose.msra.mxu0 0.0
    %3072 = vmatprep.subr.mxu0 0.0
    %3073 = vmatpush1.xpose.msra.mxu0 0.0
    %3074 = vmatprep.subr.mxu0 0.0
    %3075 = vmatpush1.xpose.msra.mxu0 0.0
    %3076 = vmatprep.subr.mxu0 0.0
    %3077 = vmatpush1.xpose.msra.mxu0 0.0
    %3078 = vmatprep.subr.mxu0 0.0
    %3079 = vmatpush1.xpose.msra.mxu0 0.0
    %3080 = vmatprep.subr.mxu0 0.0
    %3081 = vmatpush1.xpose.msra.mxu0 0.0
    %3082 = vmatprep.subr.mxu0 0.0
    %3083 = vmatpush1.xpose.msra.mxu0 0.0
    %3084 = vmatprep.subr.mxu0 0.0
    %3085 = vmatpush1.xpose.msra.mxu0 0.0
    %3086 = vmatprep.subr.mxu0 0.0
    %3087 = vmatpush1.xpose.msra.mxu0 0.0
    %3088 = vmatprep.subr.mxu0 0.0
    %3089 = vmatpush1.xpose.msra.mxu0 0.0
    %3090 = vmatprep.subr.mxu0 0.0
    %3091 = vmatpush1.xpose.msra.mxu0 0.0
    %3092 = vmatprep.subr.mxu0 0.0
    %3093 = vmatpush1.xpose.msra.mxu0 0.0
    %3094 = vmatprep.subr.mxu0 0.0
    %3095 = vmatpush1.xpose.msra.mxu0 0.0
    %3096 = vmatprep.subr.mxu0 0.0
    %3097 = vmatpush1.xpose.msra.mxu0 0.0
    %3098 = vmatprep.subr.mxu0 0.0
    %3099 = vmatpush1.xpose.msra.mxu0 0.0
    %3100 = vmatprep.subr.mxu0 0.0
    %3101 = vmatpush1.xpose.msra.mxu0 0.0
    %3102 = vmatprep.subr.mxu0 0.0
    %3103 = vmatpush1.xpose.msra.mxu0 0.0
    %3104 = vmatprep.subr.mxu0 0.0
    %3105 = vmatpush1.xpose.msra.mxu0 0.0
    %3106 = vmatprep.mubr.f32.mxu0 0.0
    %3107 = vmatmul.mubr.f32.gmra.mrb[0].mxu0 %v3040
    %v3108 = vpop.f32.mrb[0].mxu0
    %v3109 = vadd.f32 0.0, %v3108
    %v3110 = vpop.f32.mrb[0].mxu0
    %3111 = vdwg.mxu0
    %v3113 = vsel %vm218, %v3038, 0
    %3115 = vmatprep.subr.mxu0 0.0
    %3116 = vmatpush1.xpose.msra.mxu0 %v2469
    %3117 = vmatprep.subr.mxu0 0.0
    %3118 = vmatpush1.xpose.msra.mxu0 0.0
    %3119 = vmatprep.subr.mxu0 0.0
    %3120 = vmatpush1.xpose.msra.mxu0 0.0
    %3121 = vmatprep.subr.mxu0 0.0
    %3122 = vmatpush1.xpose.msra.mxu0 0.0
    %3123 = vmatprep.subr.mxu0 0.0
    %3124 = vmatpush1.xpose.msra.mxu0 0.0
    %3125 = vmatprep.subr.mxu0 0.0
    %3126 = vmatpush1.xpose.msra.mxu0 0.0
    %3127 = vmatprep.subr.mxu0 0.0
    %3128 = vmatpush1.xpose.msra.mxu0 0.0
    %3129 = vmatprep.subr.mxu0 0.0
    %3130 = vmatpush1.xpose.msra.mxu0 0.0
    %3131 = vmatprep.subr.mxu0 0.0
    %3132 = vmatpush1.xpose.msra.mxu0 0.0
    %3133 = vmatprep.subr.mxu0 0.0
    %3134 = vmatpush1.xpose.msra.mxu0 0.0
    %3135 = vmatprep.subr.mxu0 0.0
    %3136 = vmatpush1.xpose.msra.mxu0 0.0
    %3137 = vmatprep.subr.mxu0 0.0
    %3138 = vmatpush1.xpose.msra.mxu0 0.0
    %3139 = vmatprep.subr.mxu0 0.0
    %3140 = vmatpush1.xpose.msra.mxu0 0.0
    %3141 = vmatprep.subr.mxu0 0.0
    %3142 = vmatpush1.xpose.msra.mxu0 0.0
    %3143 = vmatprep.subr.mxu0 0.0
    %3144 = vmatpush1.xpose.msra.mxu0 0.0
    %3145 = vmatprep.subr.mxu0 0.0
    %3146 = vmatpush1.xpose.msra.mxu0 0.0
    %3147 = vmatprep.subr.mxu0 0.0
    %3148 = vmatpush1.xpose.msra.mxu0 0.0
    %3149 = vmatprep.subr.mxu0 0.0
    %3150 = vmatpush1.xpose.msra.mxu0 0.0
    %3151 = vmatprep.subr.mxu0 0.0
    %3152 = vmatpush1.xpose.msra.mxu0 0.0
    %3153 = vmatprep.subr.mxu0 0.0
    %3154 = vmatpush1.xpose.msra.mxu0 0.0
    %3155 = vmatprep.subr.mxu0 0.0
    %3156 = vmatpush1.xpose.msra.mxu0 0.0
    %3157 = vmatprep.subr.mxu0 0.0
    %3158 = vmatpush1.xpose.msra.mxu0 0.0
    %3159 = vmatprep.subr.mxu0 0.0
    %3160 = vmatpush1.xpose.msra.mxu0 0.0
    %3161 = vmatprep.subr.mxu0 0.0
    %3162 = vmatpush1.xpose.msra.mxu0 0.0
    %3163 = vmatprep.subr.mxu0 0.0
    %3164 = vmatpush1.xpose.msra.mxu0 0.0
    %3165 = vmatprep.subr.mxu0 0.0
    %3166 = vmatpush1.xpose.msra.mxu0 0.0
    %3167 = vmatprep.subr.mxu0 0.0
    %3168 = vmatpush1.xpose.msra.mxu0 0.0
    %3169 = vmatprep.subr.mxu0 0.0
    %3170 = vmatpush1.xpose.msra.mxu0 0.0
    %3171 = vmatprep.subr.mxu0 0.0
    %3172 = vmatpush1.xpose.msra.mxu0 0.0
    %3173 = vmatprep.subr.mxu0 0.0
    %3174 = vmatpush1.xpose.msra.mxu0 0.0
    %3175 = vmatprep.subr.mxu0 0.0
    %3176 = vmatpush1.xpose.msra.mxu0 0.0
    %3177 = vmatprep.subr.mxu0 0.0
    %3178 = vmatpush1.xpose.msra.mxu0 0.0
    %3179 = vmatprep.mubr.f32.mxu0 0.0
    %3180 = vmatmul.mubr.f32.gmra.mrb[0].mxu0 %v3113
    %v3181 = vpop.f32.mrb[0].mxu0
    %v3182 = vadd.f32 0.0, %v3181
    %v3183 = vpop.f32.mrb[0].mxu0
    %3184 = vdwg.mxu0
    %v3185 = vmul.f32 %v3109, 0.35355338
    %v3186 = vmul.f32 %v3182, 0.35355338
    %v3187 = vadd.f32 %v3185, %v169
    %v3188 = vadd.f32 %v3186, %v173
    %v3189 = vsel %vm616, %v3187, -inf
    %3190 = vmax.xlane.f32.xlu0 %v3189
    %v3191 = vpop.xlane.xlu0 %3190
    %v3192 = vsel %vm616, %v3188, -inf
    %3193 = vmax.xlane.f32.xlu0 %v3192
    %v3194 = vpop.xlane.xlu0 %3193
    %v3195 = vsub.f32 %v3187, %v3191
    %v3196 = vsub.f32 %v3188, %v3194
    %v3197 = vmul.f32 %v3195, 1.442695
    %v3198 = vpow.pop %v3197
    %v3199 = vmul.f32 %v3196, 1.442695
    %v3200 = vpow.pop %v3199
    %v3201 = vsel %vm616, %v3198, 0.0
    %3202 = vadd.xlane.f32.xlu0 %v3201
    %v3203 = vpop.xlane.xlu0 %3202
    %v3204 = vsel %vm616, %v3200, 0.0
    %3205 = vadd.xlane.f32.xlu0 %v3204
    %v3206 = vpop.xlane.xlu0 %3205
    %v3207 = vrcp.pop %v3203
    %v3208 = vrcp.pop %v3206
    %v3209 = vmul.f32 %v3198, %v3207
    %v3210 = vmul.f32 %v3200, %v3208
    %v3211 = vmul.f32 %v2379, %v190
    %v3212 = vmul.f32 %v2384, %v190
    %v3214 = vsel %vm616, %v3209, 0
    %3216 = vmatprep.subr.mxu0 0.0
    %3217 = vmatpush1.msra.mxu0 %v3211
    %3218 = vmatprep.subr.mxu0 0.0
    %3219 = vmatpush1.msra.mxu0 0.0
    %3220 = vmatprep.subr.mxu0 0.0
    %3221 = vmatpush1.msra.mxu0 0.0
    %3222 = vmatprep.subr.mxu0 0.0
    %3223 = vmatpush1.msra.mxu0 0.0
    %3224 = vmatprep.subr.mxu0 0.0
    %3225 = vmatpush1.msra.mxu0 0.0
    %3226 = vmatprep.subr.mxu0 0.0
    %3227 = vmatpush1.msra.mxu0 0.0
    %3228 = vmatprep.subr.mxu0 0.0
    %3229 = vmatpush1.msra.mxu0 0.0
    %3230 = vmatprep.subr.mxu0 0.0
    %3231 = vmatpush1.msra.mxu0 0.0
    %3232 = vmatprep.subr.mxu0 0.0
    %3233 = vmatpush1.msra.mxu0 0.0
    %3234 = vmatprep.subr.mxu0 0.0
    %3235 = vmatpush1.msra.mxu0 0.0
    %3236 = vmatprep.subr.mxu0 0.0
    %3237 = vmatpush1.msra.mxu0 0.0
    %3238 = vmatprep.subr.mxu0 0.0
    %3239 = vmatpush1.msra.mxu0 0.0
    %3240 = vmatprep.subr.mxu0 0.0
    %3241 = vmatpush1.msra.mxu0 0.0
    %3242 = vmatprep.subr.mxu0 0.0
    %3243 = vmatpush1.msra.mxu0 0.0
    %3244 = vmatprep.subr.mxu0 0.0
    %3245 = vmatpush1.msra.mxu0 0.0
    %3246 = vmatprep.subr.mxu0 0.0
    %3247 = vmatpush1.msra.mxu0 0.0
    %3248 = vmatprep.subr.mxu0 0.0
    %3249 = vmatpush1.msra.mxu0 0.0
    %3250 = vmatprep.subr.mxu0 0.0
    %3251 = vmatpush1.msra.mxu0 0.0
    %3252 = vmatprep.subr.mxu0 0.0
    %3253 = vmatpush1.msra.mxu0 0.0
    %3254 = vmatprep.subr.mxu0 0.0
    %3255 = vmatpush1.msra.mxu0 0.0
    %3256 = vmatprep.subr.mxu0 0.0
    %3257 = vmatpush1.msra.mxu0 0.0
    %3258 = vmatprep.subr.mxu0 0.0
    %3259 = vmatpush1.msra.mxu0 0.0
    %3260 = vmatprep.subr.mxu0 0.0
    %3261 = vmatpush1.msra.mxu0 0.0
    %3262 = vmatprep.subr.mxu0 0.0
    %3263 = vmatpush1.msra.mxu0 0.0
    %3264 = vmatprep.subr.mxu0 0.0
    %3265 = vmatpush1.msra.mxu0 0.0
    %3266 = vmatprep.subr.mxu0 0.0
    %3267 = vmatpush1.msra.mxu0 0.0
    %3268 = vmatprep.subr.mxu0 0.0
    %3269 = vmatpush1.msra.mxu0 0.0
    %3270 = vmatprep.subr.mxu0 0.0
    %3271 = vmatpush1.msra.mxu0 0.0
    %3272 = vmatprep.subr.mxu0 0.0
    %3273 = vmatpush1.msra.mxu0 0.0
    %3274 = vmatprep.subr.mxu0 0.0
    %3275 = vmatpush1.msra.mxu0 0.0
    %3276 = vmatprep.subr.mxu0 0.0
    %3277 = vmatpush1.msra.mxu0 0.0
    %3278 = vmatprep.subr.mxu0 0.0
    %3279 = vmatpush1.msra.mxu0 0.0
    %3280 = vmatprep.mubr.f32.mxu0 0.0
    %3281 = vmatmul.mubr.f32.gmra.mrb[0].mxu0 %v3214
    %v3282 = vpop.f32.mrb[0].mxu0
    %v3283 = vadd.f32 0.0, %v3282
    %v3284 = vpop.f32.mrb[0].mxu0
    %3285 = vdwg.mxu0
    %v3287 = vsel %vm616, %v3210, 0
    %3289 = vmatprep.subr.mxu0 0.0
    %3290 = vmatpush1.msra.mxu0 %v3212
    %3291 = vmatprep.subr.mxu0 0.0
    %3292 = vmatpush1.msra.mxu0 0.0
    %3293 = vmatprep.subr.mxu0 0.0
    %3294 = vmatpush1.msra.mxu0 0.0
    %3295 = vmatprep.subr.mxu0 0.0
    %3296 = vmatpush1.msra.mxu0 0.0
    %3297 = vmatprep.subr.mxu0 0.0
    %3298 = vmatpush1.msra.mxu0 0.0
    %3299 = vmatprep.subr.mxu0 0.0
    %3300 = vmatpush1.msra.mxu0 0.0
    %3301 = vmatprep.subr.mxu0 0.0
    %3302 = vmatpush1.msra.mxu0 0.0
    %3303 = vmatprep.subr.mxu0 0.0
    %3304 = vmatpush1.msra.mxu0 0.0
    %3305 = vmatprep.subr.mxu0 0.0
    %3306 = vmatpush1.msra.mxu0 0.0
    %3307 = vmatprep.subr.mxu0 0.0
    %3308 = vmatpush1.msra.mxu0 0.0
    %3309 = vmatprep.subr.mxu0 0.0
    %3310 = vmatpush1.msra.mxu0 0.0
    %3311 = vmatprep.subr.mxu0 0.0
    %3312 = vmatpush1.msra.mxu0 0.0
    %3313 = vmatprep.subr.mxu0 0.0
    %3314 = vmatpush1.msra.mxu0 0.0
    %3315 = vmatprep.subr.mxu0 0.0
    %3316 = vmatpush1.msra.mxu0 0.0
    %3317 = vmatprep.subr.mxu0 0.0
    %3318 = vmatpush1.msra.mxu0 0.0
    %3319 = vmatprep.subr.mxu0 0.0
    %3320 = vmatpush1.msra.mxu0 0.0
    %3321 = vmatprep.subr.mxu0 0.0
    %3322 = vmatpush1.msra.mxu0 0.0
    %3323 = vmatprep.subr.mxu0 0.0
    %3324 = vmatpush1.msra.mxu0 0.0
    %3325 = vmatprep.subr.mxu0 0.0
    %3326 = vmatpush1.msra.mxu0 0.0
    %3327 = vmatprep.subr.mxu0 0.0
    %3328 = vmatpush1.msra.mxu0 0.0
    %3329 = vmatprep.subr.mxu0 0.0
    %3330 = vmatpush1.msra.mxu0 0.0
    %3331 = vmatprep.subr.mxu0 0.0
    %3332 = vmatpush1.msra.mxu0 0.0
    %3333 = vmatprep.subr.mxu0 0.0
    %3334 = vmatpush1.msra.mxu0 0.0
    %3335 = vmatprep.subr.mxu0 0.0
    %3336 = vmatpush1.msra.mxu0 0.0
    %3337 = vmatprep.subr.mxu0 0.0
    %3338 = vmatpush1.msra.mxu0 0.0
    %3339 = vmatprep.subr.mxu0 0.0
    %3340 = vmatpush1.msra.mxu0 0.0
    %3341 = vmatprep.subr.mxu0 0.0
    %3342 = vmatpush1.msra.mxu0 0.0
    %3343 = vmatprep.subr.mxu0 0.0
    %3344 = vmatpush1.msra.mxu0 0.0
    %3345 = vmatprep.subr.mxu0 0.0
    %3346 = vmatpush1.msra.mxu0 0.0
    %3347 = vmatprep.subr.mxu0 0.0
    %3348 = vmatpush1.msra.mxu0 0.0
    %3349 = vmatprep.subr.mxu0 0.0
    %3350 = vmatpush1.msra.mxu0 0.0
    %3351 = vmatprep.subr.mxu0 0.0
    %3352 = vmatpush1.msra.mxu0 0.0
    %3353 = vmatprep.mubr.f32.mxu0 0.0
    %3354 = vmatmul.mubr.f32.gmra.mrb[0].mxu0 %v3287
    %v3355 = vpop.f32.mrb[0].mxu0
    %v3356 = vadd.f32 0.0, %v3355
    %v3357 = vpop.f32.mrb[0].mxu0
    %3358 = vdwg.mxu0
    %v3359 = vadd.f32 %v2961, %v3283
    %v3360 = vadd.f32 %v3034, %v3356
    %v3361 = vmul.f32 %v2221, %v195
    %v3362 = vmul.f32 %v2226, %v195
    %v3364 = vsel %vm218, %v3361, 0
    %3366 = vmatprep.subr.mxu0 0.0
    %3367 = vmatpush1.xpose.msra.mxu0 %v2393
    %3368 = vmatprep.subr.mxu0 0.0
    %3369 = vmatpush1.xpose.msra.mxu0 0.0
    %3370 = vmatprep.subr.mxu0 0.0
    %3371 = vmatpush1.xpose.msra.mxu0 0.0
    %3372 = vmatprep.subr.mxu0 0.0
    %3373 = vmatpush1.xpose.msra.mxu0 0.0
    %3374 = vmatprep.subr.mxu0 0.0
    %3375 = vmatpush1.xpose.msra.mxu0 0.0
    %3376 = vmatprep.subr.mxu0 0.0
    %3377 = vmatpush1.xpose.msra.mxu0 0.0
    %3378 = vmatprep.subr.mxu0 0.0
    %3379 = vmatpush1.xpose.msra.mxu0 0.0
    %3380 = vmatprep.subr.mxu0 0.0
    %3381 = vmatpush1.xpose.msra.mxu0 0.0
    %3382 = vmatprep.subr.mxu0 0.0
    %3383 = vmatpush1.xpose.msra.mxu0 0.0
    %3384 = vmatprep.subr.mxu0 0.0
    %3385 = vmatpush1.xpose.msra.mxu0 0.0
    %3386 = vmatprep.subr.mxu0 0.0
    %3387 = vmatpush1.xpose.msra.mxu0 0.0
    %3388 = vmatprep.subr.mxu0 0.0
    %3389 = vmatpush1.xpose.msra.mxu0 0.0
    %3390 = vmatprep.subr.mxu0 0.0
    %3391 = vmatpush1.xpose.msra.mxu0 0.0
    %3392 = vmatprep.subr.mxu0 0.0
    %3393 = vmatpush1.xpose.msra.mxu0 0.0
    %3394 = vmatprep.subr.mxu0 0.0
    %3395 = vmatpush1.xpose.msra.mxu0 0.0
    %3396 = vmatprep.subr.mxu0 0.0
    %3397 = vmatpush1.xpose.msra.mxu0 0.0
    %3398 = vmatprep.subr.mxu0 0.0
    %3399 = vmatpush1.xpose.msra.mxu0 0.0
    %3400 = vmatprep.subr.mxu0 0.0
    %3401 = vmatpush1.xpose.msra.mxu0 0.0
    %3402 = vmatprep.subr.mxu0 0.0
    %3403 = vmatpush1.xpose.msra.mxu0 0.0
    %3404 = vmatprep.subr.mxu0 0.0
    %3405 = vmatpush1.xpose.msra.mxu0 0.0
    %3406 = vmatprep.subr.mxu0 0.0
    %3407 = vmatpush1.xpose.msra.mxu0 0.0
    %3408 = vmatprep.subr.mxu0 0.0
    %3409 = vmatpush1.xpose.msra.mxu0 0.0
    %3410 = vmatprep.subr.mxu0 0.0
    %3411 = vmatpush1.xpose.msra.mxu0 0.0
    %3412 = vmatprep.subr.mxu0 0.0
    %3413 = vmatpush1.xpose.msra.mxu0 0.0
    %3414 = vmatprep.subr.mxu0 0.0
    %3415 = vmatpush1.xpose.msra.mxu0 0.0
    %3416 = vmatprep.subr.mxu0 0.0
    %3417 = vmatpush1.xpose.msra.mxu0 0.0
    %3418 = vmatprep.subr.mxu0 0.0
    %3419 = vmatpush1.xpose.msra.mxu0 0.0
    %3420 = vmatprep.subr.mxu0 0.0
    %3421 = vmatpush1.xpose.msra.mxu0 0.0
    %3422 = vmatprep.subr.mxu0 0.0
    %3423 = vmatpush1.xpose.msra.mxu0 0.0
    %3424 = vmatprep.subr.mxu0 0.0
    %3425 = vmatpush1.xpose.msra.mxu0 0.0
    %3426 = vmatprep.subr.mxu0 0.0
    %3427 = vmatpush1.xpose.msra.mxu0 0.0
    %3428 = vmatprep.subr.mxu0 0.0
    %3429 = vmatpush1.xpose.msra.mxu0 0.0
    %3430 = vmatprep.mubr.f32.mxu0 0.0
    %3431 = vmatmul.mubr.f32.gmra.mrb[0].mxu0 %v3364
    %v3432 = vpop.f32.mrb[0].mxu0
    %v3433 = vadd.f32 0.0, %v3432
    %v3434 = vpop.f32.mrb[0].mxu0
    %3435 = vdwg.mxu0
    %v3437 = vsel %vm218, %v3362, 0
    %3439 = vmatprep.subr.mxu0 0.0
    %3440 = vmatpush1.xpose.msra.mxu0 %v2469
    %3441 = vmatprep.subr.mxu0 0.0
    %3442 = vmatpush1.xpose.msra.mxu0 0.0
    %3443 = vmatprep.subr.mxu0 0.0
    %3444 = vmatpush1.xpose.msra.mxu0 0.0
    %3445 = vmatprep.subr.mxu0 0.0
    %3446 = vmatpush1.xpose.msra.mxu0 0.0
    %3447 = vmatprep.subr.mxu0 0.0
    %3448 = vmatpush1.xpose.msra.mxu0 0.0
    %3449 = vmatprep.subr.mxu0 0.0
    %3450 = vmatpush1.xpose.msra.mxu0 0.0
    %3451 = vmatprep.subr.mxu0 0.0
    %3452 = vmatpush1.xpose.msra.mxu0 0.0
    %3453 = vmatprep.subr.mxu0 0.0
    %3454 = vmatpush1.xpose.msra.mxu0 0.0
    %3455 = vmatprep.subr.mxu0 0.0
    %3456 = vmatpush1.xpose.msra.mxu0 0.0
    %3457 = vmatprep.subr.mxu0 0.0
    %3458 = vmatpush1.xpose.msra.mxu0 0.0
    %3459 = vmatprep.subr.mxu0 0.0
    %3460 = vmatpush1.xpose.msra.mxu0 0.0
    %3461 = vmatprep.subr.mxu0 0.0
    %3462 = vmatpush1.xpose.msra.mxu0 0.0
    %3463 = vmatprep.subr.mxu0 0.0
    %3464 = vmatpush1.xpose.msra.mxu0 0.0
    %3465 = vmatprep.subr.mxu0 0.0
    %3466 = vmatpush1.xpose.msra.mxu0 0.0
    %3467 = vmatprep.subr.mxu0 0.0
    %3468 = vmatpush1.xpose.msra.mxu0 0.0
    %3469 = vmatprep.subr.mxu0 0.0
    %3470 = vmatpush1.xpose.msra.mxu0 0.0
    %3471 = vmatprep.subr.mxu0 0.0
    %3472 = vmatpush1.xpose.msra.mxu0 0.0
    %3473 = vmatprep.subr.mxu0 0.0
    %3474 = vmatpush1.xpose.msra.mxu0 0.0
    %3475 = vmatprep.subr.mxu0 0.0
    %3476 = vmatpush1.xpose.msra.mxu0 0.0
    %3477 = vmatprep.subr.mxu0 0.0
    %3478 = vmatpush1.xpose.msra.mxu0 0.0
    %3479 = vmatprep.subr.mxu0 0.0
    %3480 = vmatpush1.xpose.msra.mxu0 0.0
    %3481 = vmatprep.subr.mxu0 0.0
    %3482 = vmatpush1.xpose.msra.mxu0 0.0
    %3483 = vmatprep.subr.mxu0 0.0
    %3484 = vmatpush1.xpose.msra.mxu0 0.0
    %3485 = vmatprep.subr.mxu0 0.0
    %3486 = vmatpush1.xpose.msra.mxu0 0.0
    %3487 = vmatprep.subr.mxu0 0.0
    %3488 = vmatpush1.xpose.msra.mxu0 0.0
    %3489 = vmatprep.subr.mxu0 0.0
    %3490 = vmatpush1.xpose.msra.mxu0 0.0
    %3491 = vmatprep.subr.mxu0 0.0
    %3492 = vmatpush1.xpose.msra.mxu0 0.0
    %3493 = vmatprep.subr.mxu0 0.0
    %3494 = vmatpush1.xpose.msra.mxu0 0.0
    %3495 = vmatprep.subr.mxu0 0.0
    %3496 = vmatpush1.xpose.msra.mxu0 0.0
    %3497 = vmatprep.subr.mxu0 0.0
    %3498 = vmatpush1.xpose.msra.mxu0 0.0
    %3499 = vmatprep.subr.mxu0 0.0
    %3500 = vmatpush1.xpose.msra.mxu0 0.0
    %3501 = vmatprep.subr.mxu0 0.0
    %3502 = vmatpush1.xpose.msra.mxu0 0.0
    %3503 = vmatprep.mubr.f32.mxu0 0.0
    %3504 = vmatmul.mubr.f32.gmra.mrb[0].mxu0 %v3437
    %v3505 = vpop.f32.mrb[0].mxu0
    %v3506 = vadd.f32 0.0, %v3505
    %v3507 = vpop.f32.mrb[0].mxu0
    %3508 = vdwg.mxu0
    %v3509 = vmul.f32 %v3433, 0.35355338
    %v3510 = vmul.f32 %v3506, 0.35355338
    %v3511 = vadd.f32 %v3509, %v169
    %v3512 = vadd.f32 %v3510, %v173
    %v3513 = vsel %vm616, %v3511, -inf
    %3514 = vmax.xlane.f32.xlu0 %v3513
    %v3515 = vpop.xlane.xlu0 %3514
    %v3516 = vsel %vm616, %v3512, -inf
    %3517 = vmax.xlane.f32.xlu0 %v3516
    %v3518 = vpop.xlane.xlu0 %3517
    %v3519 = vsub.f32 %v3511, %v3515
    %v3520 = vsub.f32 %v3512, %v3518
    %v3521 = vmul.f32 %v3519, 1.442695
    %v3522 = vpow.pop %v3521
    %v3523 = vmul.f32 %v3520, 1.442695
    %v3524 = vpow.pop %v3523
    %v3525 = vsel %vm616, %v3522, 0.0
    %3526 = vadd.xlane.f32.xlu0 %v3525
    %v3527 = vpop.xlane.xlu0 %3526
    %v3528 = vsel %vm616, %v3524, 0.0
    %3529 = vadd.xlane.f32.xlu0 %v3528
    %v3530 = vpop.xlane.xlu0 %3529
    %v3531 = vrcp.pop %v3527
    %v3532 = vrcp.pop %v3530
    %v3533 = vmul.f32 %v3522, %v3531
    %v3534 = vmul.f32 %v3524, %v3532
    %v3535 = vmul.f32 %v2379, %v195
    %v3536 = vmul.f32 %v2384, %v195
    %v3538 = vsel %vm616, %v3533, 0
    %3540 = vmatprep.subr.mxu0 0.0
    %3541 = vmatpush1.msra.mxu0 %v3535
    %3542 = vmatprep.subr.mxu0 0.0
    %3543 = vmatpush1.msra.mxu0 0.0
    %3544 = vmatprep.subr.mxu0 0.0
    %3545 = vmatpush1.msra.mxu0 0.0
    %3546 = vmatprep.subr.mxu0 0.0
    %3547 = vmatpush1.msra.mxu0 0.0
    %3548 = vmatprep.subr.mxu0 0.0
    %3549 = vmatpush1.msra.mxu0 0.0
    %3550 = vmatprep.subr.mxu0 0.0
    %3551 = vmatpush1.msra.mxu0 0.0
    %3552 = vmatprep.subr.mxu0 0.0
    %3553 = vmatpush1.msra.mxu0 0.0
    %3554 = vmatprep.subr.mxu0 0.0
    %3555 = vmatpush1.msra.mxu0 0.0
    %3556 = vmatprep.subr.mxu0 0.0
    %3557 = vmatpush1.msra.mxu0 0.0
    %3558 = vmatprep.subr.mxu0 0.0
    %3559 = vmatpush1.msra.mxu0 0.0
    %3560 = vmatprep.subr.mxu0 0.0
    %3561 = vmatpush1.msra.mxu0 0.0
    %3562 = vmatprep.subr.mxu0 0.0
    %3563 = vmatpush1.msra.mxu0 0.0
    %3564 = vmatprep.subr.mxu0 0.0
    %3565 = vmatpush1.msra.mxu0 0.0
    %3566 = vmatprep.subr.mxu0 0.0
    %3567 = vmatpush1.msra.mxu0 0.0
    %3568 = vmatprep.subr.mxu0 0.0
    %3569 = vmatpush1.msra.mxu0 0.0
    %3570 = vmatprep.subr.mxu0 0.0
    %3571 = vmatpush1.msra.mxu0 0.0
    %3572 = vmatprep.subr.mxu0 0.0
    %3573 = vmatpush1.msra.mxu0 0.0
    %3574 = vmatprep.subr.mxu0 0.0
    %3575 = vmatpush1.msra.mxu0 0.0
    %3576 = vmatprep.subr.mxu0 0.0
    %3577 = vmatpush1.msra.mxu0 0.0
    %3578 = vmatprep.subr.mxu0 0.0
    %3579 = vmatpush1.msra.mxu0 0.0
    %3580 = vmatprep.subr.mxu0 0.0
    %3581 = vmatpush1.msra.mxu0 0.0
    %3582 = vmatprep.subr.mxu0 0.0
    %3583 = vmatpush1.msra.mxu0 0.0
    %3584 = vmatprep.subr.mxu0 0.0
    %3585 = vmatpush1.msra.mxu0 0.0
    %3586 = vmatprep.subr.mxu0 0.0
    %3587 = vmatpush1.msra.mxu0 0.0
    %3588 = vmatprep.subr.mxu0 0.0
    %3589 = vmatpush1.msra.mxu0 0.0
    %3590 = vmatprep.subr.mxu0 0.0
    %3591 = vmatpush1.msra.mxu0 0.0
    %3592 = vmatprep.subr.mxu0 0.0
    %3593 = vmatpush1.msra.mxu0 0.0
    %3594 = vmatprep.subr.mxu0 0.0
    %3595 = vmatpush1.msra.mxu0 0.0
    %3596 = vmatprep.subr.mxu0 0.0
    %3597 = vmatpush1.msra.mxu0 0.0
    %3598 = vmatprep.subr.mxu0 0.0
    %3599 = vmatpush1.msra.mxu0 0.0
    %3600 = vmatprep.subr.mxu0 0.0
    %3601 = vmatpush1.msra.mxu0 0.0
    %3602 = vmatprep.subr.mxu0 0.0
    %3603 = vmatpush1.msra.mxu0 0.0
    %3604 = vmatprep.mubr.f32.mxu0 0.0
    %3605 = vmatmul.mubr.f32.gmra.mrb[0].mxu0 %v3538
    %v3606 = vpop.f32.mrb[0].mxu0
    %v3607 = vadd.f32 0.0, %v3606
    %v3608 = vpop.f32.mrb[0].mxu0
    %3609 = vdwg.mxu0
    %v3611 = vsel %vm616, %v3534, 0
    %3613 = vmatprep.subr.mxu0 0.0
    %3614 = vmatpush1.msra.mxu0 %v3536
    %3615 = vmatprep.subr.mxu0 0.0
    %3616 = vmatpush1.msra.mxu0 0.0
    %3617 = vmatprep.subr.mxu0 0.0
    %3618 = vmatpush1.msra.mxu0 0.0
    %3619 = vmatprep.subr.mxu0 0.0
    %3620 = vmatpush1.msra.mxu0 0.0
    %3621 = vmatprep.subr.mxu0 0.0
    %3622 = vmatpush1.msra.mxu0 0.0
    %3623 = vmatprep.subr.mxu0 0.0
    %3624 = vmatpush1.msra.mxu0 0.0
    %3625 = vmatprep.subr.mxu0 0.0
    %3626 = vmatpush1.msra.mxu0 0.0
    %3627 = vmatprep.subr.mxu0 0.0
    %3628 = vmatpush1.msra.mxu0 0.0
    %3629 = vmatprep.subr.mxu0 0.0
    %3630 = vmatpush1.msra.mxu0 0.0
    %3631 = vmatprep.subr.mxu0 0.0
    %3632 = vmatpush1.msra.mxu0 0.0
    %3633 = vmatprep.subr.mxu0 0.0
    %3634 = vmatpush1.msra.mxu0 0.0
    %3635 = vmatprep.subr.mxu0 0.0
    %3636 = vmatpush1.msra.mxu0 0.0
    %3637 = vmatprep.subr.mxu0 0.0
    %3638 = vmatpush1.msra.mxu0 0.0
    %3639 = vmatprep.subr.mxu0 0.0
    %3640 = vmatpush1.msra.mxu0 0.0
    %3641 = vmatprep.subr.mxu0 0.0
    %3642 = vmatpush1.msra.mxu0 0.0
    %3643 = vmatprep.subr.mxu0 0.0
    %3644 = vmatpush1.msra.mxu0 0.0
    %3645 = vmatprep.subr.mxu0 0.0
    %3646 = vmatpush1.msra.mxu0 0.0
    %3647 = vmatprep.subr.mxu0 0.0
    %3648 = vmatpush1.msra.mxu0 0.0
    %3649 = vmatprep.subr.mxu0 0.0
    %3650 = vmatpush1.msra.mxu0 0.0
    %3651 = vmatprep.subr.mxu0 0.0
    %3652 = vmatpush1.msra.mxu0 0.0
    %3653 = vmatprep.subr.mxu0 0.0
    %3654 = vmatpush1.msra.mxu0 0.0
    %3655 = vmatprep.subr.mxu0 0.0
    %3656 = vmatpush1.msra.mxu0 0.0
    %3657 = vmatprep.subr.mxu0 0.0
    %3658 = vmatpush1.msra.mxu0 0.0
    %3659 = vmatprep.subr.mxu0 0.0
    %3660 = vmatpush1.msra.mxu0 0.0
    %3661 = vmatprep.subr.mxu0 0.0
    %3662 = vmatpush1.msra.mxu0 0.0
    %3663 = vmatprep.subr.mxu0 0.0
    %3664 = vmatpush1.msra.mxu0 0.0
    %3665 = vmatprep.subr.mxu0 0.0
    %3666 = vmatpush1.msra.mxu0 0.0
    %3667 = vmatprep.subr.mxu0 0.0
    %3668 = vmatpush1.msra.mxu0 0.0
    %3669 = vmatprep.subr.mxu0 0.0
    %3670 = vmatpush1.msra.mxu0 0.0
    %3671 = vmatprep.subr.mxu0 0.0
    %3672 = vmatpush1.msra.mxu0 0.0
    %3673 = vmatprep.subr.mxu0 0.0
    %3674 = vmatpush1.msra.mxu0 0.0
    %3675 = vmatprep.subr.mxu0 0.0
    %3676 = vmatpush1.msra.mxu0 0.0
    %3677 = vmatprep.mubr.f32.mxu0 0.0
    %3678 = vmatmul.mubr.f32.gmra.mrb[0].mxu0 %v3611
    %v3679 = vpop.f32.mrb[0].mxu0
    %v3680 = vadd.f32 0.0, %v3679
    %v3681 = vpop.f32.mrb[0].mxu0
    %3682 = vdwg.mxu0
    %v3683 = vadd.f32 %v3359, %v3607
    %v3684 = vadd.f32 %v3360, %v3680
    %v3685 = vlaneseq
    %v3686 = vshrl.u32 %v3685, 7
    %v3687 = vsub.s32 3, %v3686
    %v3688 = vrot.slane %v2142, %v3687
    %v3690 = vsel %vm218, %v3683, 0
    %v3693 = vsel %vm218, %v3684, 0
    %3695 = vmatprep.subr.mxu0 0.0
    %3696 = vmatpush1.msra.mxu0 %v2137
    %3697 = vmatprep.subr.mxu0 0.0
    %3698 = vmatpush1.msra.mxu0 %v2138
    %3699 = vmatprep.subr.mxu0 0.0
    %3700 = vmatpush1.msra.mxu0 %v2139
    %3701 = vmatprep.subr.mxu0 0.0
    %3702 = vmatpush1.msra.mxu0 %v2140
    %3703 = vmatprep.subr.mxu0 0.0
    %3704 = vmatpush1.msra.mxu0 0.0
    %3705 = vmatprep.subr.mxu0 0.0
    %3706 = vmatpush1.msra.mxu0 0.0
    %3707 = vmatprep.subr.mxu0 0.0
    %3708 = vmatpush1.msra.mxu0 0.0
    %3709 = vmatprep.subr.mxu0 0.0
    %3710 = vmatpush1.msra.mxu0 0.0
    %3711 = vmatprep.subr.mxu0 0.0
    %3712 = vmatpush1.msra.mxu0 0.0
    %3713 = vmatprep.subr.mxu0 0.0
    %3714 = vmatpush1.msra.mxu0 0.0
    %3715 = vmatprep.subr.mxu0 0.0
    %3716 = vmatpush1.msra.mxu0 0.0
    %3717 = vmatprep.subr.mxu0 0.0
    %3718 = vmatpush1.msra.mxu0 0.0
    %3719 = vmatprep.subr.mxu0 0.0
    %3720 = vmatpush1.msra.mxu0 0.0
    %3721 = vmatprep.subr.mxu0 0.0
    %3722 = vmatpush1.msra.mxu0 0.0
    %3723 = vmatprep.subr.mxu0 0.0
    %3724 = vmatpush1.msra.mxu0 0.0
    %3725 = vmatprep.subr.mxu0 0.0
    %3726 = vmatpush1.msra.mxu0 0.0
    %3727 = vmatprep.subr.mxu0 0.0
    %3728 = vmatpush1.msra.mxu0 0.0
    %3729 = vmatprep.subr.mxu0 0.0
    %3730 = vmatpush1.msra.mxu0 0.0
    %3731 = vmatprep.subr.mxu0 0.0
    %3732 = vmatpush1.msra.mxu0 0.0
    %3733 = vmatprep.subr.mxu0 0.0
    %3734 = vmatpush1.msra.mxu0 0.0
    %3735 = vmatprep.subr.mxu0 0.0
    %3736 = vmatpush1.msra.mxu0 0.0
    %3737 = vmatprep.subr.mxu0 0.0
    %3738 = vmatpush1.msra.mxu0 0.0
    %3739 = vmatprep.subr.mxu0 0.0
    %3740 = vmatpush1.msra.mxu0 0.0
    %3741 = vmatprep.subr.mxu0 0.0
    %3742 = vmatpush1.msra.mxu0 0.0
    %3743 = vmatprep.subr.mxu0 0.0
    %3744 = vmatpush1.msra.mxu0 0.0
    %3745 = vmatprep.subr.mxu0 0.0
    %3746 = vmatpush1.msra.mxu0 0.0
    %3747 = vmatprep.subr.mxu0 0.0
    %3748 = vmatpush1.msra.mxu0 0.0
    %3749 = vmatprep.subr.mxu0 0.0
    %3750 = vmatpush1.msra.mxu0 0.0
    %3751 = vmatprep.subr.mxu0 0.0
    %3752 = vmatpush1.msra.mxu0 0.0
    %3753 = vmatprep.subr.mxu0 0.0
    %3754 = vmatpush1.msra.mxu0 0.0
    %3755 = vmatprep.subr.mxu0 0.0
    %3756 = vmatpush1.msra.mxu0 0.0
    %3757 = vmatprep.subr.mxu0 0.0
    %3758 = vmatpush1.msra.mxu0 0.0
    %3759 = vmatprep.mubr.f32.mxu0 0.0
    %3760 = vmatmul.mubr.f32.gmra.mrb[0].mxu0 %v3690
    %v3761 = vpop.f32.mrb[0].mxu0
    %v3762 = vadd.f32 %v3688, %v3761
    %v3763 = vpop.f32.mrb[0].mxu0
    %3764 = vmatprep.mubr.f32.mxu0 0.0
    %3765 = vmatmul.mubr.f32.gmra.mrb[0].mxu0 %v3693
    %v3766 = vpop.f32.mrb[0].mxu0
    %v3767 = vadd.f32 %v3688, %v3766
    %v3768 = vpop.f32.mrb[0].mxu0
    %3769 = vdwg.mxu0
    %v3770 = vadd.f32 %v2122, %v3762
    %v3771 = vadd.f32 %v2123, %v3767
    %v3772 = vsel %vm218, %v3770, 0.0
    %3773 = vadd.xlane.f32.xlu0 %v3772
    %v3774 = vpop.xlane.xlu0 %3773
    %v3775 = vsel %vm218, %v3771, 0.0
    %3776 = vadd.xlane.f32.xlu0 %v3775
    %v3777 = vpop.xlane.xlu0 %3776
    %v3778 = vmul.f32 %v3774, %v1850
    %v3779 = vmul.f32 %v3777, %v1850
    %v3780 = vsub.f32 %v3770, %v3778
    %v3781 = vsub.f32 %v3771, %v3779
    %v3782 = vmul.f32 %v3780, %v3780
    %v3783 = vmul.f32 %v3781, %v3781
    %v3784 = vsel %vm218, %v3782, 0.0
    %3785 = vadd.xlane.f32.xlu0 %v3784
    %v3786 = vpop.xlane.xlu0 %3785
    %v3787 = vsel %vm218, %v3783, 0.0
    %3788 = vadd.xlane.f32.xlu0 %v3787
    %v3789 = vpop.xlane.xlu0 %3788
    %v3790 = vmul.f32 %v3786, %v1850
    %v3791 = vmul.f32 %v3789, %v1850
    %v3792 = vadd.f32 %v3790, 1e-05
    %v3793 = vadd.f32 %v3791, 1e-05
    %v3794 = vrsqrt.pop %v3792
    %v3795 = vrsqrt.pop %v3793
    %v3796 = vmul.f32 %v3780, %v3794
    %v3797 = vmul.f32 %v3781, %v3795
    %v3798 = vlaneseq
    %v3799 = vshrl.u32 %v3798, 7
    %v3800 = vsub.s32 4, %v3799
    %v3801 = vrot.slane %v2142, %v3800
    %v3802 = vmul.f32 %v3796, %v3801
    %v3803 = vmul.f32 %v3797, %v3801
    %v3804 = vlaneseq
    %v3805 = vshrl.u32 %v3804, 7
    %v3806 = vsub.s32 5, %v3805
    %v3807 = vrot.slane %v2142, %v3806
    %v3808 = vadd.f32 %v3802, %v3807
    %v3809 = vadd.f32 %v3803, %v3807
    %s3810 = scalar_lea.vmem %s5, 32
    %v3811 = vld [vmem:[%s3810] sm:$0xff]
    %v3812 = vld [vmem:[%s3810 + $0x8] sm:$0xff]
    %v3813 = vld [vmem:[%s3810 + $0x10] sm:$0xff]
    %v3814 = vld [vmem:[%s3810 + $0x18] sm:$0xff]
    %v3815 = vlaneseq
    %v3816 = vshrl.u32 %v3815, 7
    %v3817 = vsub.s32 6, %v3816
    %v3818 = vrot.slane %v2142, %v3817
    %v3820 = vsel %vm218, %v3808, 0
    %v3823 = vsel %vm218, %v3809, 0
    %3825 = vmatprep.subr.mxu0 0.0
    %3826 = vmatpush1.msra.mxu0 %v3811
    %3827 = vmatprep.subr.mxu0 0.0
    %3828 = vmatpush1.msra.mxu0 %v3812
    %3829 = vmatprep.subr.mxu0 0.0
    %3830 = vmatpush1.msra.mxu0 %v3813
    %3831 = vmatprep.subr.mxu0 0.0
    %3832 = vmatpush1.msra.mxu0 %v3814
    %3833 = vmatprep.subr.mxu0 0.0
    %3834 = vmatpush1.msra.mxu0 0.0
    %3835 = vmatprep.subr.mxu0 0.0
    %3836 = vmatpush1.msra.mxu0 0.0
    %3837 = vmatprep.subr.mxu0 0.0
    %3838 = vmatpush1.msra.mxu0 0.0
    %3839 = vmatprep.subr.mxu0 0.0
    %3840 = vmatpush1.msra.mxu0 0.0
    %3841 = vmatprep.subr.mxu0 0.0
    %3842 = vmatpush1.msra.mxu0 0.0
    %3843 = vmatprep.subr.mxu0 0.0
    %3844 = vmatpush1.msra.mxu0 0.0
    %3845 = vmatprep.subr.mxu0 0.0
    %3846 = vmatpush1.msra.mxu0 0.0
    %3847 = vmatprep.subr.mxu0 0.0
    %3848 = vmatpush1.msra.mxu0 0.0
    %3849 = vmatprep.subr.mxu0 0.0
    %3850 = vmatpush1.msra.mxu0 0.0
    %3851 = vmatprep.subr.mxu0 0.0
    %3852 = vmatpush1.msra.mxu0 0.0
    %3853 = vmatprep.subr.mxu0 0.0
    %3854 = vmatpush1.msra.mxu0 0.0
    %3855 = vmatprep.subr.mxu0 0.0
    %3856 = vmatpush1.msra.mxu0 0.0
    %3857 = vmatprep.subr.mxu0 0.0
    %3858 = vmatpush1.msra.mxu0 0.0
    %3859 = vmatprep.subr.mxu0 0.0
    %3860 = vmatpush1.msra.mxu0 0.0
    %3861 = vmatprep.subr.mxu0 0.0
    %3862 = vmatpush1.msra.mxu0 0.0
    %3863 = vmatprep.subr.mxu0 0.0
    %3864 = vmatpush1.msra.mxu0 0.0
    %3865 = vmatprep.subr.mxu0 0.0
    %3866 = vmatpush1.msra.mxu0 0.0
    %3867 = vmatprep.subr.mxu0 0.0
    %3868 = vmatpush1.msra.mxu0 0.0
    %3869 = vmatprep.subr.mxu0 0.0
    %3870 = vmatpush1.msra.mxu0 0.0
    %3871 = vmatprep.subr.mxu0 0.0
    %3872 = vmatpush1.msra.mxu0 0.0
    %3873 = vmatprep.subr.mxu0 0.0
    %3874 = vmatpush1.msra.mxu0 0.0
    %3875 = vmatprep.subr.mxu0 0.0
    %3876 = vmatpush1.msra.mxu0 0.0
    %3877 = vmatprep.subr.mxu0 0.0
    %3878 = vmatpush1.msra.mxu0 0.0
    %3879 = vmatprep.subr.mxu0 0.0
    %3880 = vmatpush1.msra.mxu0 0.0
    %3881 = vmatprep.subr.mxu0 0.0
    %3882 = vmatpush1.msra.mxu0 0.0
    %3883 = vmatprep.subr.mxu0 0.0
    %3884 = vmatpush1.msra.mxu0 0.0
    %3885 = vmatprep.subr.mxu0 0.0
    %3886 = vmatpush1.msra.mxu0 0.0
    %3887 = vmatprep.subr.mxu0 0.0
    %3888 = vmatpush1.msra.mxu0 0.0
    %3889 = vmatprep.mubr.f32.mxu0 0.0
    %3890 = vmatmul.mubr.f32.gmra.mrb[0].mxu0 %v3820
    %v3891 = vpop.f32.mrb[0].mxu0
    %v3892 = vadd.f32 %v3818, %v3891
    %v3893 = vpop.f32.mrb[0].mxu0
    %3894 = vmatprep.mubr.f32.mxu0 0.0
    %3895 = vmatmul.mubr.f32.gmra.mrb[0].mxu0 %v3823
    %v3896 = vpop.f32.mrb[0].mxu0
    %v3897 = vadd.f32 %v3818, %v3896
    %v3898 = vpop.f32.mrb[0].mxu0
    %3899 = vdwg.mxu0
    %v3900 = vmul.f32 %v3892, 0.5
    %v3901 = vmul.f32 %v3897, 0.5
    %v3902 = vmul.f32 %v3892, 0.044715
    %v3903 = vmul.f32 %v3897, 0.044715
    %v3904 = vmul.f32 %v3902, %v3892
    %v3905 = vmul.f32 %v3903, %v3897
    %v3906 = vmul.f32 %v3904, %v3892
    %v3907 = vmul.f32 %v3905, %v3897
    %v3908 = vadd.f32 %v3892, %v3906
    %v3909 = vadd.f32 %v3897, %v3907
    %v3910 = vmul.f32 %v3908, 0.7978846
    %v3911 = vmul.f32 %v3909, 0.7978846
    %v3912 = vtanh.pop %v3910
    %v3913 = vtanh.pop %v3911
    %v3914 = vadd.f32 %v3912, 1.0
    %v3915 = vadd.f32 %v3913, 1.0
    %v3916 = vmul.f32 %v3900, %v3914
    %v3917 = vmul.f32 %v3901, %v3915
    %s3918 = scalar_lea.vmem %s6, 64
    %v3919 = vld [vmem:[%s3918] sm:$0xff]
    %v3920 = vld [vmem:[%s3918 + $0x8] sm:$0xff]
    %v3921 = vld [vmem:[%s3918 + $0x10] sm:$0xff]
    %v3922 = vld [vmem:[%s3918 + $0x18] sm:$0xff]
    %v3923 = vld [vmem:[%s3918 + $0x20] sm:$0xff]
    %v3924 = vld [vmem:[%s3918 + $0x28] sm:$0xff]
    %v3925 = vld [vmem:[%s3918 + $0x30] sm:$0xff]
    %v3926 = vld [vmem:[%s3918 + $0x38] sm:$0xff]
    %v3927 = vlaneseq
    %v3928 = vshrl.u32 %v3927, 7
    %v3929 = vsub.s32 7, %v3928
    %v3930 = vrot.slane %v2142, %v3929
    %v3932 = vsel %vm2002, %v3916, 0
    %v3935 = vsel %vm2002, %v3917, 0
    %3937 = vmatprep.subr.mxu0 0.0
    %3938 = vmatpush1.msra.mxu0 %v3919
    %3939 = vmatprep.subr.mxu0 0.0
    %3940 = vmatpush1.msra.mxu0 %v3920
    %3941 = vmatprep.subr.mxu0 0.0
    %3942 = vmatpush1.msra.mxu0 %v3921
    %3943 = vmatprep.subr.mxu0 0.0
    %3944 = vmatpush1.msra.mxu0 %v3922
    %3945 = vmatprep.subr.mxu0 0.0
    %3946 = vmatpush1.msra.mxu0 %v3923
    %3947 = vmatprep.subr.mxu0 0.0
    %3948 = vmatpush1.msra.mxu0 %v3924
    %3949 = vmatprep.subr.mxu0 0.0
    %3950 = vmatpush1.msra.mxu0 %v3925
    %3951 = vmatprep.subr.mxu0 0.0
    %3952 = vmatpush1.msra.mxu0 %v3926
    %3953 = vmatprep.subr.mxu0 0.0
    %3954 = vmatpush1.msra.mxu0 0.0
    %3955 = vmatprep.subr.mxu0 0.0
    %3956 = vmatpush1.msra.mxu0 0.0
    %3957 = vmatprep.subr.mxu0 0.0
    %3958 = vmatpush1.msra.mxu0 0.0
    %3959 = vmatprep.subr.mxu0 0.0
    %3960 = vmatpush1.msra.mxu0 0.0
    %3961 = vmatprep.subr.mxu0 0.0
    %3962 = vmatpush1.msra.mxu0 0.0
    %3963 = vmatprep.subr.mxu0 0.0
    %3964 = vmatpush1.msra.mxu0 0.0
    %3965 = vmatprep.subr.mxu0 0.0
    %3966 = vmatpush1.msra.mxu0 0.0
    %3967 = vmatprep.subr.mxu0 0.0
    %3968 = vmatpush1.msra.mxu0 0.0
    %3969 = vmatprep.subr.mxu0 0.0
    %3970 = vmatpush1.msra.mxu0 0.0
    %3971 = vmatprep.subr.mxu0 0.0
    %3972 = vmatpush1.msra.mxu0 0.0
    %3973 = vmatprep.subr.mxu0 0.0
    %3974 = vmatpush1.msra.mxu0 0.0
    %3975 = vmatprep.subr.mxu0 0.0
    %3976 = vmatpush1.msra.mxu0 0.0
    %3977 = vmatprep.subr.mxu0 0.0
    %3978 = vmatpush1.msra.mxu0 0.0
    %3979 = vmatprep.subr.mxu0 0.0
    %3980 = vmatpush1.msra.mxu0 0.0
    %3981 = vmatprep.subr.mxu0 0.0
    %3982 = vmatpush1.msra.mxu0 0.0
    %3983 = vmatprep.subr.mxu0 0.0
    %3984 = vmatpush1.msra.mxu0 0.0
    %3985 = vmatprep.subr.mxu0 0.0
    %3986 = vmatpush1.msra.mxu0 0.0
    %3987 = vmatprep.subr.mxu0 0.0
    %3988 = vmatpush1.msra.mxu0 0.0
    %3989 = vmatprep.subr.mxu0 0.0
    %3990 = vmatpush1.msra.mxu0 0.0
    %3991 = vmatprep.subr.mxu0 0.0
    %3992 = vmatpush1.msra.mxu0 0.0
    %3993 = vmatprep.subr.mxu0 0.0
    %3994 = vmatpush1.msra.mxu0 0.0
    %3995 = vmatprep.subr.mxu0 0.0
    %3996 = vmatpush1.msra.mxu0 0.0
    %3997 = vmatprep.subr.mxu0 0.0
    %3998 = vmatpush1.msra.mxu0 0.0
    %3999 = vmatprep.subr.mxu0 0.0
    %4000 = vmatpush1.msra.mxu0 0.0
    %4001 = vmatprep.mubr.f32.mxu0 0.0
    %4002 = vmatmul.mubr.f32.gmra.mrb[0].mxu0 %v3932
    %v4003 = vpop.f32.mrb[0].mxu0
    %v4004 = vadd.f32 %v3930, %v4003
    %v4005 = vpop.f32.mrb[0].mxu0
    %4006 = vmatprep.mubr.f32.mxu0 0.0
    %4007 = vmatmul.mubr.f32.gmra.mrb[0].mxu0 %v3935
    %v4008 = vpop.f32.mrb[0].mxu0
    %v4009 = vadd.f32 %v3930, %v4008
    %v4010 = vpop.f32.mrb[0].mxu0
    %4011 = vdwg.mxu0
    %v4012 = vadd.f32 %v3808, %v4004
    %v4013 = vadd.f32 %v3809, %v4009
    %v4014 = vsel %vm218, %v4012, 0.0
    %4015 = vadd.xlane.f32.xlu0 %v4014
    %v4016 = vpop.xlane.xlu0 %4015
    %v4017 = vsel %vm218, %v4013, 0.0
    %4018 = vadd.xlane.f32.xlu0 %v4017
    %v4019 = vpop.xlane.xlu0 %4018
    %v4020 = vmul.f32 %v4016, %v1850
    %v4021 = vmul.f32 %v4019, %v1850
    %v4022 = vsub.f32 %v4012, %v4020
    %v4023 = vsub.f32 %v4013, %v4021
    %v4024 = vmul.f32 %v4022, %v4022
    %v4025 = vmul.f32 %v4023, %v4023
    %v4026 = vsel %vm218, %v4024, 0.0
    %4027 = vadd.xlane.f32.xlu0 %v4026
    %v4028 = vpop.xlane.xlu0 %4027
    %v4029 = vsel %vm218, %v4025, 0.0
    %4030 = vadd.xlane.f32.xlu0 %v4029
    %v4031 = vpop.xlane.xlu0 %4030
    %v4032 = vmul.f32 %v4028, %v1850
    %v4033 = vmul.f32 %v4031, %v1850
    %v4034 = vadd.f32 %v4032, 1e-05
    %v4035 = vadd.f32 %v4033, 1e-05
    %v4036 = vrsqrt.pop %v4034
    %v4037 = vrsqrt.pop %v4035
    %v4038 = vmul.f32 %v4022, %v4036
    %v4039 = vmul.f32 %v4023, %v4037
    %v4040 = vlaneseq
    %v4041 = vshrl.u32 %v4040, 7
    %v4042 = vsub.s32 0, %v4041
    %v4043 = vrot.slane %v2143, %v4042
    %v4044 = vmul.f32 %v4038, %v4043
    %v4045 = vmul.f32 %v4039, %v4043
    %v4046 = vlaneseq
    %v4047 = vshrl.u32 %v4046, 7
    %v4048 = vsub.s32 1, %v4047
    %v4049 = vrot.slane %v2143, %v4048
    %v4050 = vadd.f32 %v4044, %v4049
    %v4051 = vadd.f32 %v4045, %v4049
    %v4052 = vmul.f32 %v4050, %v4050
    %v4053 = vmul.f32 %v4051, %v4051
    %v4056 = vrot.slane %v4053, 7
    %vm4057 = vcmask 1041409
    %v4058 = vsel %vm4057, %v4056, %v4052
    %vm4060 = vcmask 254976
    %v4061 = vsel %vm4060, %v4058, 0.0
    %4062 = vadd.xlane.f32.xlu0 %v4061
    %v4063 = vpop.xlane.xlu0 %4062
    %v4064 = vrsqrt.pop %v4063
    %v4066 = vrot.slane %v4064, 1
    %v4069 = vmul.f32 %v4050, %v4064
    %v4070 = vmul.f32 %v4051, %v4066
    %v4073 = vrot.slane %v4070, 7
    %v4074 = vsel %vm4057, %v4073, %v4069
    %4076 = vst.msk [vmem:[#allocation2] sm:$0x3] %vm4060, %v4074
    // Predicated region
    $region34: #{tpu_custom_call.1} parent=1 // pred_check
      _
    $region35: #{tpu_custom_call.1} parent=1 // pred_check_branch
      %4078 = sbr.rel (0) target = $region37
    $region36: #{tpu_custom_call.1} parent=1 // pred_region
      %s4080 = ssub.s32 32, 32
      %4081 = vsyncadd [#allocation3], %s4080
      %s4083 = sshll.u32 [#allocation2], 4
      %s4084 = int_to_ptr.vmem [resolvable:$true] %s4083
      %4086 = dma.vmem_to_hbm [thread:$0]  %s4084, 32, %s8, [#allocation3]
    $region37: #{tpu_custom_call.1} parent=1 // pred_fallthru
      _
    // Predicated region
    $region38: #{tpu_custom_call.1} parent=1 // pred_check
      _
    $region39: #{tpu_custom_call.1} parent=1 // pred_check_branch
      %4088 = sbr.rel (0) target = $region41
    $region40: #{tpu_custom_call.1} parent=1 // pred_region
      %4089 = dma.done [#allocation3], 32
    $region41: #{tpu_custom_call.1} parent=1 // pred_fallthru
      _
    %4090 = vsyncpa [#allocation3], 1

</llo_original>
